<compile_context>
chip_gen: v5e
topology: v5e:2x2
jax: 0.10.0
libtpu: 0.0.40
codegen_flags: <defaults>
</compile_context>

<pallas_src>
import jax
import jax.numpy as jnp
from jax.experimental import pallas as pl
from jax.experimental.pallas import tpu as pltpu

NUM_CLASSES = 10
HIDDEN_CONV = 32
HIDDEN_FC = 128
KSIZE = 3
IMG = 32                        # spatial size implied by the .view(-1, C*16*16)
POOLED = IMG // 2               # 16
PATCH = KSIZE * KSIZE * 3       # 27: one conv patch
POOLWIN = 4                     # 2x2 AvgPool window
GROUP = 4                       # pooled rows (h) packed per lane-dense feature row
SGROUPS = POOLED * POOLED // GROUP        # 64 grouped-spatial rows per image
GPATCH = GROUP * POOLWIN * PATCH          # 432 im2col columns per grouped row
LANE = GROUP * HIDDEN_CONV                # 128 lane-dense feature width
D_FEAT = HIDDEN_CONV * POOLED * POOLED    # 8192

USE_BF16 = True                 # bf16 MXU operands, f32 accumulation; False = full f32
COMPUTE_DTYPE = jnp.bfloat16 if USE_BF16 else jnp.float32

TB_MAX = 64                     # batch-tile cap (VMEM-safe on v7x's 64 MiB)


# ------------------------------- fused kernel -------------------------------

def fused_kernel(cols_ref, wc_ref, bc_ref, w1_ref, b1_ref, w2_ref, b2_ref, o_ref):
    # cols_ref: (64, TB, 432) grouped pooled-im2col, spatial-group major.
    # wc_ref:   (432, 128) block-diagonal conv weight (resident).
    # w1_ref:   (64, 128, 128) fc1 weight matching the packed feature layout.
    tb = cols_ref.shape[1]

    # conv + avgpool-sum in one matmul (leading-dim merge only -> no relayout).
    cols = cols_ref[...].reshape(SGROUPS * tb, GPATCH)               # (64*TB, 432)
    acc = jnp.dot(cols, wc_ref[...], preferred_element_type=jnp.float32)
    y = 0.25 * acc + bc_ref[...]            # AvgPool2d(2) of (conv + bias), f32
    feat = (y * y).astype(COMPUTE_DTYPE)    # x = x * x                 (64*TB, 128)

    # fc1: batched matmul over the grouped-spatial axis, then reduce it.
    feat3 = feat.reshape(SGROUPS, tb, LANE)                           # (64, TB, 128)
    t = jax.lax.dot_general(
        feat3, w1_ref[...],
        dimension_numbers=(((2,), (1,)), ((0,), (0,))),               # 'sbc,scj->sbj'
        preferred_element_type=jnp.float32)                           # (64, TB, 128)
    h = jnp.sum(t, axis=0) + b1_ref[...]                              # (TB, 128)

    # fc2 (padded to 128 class lanes) + rational "softmax" + normalize.
    logit = jnp.dot(h, w2_ref[...], preferred_element_type=jnp.float32) + b2_ref[...]
    out = 1.0 + logit + 0.5 * logit * logit
    lanes = jax.lax.broadcasted_iota(jnp.int32, out.shape, 1)
    # NOTE: this mask AND the zero-padded w2/b2 are coupled — without the mask each
    # padded lane would add +1 to the denominator through the "1 + z" term.
    out = jnp.where(lanes < NUM_CLASSES, out, 0.0)
    denom = jnp.sum(out, axis=1, keepdims=True)    # strictly positive (>= 0.5*10)
    o_ref[...] = out / denom


# --------------------- one-time parameter preparation -----------------------

def prepare_params(params):
    """Repack PyTorch-shaped params ONCE, outside the jitted forward."""
    conv_w, conv_b, fc1_w, fc1_b, fc2_w, fc2_b = params

    # conv weight (32,3,3,3) -> im2col (27,32), row order (kh, kw, in_c).
    w27 = jnp.transpose(conv_w, (2, 3, 1, 0)).reshape(PATCH, HIDDEN_CONV)
    wc = jnp.tile(w27, (POOLWIN, 1))            # (108,32): same filter per pool offset
    # Block-diagonal (432,128): grouped pooled-row g only feeds lanes [32g, 32g+32).
    w_big = jnp.einsum("pq,kc->pkqc", jnp.eye(GROUP, dtype=wc.dtype), wc)
    w_big = w_big.reshape(GPATCH, LANE).astype(COMPUTE_DTYPE)
    bc = jnp.tile(conv_b, (GROUP,)).reshape(1, LANE).astype(jnp.float32)

    # fc1 (128, 8192) with torch feature index f = c*256 + h*16 + w.
    # Packed features are indexed [s = h_hi*16 + w, lane = g*32 + c], h = 4*h_hi + g.
    w1 = fc1_w.reshape(HIDDEN_FC, HIDDEN_CONV, POOLED, POOLED)          # [k,c,h,w]
    w1 = w1.reshape(HIDDEN_FC, HIDDEN_CONV, POOLED // GROUP, GROUP, POOLED)
    w1 = jnp.transpose(w1, (2, 4, 3, 1, 0))                             # [h_hi,w,g,c,k]
    w1_3d = w1.reshape(SGROUPS, LANE, HIDDEN_FC).astype(COMPUTE_DTYPE)  # (64,128,128)
    b1 = fc1_b.reshape(1, HIDDEN_FC).astype(jnp.float32)

    # fc2 padded to 128 output lanes (extra lanes masked in-kernel, sliced in glue).
    w2_pad = jnp.zeros((HIDDEN_FC, LANE), jnp.float32).at[:, :NUM_CLASSES].set(fc2_w.T)
    b2_pad = jnp.zeros((1, LANE), jnp.float32).at[:, :NUM_CLASSES].set(
        fc2_b.reshape(1, NUM_CLASSES))
    return w_big, bc, w1_3d, b1, w2_pad, b2_pad


# ------------------------------ JAX-side glue -------------------------------

def grouped_pooled_im2col(x_nchw):
    """(B,3,32,32) NCHW -> (64, B, 432), spatial-group major / batch minor.
    Row s = h_hi*16 + w covers pooled positions (h = 4*h_hi + g, w), g in [0,4);
    columns pack (g, pool-offset a, kh, kw, ci)."""
    x = jnp.transpose(x_nchw, (2, 3, 0, 1)).astype(COMPUTE_DTYPE)   # (H, W, B, C)
    xp = jnp.pad(x, ((1, 1), (1, 1), (0, 0), (0, 0)))               # (34, 34, B, 3)
    pieces = []
    for g in range(GROUP):                  # pooled row within the group of 4
        for a in range(POOLWIN):            # 2x2 pooling window offset
            dh, dw = a // 2, a % 2
            for kh in range(KSIZE):
                for kw in range(KSIZE):
                    oh = 2 * g + dh + kh    # row offset inside an 8-row stripe
                    ow = dw + kw
                    sl = xp[oh: oh + 8 * (POOLED // GROUP): 8,
                            ow: ow + 2 * POOLED: 2]                 # (4, 16, B, 3)
                    pieces.append(sl)
    cols = jnp.concatenate(pieces, axis=-1)                         # (4, 16, B, 432)
    B = x_nchw.shape[0]
    return cols.reshape(SGROUPS, B, GPATCH)                         # (64, B, 432)


def _round_up(x, m):
    return -(-x // m) * m


@jax.jit
def small_net2_forward(x, prepared):
    w_big, bc, w1_3d, b1, w2_pad, b2_pad = prepared
    B = x.shape[0]

    # TODO(synk): im2col is still materialized by XLA in HBM; revisit
    # allow_input_fusion / in-kernel patch construction if profiles show it.
    cols = grouped_pooled_im2col(x)                                 # (64, B, 432)

    # Batch tile: >=2 parallel grid steps when B > 8 (v7x megacore), capped for VMEM.
    TB = max(8, min(TB_MAX, _round_up(pl.cdiv(B, 2), 8)))
    B_pad = _round_up(B, TB)
    if B_pad != B:
        cols = jnp.pad(cols, ((0, 0), (0, B_pad - B), (0, 0)))

    csize = jnp.dtype(COMPUTE_DTYPE).itemsize
    cost = pl.CostEstimate(
        flops=(2 * B_pad * SGROUPS * GPATCH * LANE      # conv/pool matmul
               + 2 * B_pad * D_FEAT * HIDDEN_FC         # fc1
               + 2 * B_pad * HIDDEN_FC * LANE),         # fc2
        transcendentals=0,
        bytes_accessed=(SGROUPS * B_pad * GPATCH * csize
                        + GPATCH * LANE * csize
                        + SGROUPS * LANE * HIDDEN_FC * csize
                        + HIDDEN_FC * LANE * 4 + B_pad * LANE * 4))

    out_pad = pl.pallas_call(
        fused_kernel,
        out_shape=jax.ShapeDtypeStruct((B_pad, LANE), jnp.float32),
        grid=(B_pad // TB,),
        in_specs=[
            pl.BlockSpec((SGROUPS, TB, GPATCH), lambda i: (0, i, 0)),
            pl.BlockSpec((GPATCH, LANE), lambda i: (0, 0)),              # resident
            pl.BlockSpec((1, LANE), lambda i: (0, 0)),                   # resident
            pl.BlockSpec((SGROUPS, LANE, HIDDEN_FC), lambda i: (0, 0, 0)),  # resident
            pl.BlockSpec((1, HIDDEN_FC), lambda i: (0, 0)),              # resident
            pl.BlockSpec((HIDDEN_FC, LANE), lambda i: (0, 0)),           # resident
            pl.BlockSpec((1, LANE), lambda i: (0, 0)),                   # resident
        ],
        out_specs=pl.BlockSpec((TB, LANE), lambda i: (i, 0)),
        compiler_params=pltpu.CompilerParams(
            dimension_semantics=("parallel",),
            vmem_limit_bytes=40 * 1024 * 1024),
        cost_estimate=cost,
    )(cols, w_big, bc, w1_3d, b1, w2_pad, b2_pad)                   # (B_pad, 128)

    return out_pad[:B, :NUM_CLASSES]


# ----------------------------- reference & init -----------------------------

def reference_forward(x, raw_params):
    """Pure-JAX (XLA) reference of the PyTorch module, f32 throughout."""
    conv_w, conv_b, fc1_w, fc1_b, fc2_w, fc2_b = raw_params
    y = jax.lax.conv_general_dilated(
        x, conv_w, window_strides=(1, 1), padding="SAME",
        dimension_numbers=("NCHW", "OIHW", "NCHW"))
    y = y + conv_b[None, :, None, None]
    B = x.shape[0]
    y = y.reshape(B, HIDDEN_CONV, POOLED, 2, POOLED, 2).mean(axis=(3, 5))
    y = y * y
    f = y.reshape(B, D_FEAT)
    h = f @ fc1_w.T + fc1_b
    z = h @ fc2_w.T + fc2_b
    out = 1.0 + z + 0.5 * z * z
    return out / jnp.sum(out, axis=1, keepdims=True)


def init_params(key):
    """Deterministic PyTorch-style uniform(-1/sqrt(fan_in), 1/sqrt(fan_in)) init."""
    ks = jax.random.split(key, 6)

    def u(k, shape, fan_in):
        bound = 1.0 / jnp.sqrt(jnp.float32(fan_in))
        return jax.random.uniform(k, shape, jnp.float32, -bound, bound)

    fan_conv = 3 * KSIZE * KSIZE
    fan_fc1 = HIDDEN_CONV * POOLED * POOLED
    conv_w = u(ks[0], (HIDDEN_CONV, 3, KSIZE, KSIZE), fan_conv)
    conv_b = u(ks[1], (HIDDEN_CONV,), fan_conv)
    fc1_w = u(ks[2], (HIDDEN_FC, fan_fc1), fan_fc1)
    fc1_b = u(ks[3], (HIDDEN_FC,), fan_fc1)
    fc2_w = u(ks[4], (NUM_CLASSES, HIDDEN_FC), HIDDEN_FC)
    fc2_b = u(ks[5], (NUM_CLASSES,), HIDDEN_FC)
    return conv_w, conv_b, fc1_w, fc1_b, fc2_w, fc2_b


if __name__ == "__main__":
    key = jax.random.PRNGKey(0)
    pkey, xkey = jax.random.split(key)
    raw_params = init_params(pkey)
    params = prepare_params(raw_params)        # one-time repack, outside the jit

    # NCHW input like PyTorch; 32x32 is forced by the module's .view(-1, C*16*16).
    x = jax.random.normal(xkey, (2, 3, IMG, IMG), jnp.float32)
    out = jax.block_until_ready(small_net2_forward(x, params))
    assert out.shape == (2, NUM_CLASSES)
    ref = reference_forward(x, raw_params)
    assert jnp.allclose(out, ref, atol=2e-2, rtol=5e-2), \
        float(jnp.max(jnp.abs(out - ref)))

    # Second shape: exercises batch padding + a 2-step parallel grid.
    x2 = jax.random.normal(jax.random.PRNGKey(1), (12, 3, IMG, IMG), jnp.float32)
    out2 = jax.block_until_ready(small_net2_forward(x2, params))
    ref2 = reference_forward(x2, raw_params)
    assert out2.shape == (12, NUM_CLASSES)
    assert jnp.allclose(out2, ref2, atol=2e-2, rtol=5e-2), \
        float(jnp.max(jnp.abs(out2 - ref2)))

    print("KERNEL_OK")
</pallas_src>

<mosaic_0001>
module attributes {stable_mosaic.version = 11 : i64} {
  func.func @fused_kernel(%arg0: i32, %arg1: memref<64x8x432xbf16, #tpu.memory_space<vmem>>, %arg2: memref<432x128xbf16, #tpu.memory_space<vmem>>, %arg3: memref<1x128xf32, #tpu.memory_space<vmem>>, %arg4: memref<64x128x128xbf16, #tpu.memory_space<vmem>>, %arg5: memref<1x128xf32, #tpu.memory_space<vmem>>, %arg6: memref<128x128xf32, #tpu.memory_space<vmem>>, %arg7: memref<1x128xf32, #tpu.memory_space<vmem>>, %arg8: memref<8x128xf32, #tpu.memory_space<vmem>>) attributes {dimension_semantics = [#tpu.dimension_semantics<parallel>], iteration_bounds = array<i64: 1>, scalar_prefetch = 0 : i64, scratch_operands = 0 : i64, tpu.core_type = #tpu.core_type<tc>, window_params = [{transform_indices = @transform_0, window_bounds = array<i64: 64, 8, 432>}, {pipeline_mode = #tpu.pipeline_mode<synchronous>, transform_indices = @transform_1, window_bounds = array<i64: 432, 128>}, {pipeline_mode = #tpu.pipeline_mode<synchronous>, transform_indices = @transform_2, window_bounds = array<i64: 1, 128>}, {pipeline_mode = #tpu.pipeline_mode<synchronous>, transform_indices = @transform_3, window_bounds = array<i64: 64, 128, 128>}, {pipeline_mode = #tpu.pipeline_mode<synchronous>, transform_indices = @transform_4, window_bounds = array<i64: 1, 128>}, {pipeline_mode = #tpu.pipeline_mode<synchronous>, transform_indices = @transform_5, window_bounds = array<i64: 128, 128>}, {pipeline_mode = #tpu.pipeline_mode<synchronous>, transform_indices = @transform_6, window_bounds = array<i64: 1, 128>}, {transform_indices = @transform_7, window_bounds = array<i64: 8, 128>}]} {
    %c0 = arith.constant 0 : index
    %c0_0 = arith.constant 0 : index
    %c0_1 = arith.constant 0 : index
    %0 = vector.load %arg1[%c0, %c0_0, %c0_1] : memref<64x8x432xbf16, #tpu.memory_space<vmem>>, vector<64x8x432xbf16>
    %1 = vector.shape_cast %0 : vector<64x8x432xbf16> to vector<512x432xbf16>
    %c0_2 = arith.constant 0 : index
    %c0_3 = arith.constant 0 : index
    %2 = vector.load %arg2[%c0_2, %c0_3] : memref<432x128xbf16, #tpu.memory_space<vmem>>, vector<432x128xbf16>
    %cst = arith.constant dense<0.000000e+00> : vector<512x128xf32>
    %3 = tpu.matmul %1, %2, %cst {dimension_numbers = #tpu.dot_dimension_numbers<[1], [0], [0], [1], [0, 0, 1, 1], [], []>} : vector<512x432xbf16>, vector<432x128xbf16>, vector<512x128xf32> -> vector<512x128xf32>
    %cst_4 = arith.constant 2.500000e-01 : f32
    %4 = vector.broadcast %cst_4 : f32 to vector<512x128xf32>
    %5 = arith.mulf %4, %3 : vector<512x128xf32>
    %c0_5 = arith.constant 0 : index
    %c0_6 = arith.constant 0 : index
    %6 = vector.load %arg3[%c0_5, %c0_6] : memref<1x128xf32, #tpu.memory_space<vmem>>, vector<1x128xf32>
    %7 = vector.broadcast %6 : vector<1x128xf32> to vector<512x128xf32>
    %8 = arith.addf %5, %7 : vector<512x128xf32>
    %9 = arith.mulf %8, %8 : vector<512x128xf32>
    %10 = arith.truncf %9 : vector<512x128xf32> to vector<512x128xbf16>
    %11 = vector.shape_cast %10 : vector<512x128xbf16> to vector<64x8x128xbf16>
    %c0_7 = arith.constant 0 : index
    %c0_8 = arith.constant 0 : index
    %c0_9 = arith.constant 0 : index
    %12 = vector.load %arg4[%c0_7, %c0_8, %c0_9] : memref<64x128x128xbf16, #tpu.memory_space<vmem>>, vector<64x128x128xbf16>
    %cst_10 = arith.constant dense<0.000000e+00> : vector<64x8x128xf32>
    %13 = tpu.matmul %11, %12, %cst_10 {dimension_numbers = #tpu.dot_dimension_numbers<[2], [1], [1], [2], [0, 0, 0, 1, 1, 2], [0], [0]>} : vector<64x8x128xbf16>, vector<64x128x128xbf16>, vector<64x8x128xf32> -> vector<64x8x128xf32>
    %cst_11 = arith.constant dense<0.000000e+00> : vector<8x128xf32>
    %14 = vector.multi_reduction <add>, %13, %cst_11 [0] : vector<64x8x128xf32> to vector<8x128xf32>
    %c0_12 = arith.constant 0 : index
    %c0_13 = arith.constant 0 : index
    %15 = vector.load %arg5[%c0_12, %c0_13] : memref<1x128xf32, #tpu.memory_space<vmem>>, vector<1x128xf32>
    %16 = vector.broadcast %15 : vector<1x128xf32> to vector<8x128xf32>
    %17 = arith.addf %14, %16 : vector<8x128xf32>
    %c0_14 = arith.constant 0 : index
    %c0_15 = arith.constant 0 : index
    %18 = vector.load %arg6[%c0_14, %c0_15] : memref<128x128xf32, #tpu.memory_space<vmem>>, vector<128x128xf32>
    %cst_16 = arith.constant dense<0.000000e+00> : vector<8x128xf32>
    %19 = tpu.matmul %17, %18, %cst_16 {dimension_numbers = #tpu.dot_dimension_numbers<[1], [0], [0], [1], [0, 0, 1, 1], [], []>} : vector<8x128xf32>, vector<128x128xf32>, vector<8x128xf32> -> vector<8x128xf32>
    %c0_17 = arith.constant 0 : index
    %c0_18 = arith.constant 0 : index
    %20 = vector.load %arg7[%c0_17, %c0_18] : memref<1x128xf32, #tpu.memory_space<vmem>>, vector<1x128xf32>
    %21 = vector.broadcast %20 : vector<1x128xf32> to vector<8x128xf32>
    %22 = arith.addf %19, %21 : vector<8x128xf32>
    %cst_19 = arith.constant 1.000000e+00 : f32
    %23 = vector.broadcast %cst_19 : f32 to vector<8x128xf32>
    %24 = arith.addf %23, %22 : vector<8x128xf32>
    %cst_20 = arith.constant 5.000000e-01 : f32
    %25 = vector.broadcast %cst_20 : f32 to vector<8x128xf32>
    %26 = arith.mulf %25, %22 : vector<8x128xf32>
    %27 = arith.mulf %26, %22 : vector<8x128xf32>
    %28 = arith.addf %24, %27 : vector<8x128xf32>
    %29 = tpu.iota {dimensions = array<i32: 1>} : vector<8x128xi32>
    %c10_i32 = arith.constant 10 : i32
    %30 = vector.broadcast %c10_i32 : i32 to vector<8x128xi32>
    %31 = arith.cmpi slt, %29, %30 : vector<8x128xi32>
    %cst_21 = arith.constant 0.000000e+00 : f32
    %32 = vector.broadcast %cst_21 : f32 to vector<8x128xf32>
    %33 = arith.select %31, %28, %32 : vector<8x128xi1>, vector<8x128xf32>
    %cst_22 = arith.constant dense<0.000000e+00> : vector<8xf32>
    %34 = vector.multi_reduction <add>, %33, %cst_22 [1] : vector<8x128xf32> to vector<8xf32>
    %35 = vector.shape_cast %34 : vector<8xf32> to vector<8x1xf32>
    %36 = vector.broadcast %35 : vector<8x1xf32> to vector<8x128xf32>
    %37 = arith.divf %33, %36 : vector<8x128xf32>
    %c0_23 = arith.constant 0 : index
    %c0_24 = arith.constant 0 : index
    %38 = vector.load %arg8[%c0_23, %c0_24] : memref<8x128xf32, #tpu.memory_space<vmem>>, vector<8x128xf32>
    tpu.vector_store %arg8[%c0_23, %c0_24], %37 {strides = array<i32>} : memref<8x128xf32, #tpu.memory_space<vmem>>, vector<8x128xf32>,
    return
  }
  func.func @transform_0(%arg0: i32) -> (i32, i32, i32) {
    %c0_i32 = arith.constant 0 : i32
    %c0_i32_0 = arith.constant 0 : i32
    %c0_i32_1 = arith.constant 0 : i32
    return %c0_i32, %arg0, %c0_i32_0 : i32, i32, i32
  }
  func.func @transform_1(%arg0: i32) -> (i32, i32) {
    %c0_i32 = arith.constant 0 : i32
    %c0_i32_0 = arith.constant 0 : i32
    %c0_i32_1 = arith.constant 0 : i32
    return %c0_i32, %c0_i32_0 : i32, i32
  }
  func.func @transform_2(%arg0: i32) -> (i32, i32) {
    %c0_i32 = arith.constant 0 : i32
    %c0_i32_0 = arith.constant 0 : i32
    %c0_i32_1 = arith.constant 0 : i32
    return %c0_i32, %c0_i32_0 : i32, i32
  }
  func.func @transform_3(%arg0: i32) -> (i32, i32, i32) {
    %c0_i32 = arith.constant 0 : i32
    %c0_i32_0 = arith.constant 0 : i32
    %c0_i32_1 = arith.constant 0 : i32
    %c0_i32_2 = arith.constant 0 : i32
    return %c0_i32, %c0_i32_0, %c0_i32_1 : i32, i32, i32
  }
  func.func @transform_4(%arg0: i32) -> (i32, i32) {
    %c0_i32 = arith.constant 0 : i32
    %c0_i32_0 = arith.constant 0 : i32
    %c0_i32_1 = arith.constant 0 : i32
    return %c0_i32, %c0_i32_0 : i32, i32
  }
  func.func @transform_5(%arg0: i32) -> (i32, i32) {
    %c0_i32 = arith.constant 0 : i32
    %c0_i32_0 = arith.constant 0 : i32
    %c0_i32_1 = arith.constant 0 : i32
    return %c0_i32, %c0_i32_0 : i32, i32
  }
  func.func @transform_6(%arg0: i32) -> (i32, i32) {
    %c0_i32 = arith.constant 0 : i32
    %c0_i32_0 = arith.constant 0 : i32
    %c0_i32_1 = arith.constant 0 : i32
    return %c0_i32, %c0_i32_0 : i32, i32
  }
  func.func @transform_7(%arg0: i32) -> (i32, i32) {
    %c0_i32 = arith.constant 0 : i32
    %c0_i32_0 = arith.constant 0 : i32
    return %arg0, %c0_i32 : i32, i32
  }
}

</mosaic_0001>

<llo_original>
// kernel: small_net2_forward.1
$region0: #{small_net2_forward.1}
  #allocation0 [shape = 'u32[]', space=smem, size = 0x4, offset = 0x4, fixed_abs, tag = 'smem constant byte address 0x4 - core index']
  #allocation1 [shape = 'u32[72,128]{1,0:T(1,128)}', space=vmem, size = 0x9000, scoped, tag = 'internal scratch']
  %s0 = inlined_call_operand.vmem [shape: bf16[64,8,432], index: 0, kind: input, shape index: {}]
  %s1 = inlined_call_operand.vmem [shape: bf16[432,128], index: 1, kind: input, shape index: {}]
  %s2 = inlined_call_operand.vmem [shape: f32[1,128], index: 2, kind: input, shape index: {}]
  %s3 = inlined_call_operand.vmem [shape: bf16[64,128,128], index: 3, kind: input, shape index: {}]
  %s4 = inlined_call_operand.vmem [shape: f32[1,128], index: 4, kind: input, shape index: {}]
  %s5 = inlined_call_operand.vmem [shape: f32[128,128], index: 5, kind: input, shape index: {}]
  %s6 = inlined_call_operand.vmem [shape: f32[1,128], index: 6, kind: input, shape index: {}]
  %s7 = inlined_call_operand.vmem [shape: f32[8,128], index: 7, kind: output, shape index: {}]
  %s8 = sld [smem:[#allocation0]]
  $region38: #{small_net2_forward.1} parent=0
    _
  %s10 = ssub.s32 1, %s8
  %s11 = scalar_select 0, %s10, %s8
  // Predicated region
  $region2: #{small_net2_forward.1} parent=0 // pred_check
    _
  $region3: #{small_net2_forward.1} parent=0 // pred_check_branch
    %13 = sbr.rel (0) target = $region5
  $region4: #{small_net2_forward.1} parent=0 // pred_region
    _
  $region5: #{small_net2_forward.1} parent=0 // pred_fallthru
    _
  // Predicated region
  $region6: #{small_net2_forward.1} parent=0 // pred_check
    _
  $region7: #{small_net2_forward.1} parent=0 // pred_check_branch
    %15 = sbr.rel (0) target = $region9
  $region8: #{small_net2_forward.1} parent=0 // pred_region
    _
  $region9: #{small_net2_forward.1} parent=0 // pred_fallthru
    _
  // Predicated region
  $region10: #{small_net2_forward.1} parent=0 // pred_check
    _
  $region11: #{small_net2_forward.1} parent=0 // pred_check_branch
    %17 = sbr.rel (0) target = $region13
  $region12: #{small_net2_forward.1} parent=0 // pred_region
    _
  $region13: #{small_net2_forward.1} parent=0 // pred_fallthru
    _
  // Predicated region
  $region14: #{small_net2_forward.1} parent=0 // pred_check
    _
  $region15: #{small_net2_forward.1} parent=0 // pred_check_branch
    %19 = sbr.rel (0) target = $region17
  $region16: #{small_net2_forward.1} parent=0 // pred_region
    _
  $region17: #{small_net2_forward.1} parent=0 // pred_fallthru
    _
  // Predicated region
  $region18: #{small_net2_forward.1} parent=0 // pred_check
    _
  $region19: #{small_net2_forward.1} parent=0 // pred_check_branch
    %21 = sbr.rel (0) target = $region21
  $region20: #{small_net2_forward.1} parent=0 // pred_region
    _
  $region21: #{small_net2_forward.1} parent=0 // pred_fallthru
    _
  // Predicated region
  $region22: #{small_net2_forward.1} parent=0 // pred_check
    _
  $region23: #{small_net2_forward.1} parent=0 // pred_check_branch
    %23 = sbr.rel (0) target = $region25
  $region24: #{small_net2_forward.1} parent=0 // pred_region
    _
  $region25: #{small_net2_forward.1} parent=0 // pred_fallthru
    _
  // Predicated region
  $region26: #{small_net2_forward.1} parent=0 // pred_check
    _
  $region27: #{small_net2_forward.1} parent=0 // pred_check_branch
    %25 = sbr.rel (0) target = $region29
  $region28: #{small_net2_forward.1} parent=0 // pred_region
    _
  $region29: #{small_net2_forward.1} parent=0 // pred_fallthru
    _
  %v27 = vld [vmem:[%s0] sm:$0xff]
  %v28 = vld [vmem:[%s0 + $0x8] sm:$0xff]
  %v29 = vld [vmem:[%s0 + $0x10] sm:$0xff]
  %v30 = vld [vmem:[%s0 + $0x18] sm:$0xff]
  %v31 = vld [vmem:[%s0 + $0x20] sm:$0xff]
  %v32 = vld [vmem:[%s0 + $0x28] sm:$0xff]
  %v33 = vld [vmem:[%s0 + $0x30] sm:$0xff]
  %v34 = vld [vmem:[%s0 + $0x38] sm:$0xff]
  %v35 = vld [vmem:[%s0 + $0x40] sm:$0xff]
  %v36 = vld [vmem:[%s0 + $0x48] sm:$0xff]
  %v37 = vld [vmem:[%s0 + $0x50] sm:$0xff]
  %v38 = vld [vmem:[%s0 + $0x58] sm:$0xff]
  %v39 = vld [vmem:[%s0 + $0x60] sm:$0xff]
  %v40 = vld [vmem:[%s0 + $0x68] sm:$0xff]
  %v41 = vld [vmem:[%s0 + $0x70] sm:$0xff]
  %v42 = vld [vmem:[%s0 + $0x78] sm:$0xff]
  %v43 = vld [vmem:[%s0 + $0x80] sm:$0xff]
  %v44 = vld [vmem:[%s0 + $0x88] sm:$0xff]
  %v45 = vld [vmem:[%s0 + $0x90] sm:$0xff]
  %v46 = vld [vmem:[%s0 + $0x98] sm:$0xff]
  %v47 = vld [vmem:[%s0 + $0xa0] sm:$0xff]
  %v48 = vld [vmem:[%s0 + $0xa8] sm:$0xff]
  %v49 = vld [vmem:[%s0 + $0xb0] sm:$0xff]
  %v50 = vld [vmem:[%s0 + $0xb8] sm:$0xff]
  %v51 = vld [vmem:[%s0 + $0xc0] sm:$0xff]
  %v52 = vld [vmem:[%s0 + $0xc8] sm:$0xff]
  %v53 = vld [vmem:[%s0 + $0xd0] sm:$0xff]
  %v54 = vld [vmem:[%s0 + $0xd8] sm:$0xff]
  %v55 = vld [vmem:[%s0 + $0xe0] sm:$0xff]
  %v56 = vld [vmem:[%s0 + $0xe8] sm:$0xff]
  %v57 = vld [vmem:[%s0 + $0xf0] sm:$0xff]
  %v58 = vld [vmem:[%s0 + $0xf8] sm:$0xff]
  %v59 = vld [vmem:[%s0 + $0x100] sm:$0xff]
  %v60 = vld [vmem:[%s0 + $0x108] sm:$0xff]
  %v61 = vld [vmem:[%s0 + $0x110] sm:$0xff]
  %v62 = vld [vmem:[%s0 + $0x118] sm:$0xff]
  %v63 = vld [vmem:[%s0 + $0x120] sm:$0xff]
  %v64 = vld [vmem:[%s0 + $0x128] sm:$0xff]
  %v65 = vld [vmem:[%s0 + $0x130] sm:$0xff]
  %v66 = vld [vmem:[%s0 + $0x138] sm:$0xff]
  %v67 = vld [vmem:[%s0 + $0x140] sm:$0xff]
  %v68 = vld [vmem:[%s0 + $0x148] sm:$0xff]
  %v69 = vld [vmem:[%s0 + $0x150] sm:$0xff]
  %v70 = vld [vmem:[%s0 + $0x158] sm:$0xff]
  %v71 = vld [vmem:[%s0 + $0x160] sm:$0xff]
  %v72 = vld [vmem:[%s0 + $0x168] sm:$0xff]
  %v73 = vld [vmem:[%s0 + $0x170] sm:$0xff]
  %v74 = vld [vmem:[%s0 + $0x178] sm:$0xff]
  %v75 = vld [vmem:[%s0 + $0x180] sm:$0xff]
  %v76 = vld [vmem:[%s0 + $0x188] sm:$0xff]
  %v77 = vld [vmem:[%s0 + $0x190] sm:$0xff]
  %v78 = vld [vmem:[%s0 + $0x198] sm:$0xff]
  %v79 = vld [vmem:[%s0 + $0x1a0] sm:$0xff]
  %v80 = vld [vmem:[%s0 + $0x1a8] sm:$0xff]
  %v81 = vld [vmem:[%s0 + $0x1b0] sm:$0xff]
  %v82 = vld [vmem:[%s0 + $0x1b8] sm:$0xff]
  %v83 = vld [vmem:[%s0 + $0x1c0] sm:$0xff]
  %v84 = vld [vmem:[%s0 + $0x1c8] sm:$0xff]
  %v85 = vld [vmem:[%s0 + $0x1d0] sm:$0xff]
  %v86 = vld [vmem:[%s0 + $0x1d8] sm:$0xff]
  %v87 = vld [vmem:[%s0 + $0x1e0] sm:$0xff]
  %v88 = vld [vmem:[%s0 + $0x1e8] sm:$0xff]
  %v89 = vld [vmem:[%s0 + $0x1f0] sm:$0xff]
  %v90 = vld [vmem:[%s0 + $0x1f8] sm:$0xff]
  %v91 = vld [vmem:[%s0 + $0x200] sm:$0xff]
  %v92 = vld [vmem:[%s0 + $0x208] sm:$0xff]
  %v93 = vld [vmem:[%s0 + $0x210] sm:$0xff]
  %v94 = vld [vmem:[%s0 + $0x218] sm:$0xff]
  %v95 = vld [vmem:[%s0 + $0x220] sm:$0xff]
  %v96 = vld [vmem:[%s0 + $0x228] sm:$0xff]
  %v97 = vld [vmem:[%s0 + $0x230] sm:$0xff]
  %v98 = vld [vmem:[%s0 + $0x238] sm:$0xff]
  %v99 = vld [vmem:[%s0 + $0x240] sm:$0xff]
  %v100 = vld [vmem:[%s0 + $0x248] sm:$0xff]
  %v101 = vld [vmem:[%s0 + $0x250] sm:$0xff]
  %v102 = vld [vmem:[%s0 + $0x258] sm:$0xff]
  %v103 = vld [vmem:[%s0 + $0x260] sm:$0xff]
  %v104 = vld [vmem:[%s0 + $0x268] sm:$0xff]
  %v105 = vld [vmem:[%s0 + $0x270] sm:$0xff]
  %v106 = vld [vmem:[%s0 + $0x278] sm:$0xff]
  %v107 = vld [vmem:[%s0 + $0x280] sm:$0xff]
  %v108 = vld [vmem:[%s0 + $0x288] sm:$0xff]
  %v109 = vld [vmem:[%s0 + $0x290] sm:$0xff]
  %v110 = vld [vmem:[%s0 + $0x298] sm:$0xff]
  %v111 = vld [vmem:[%s0 + $0x2a0] sm:$0xff]
  %v112 = vld [vmem:[%s0 + $0x2a8] sm:$0xff]
  %v113 = vld [vmem:[%s0 + $0x2b0] sm:$0xff]
  %v114 = vld [vmem:[%s0 + $0x2b8] sm:$0xff]
  %v115 = vld [vmem:[%s0 + $0x2c0] sm:$0xff]
  %v116 = vld [vmem:[%s0 + $0x2c8] sm:$0xff]
  %v117 = vld [vmem:[%s0 + $0x2d0] sm:$0xff]
  %v118 = vld [vmem:[%s0 + $0x2d8] sm:$0xff]
  %v119 = vld [vmem:[%s0 + $0x2e0] sm:$0xff]
  %v120 = vld [vmem:[%s0 + $0x2e8] sm:$0xff]
  %v121 = vld [vmem:[%s0 + $0x2f0] sm:$0xff]
  %v122 = vld [vmem:[%s0 + $0x2f8] sm:$0xff]
  %v123 = vld [vmem:[%s0 + $0x300] sm:$0xff]
  %v124 = vld [vmem:[%s0 + $0x308] sm:$0xff]
  %v125 = vld [vmem:[%s0 + $0x310] sm:$0xff]
  %v126 = vld [vmem:[%s0 + $0x318] sm:$0xff]
  %v127 = vld [vmem:[%s0 + $0x320] sm:$0xff]
  %v128 = vld [vmem:[%s0 + $0x328] sm:$0xff]
  %v129 = vld [vmem:[%s0 + $0x330] sm:$0xff]
  %v130 = vld [vmem:[%s0 + $0x338] sm:$0xff]
  %v131 = vld [vmem:[%s0 + $0x340] sm:$0xff]
  %v132 = vld [vmem:[%s0 + $0x348] sm:$0xff]
  %v133 = vld [vmem:[%s0 + $0x350] sm:$0xff]
  %v134 = vld [vmem:[%s0 + $0x358] sm:$0xff]
  %v135 = vld [vmem:[%s0 + $0x360] sm:$0xff]
  %v136 = vld [vmem:[%s0 + $0x368] sm:$0xff]
  %v137 = vld [vmem:[%s0 + $0x370] sm:$0xff]
  %v138 = vld [vmem:[%s0 + $0x378] sm:$0xff]
  %v139 = vld [vmem:[%s0 + $0x380] sm:$0xff]
  %v140 = vld [vmem:[%s0 + $0x388] sm:$0xff]
  %v141 = vld [vmem:[%s0 + $0x390] sm:$0xff]
  %v142 = vld [vmem:[%s0 + $0x398] sm:$0xff]
  %v143 = vld [vmem:[%s0 + $0x3a0] sm:$0xff]
  %v144 = vld [vmem:[%s0 + $0x3a8] sm:$0xff]
  %v145 = vld [vmem:[%s0 + $0x3b0] sm:$0xff]
  %v146 = vld [vmem:[%s0 + $0x3b8] sm:$0xff]
  %v147 = vld [vmem:[%s0 + $0x3c0] sm:$0xff]
  %v148 = vld [vmem:[%s0 + $0x3c8] sm:$0xff]
  %v149 = vld [vmem:[%s0 + $0x3d0] sm:$0xff]
  %v150 = vld [vmem:[%s0 + $0x3d8] sm:$0xff]
  %v151 = vld [vmem:[%s0 + $0x3e0] sm:$0xff]
  %v152 = vld [vmem:[%s0 + $0x3e8] sm:$0xff]
  %v153 = vld [vmem:[%s0 + $0x3f0] sm:$0xff]
  %v154 = vld [vmem:[%s0 + $0x3f8] sm:$0xff]
  %v155 = vld [vmem:[%s1] sm:$0xf]
  %v156 = vld [vmem:[%s1 + $0x4] sm:$0xf]
  %v157 = vld [vmem:[%s1 + $0x8] sm:$0xf]
  %v158 = vld [vmem:[%s1 + $0xc] sm:$0xf]
  %v159 = vld [vmem:[%s1 + $0x10] sm:$0xf]
  %v160 = vld [vmem:[%s1 + $0x14] sm:$0xf]
  %v161 = vld [vmem:[%s1 + $0x18] sm:$0xf]
  %v162 = vld [vmem:[%s1 + $0x1c] sm:$0xf]
  %v163 = vld [vmem:[%s1 + $0x20] sm:$0xf]
  %v164 = vld [vmem:[%s1 + $0x24] sm:$0xf]
  %v165 = vld [vmem:[%s1 + $0x28] sm:$0xf]
  %v166 = vld [vmem:[%s1 + $0x2c] sm:$0xf]
  %v167 = vld [vmem:[%s1 + $0x30] sm:$0xf]
  %v168 = vld [vmem:[%s1 + $0x34] sm:$0xf]
  %v169 = vld [vmem:[%s1 + $0x38] sm:$0xf]
  %v170 = vld [vmem:[%s1 + $0x3c] sm:$0xf]
  %v171 = vld [vmem:[%s1 + $0x40] sm:$0xf]
  %v172 = vld [vmem:[%s1 + $0x44] sm:$0xf]
  %v173 = vld [vmem:[%s1 + $0x48] sm:$0xf]
  %v174 = vld [vmem:[%s1 + $0x4c] sm:$0xf]
  %v175 = vld [vmem:[%s1 + $0x50] sm:$0xf]
  %v176 = vld [vmem:[%s1 + $0x54] sm:$0xf]
  %v177 = vld [vmem:[%s1 + $0x58] sm:$0xf]
  %v178 = vld [vmem:[%s1 + $0x5c] sm:$0xf]
  %v179 = vld [vmem:[%s1 + $0x60] sm:$0xf]
  %v180 = vld [vmem:[%s1 + $0x64] sm:$0xf]
  %v181 = vld [vmem:[%s1 + $0x68] sm:$0xf]
  %v182 = vld [vmem:[%s1 + $0x6c] sm:$0xf]
  %v183 = vld [vmem:[%s1 + $0x70] sm:$0xf]
  %v184 = vld [vmem:[%s1 + $0x74] sm:$0xf]
  %v185 = vld [vmem:[%s1 + $0x78] sm:$0xf]
  %v186 = vld [vmem:[%s1 + $0x7c] sm:$0xf]
  %v187 = vld [vmem:[%s1 + $0x80] sm:$0xf]
  %v188 = vld [vmem:[%s1 + $0x84] sm:$0xf]
  %v189 = vld [vmem:[%s1 + $0x88] sm:$0xf]
  %v190 = vld [vmem:[%s1 + $0x8c] sm:$0xf]
  %v191 = vld [vmem:[%s1 + $0x90] sm:$0xf]
  %v192 = vld [vmem:[%s1 + $0x94] sm:$0xf]
  %v193 = vld [vmem:[%s1 + $0x98] sm:$0xf]
  %v194 = vld [vmem:[%s1 + $0x9c] sm:$0xf]
  %v195 = vld [vmem:[%s1 + $0xa0] sm:$0xf]
  %v196 = vld [vmem:[%s1 + $0xa4] sm:$0xf]
  %v197 = vld [vmem:[%s1 + $0xa8] sm:$0xf]
  %v198 = vld [vmem:[%s1 + $0xac] sm:$0xf]
  %v199 = vld [vmem:[%s1 + $0xb0] sm:$0xf]
  %v200 = vld [vmem:[%s1 + $0xb4] sm:$0xf]
  %v201 = vld [vmem:[%s1 + $0xb8] sm:$0xf]
  %v202 = vld [vmem:[%s1 + $0xbc] sm:$0xf]
  %v203 = vld [vmem:[%s1 + $0xc0] sm:$0xf]
  %v204 = vld [vmem:[%s1 + $0xc4] sm:$0xf]
  %v205 = vld [vmem:[%s1 + $0xc8] sm:$0xf]
  %v206 = vld [vmem:[%s1 + $0xcc] sm:$0xf]
  %v207 = vld [vmem:[%s1 + $0xd0] sm:$0xf]
  %v208 = vld [vmem:[%s1 + $0xd4] sm:$0xf]
  %v337 = vunpack.c.l.b16 %v27
  %v338 = vunpack.c.h.b16 %v27
  %v339 = vunpack.c.l.b16 %v28
  %v340 = vunpack.c.h.b16 %v28
  %v341 = vunpack.c.l.b16 %v29
  %v342 = vunpack.c.h.b16 %v29
  %v343 = vunpack.c.l.b16 %v30
  %v344 = vunpack.c.h.b16 %v30
  %v345 = vunpack.c.l.b16 %v31
  %v346 = vunpack.c.h.b16 %v31
  %v347 = vunpack.c.l.b16 %v32
  %v348 = vunpack.c.h.b16 %v32
  %v349 = vunpack.c.l.b16 %v33
  %v350 = vunpack.c.h.b16 %v33
  %v351 = vunpack.c.l.b16 %v34
  %v352 = vunpack.c.h.b16 %v34
  %v353 = vunpack.c.l.b16 %v35
  %v354 = vunpack.c.h.b16 %v35
  %v355 = vunpack.c.l.b16 %v36
  %v356 = vunpack.c.h.b16 %v36
  %v357 = vunpack.c.l.b16 %v37
  %v358 = vunpack.c.h.b16 %v37
  %v359 = vunpack.c.l.b16 %v38
  %v360 = vunpack.c.h.b16 %v38
  %v361 = vunpack.c.l.b16 %v39
  %v362 = vunpack.c.h.b16 %v39
  %v363 = vunpack.c.l.b16 %v40
  %v364 = vunpack.c.h.b16 %v40
  %v365 = vunpack.c.l.b16 %v41
  %v366 = vunpack.c.h.b16 %v41
  %v367 = vunpack.c.l.b16 %v42
  %v368 = vunpack.c.h.b16 %v42
  %v369 = vunpack.c.l.b16 %v43
  %v370 = vunpack.c.h.b16 %v43
  %v371 = vunpack.c.l.b16 %v44
  %v372 = vunpack.c.h.b16 %v44
  %v373 = vunpack.c.l.b16 %v45
  %v374 = vunpack.c.h.b16 %v45
  %v375 = vunpack.c.l.b16 %v46
  %v376 = vunpack.c.h.b16 %v46
  %v377 = vunpack.c.l.b16 %v47
  %v378 = vunpack.c.h.b16 %v47
  %v379 = vunpack.c.l.b16 %v48
  %v380 = vunpack.c.h.b16 %v48
  %v381 = vunpack.c.l.b16 %v49
  %v382 = vunpack.c.h.b16 %v49
  %v383 = vunpack.c.l.b16 %v50
  %v384 = vunpack.c.h.b16 %v50
  %v385 = vunpack.c.l.b16 %v51
  %v386 = vunpack.c.h.b16 %v51
  %v387 = vunpack.c.l.b16 %v52
  %v388 = vunpack.c.h.b16 %v52
  %v389 = vunpack.c.l.b16 %v53
  %v390 = vunpack.c.h.b16 %v53
  %v391 = vunpack.c.l.b16 %v54
  %v392 = vunpack.c.h.b16 %v54
  %v393 = vunpack.c.l.b16 %v55
  %v394 = vunpack.c.h.b16 %v55
  %v395 = vunpack.c.l.b16 %v56
  %v396 = vunpack.c.h.b16 %v56
  %v397 = vunpack.c.l.b16 %v57
  %v398 = vunpack.c.h.b16 %v57
  %v399 = vunpack.c.l.b16 %v58
  %v400 = vunpack.c.h.b16 %v58
  %v401 = vunpack.c.l.b16 %v59
  %v402 = vunpack.c.h.b16 %v59
  %v403 = vunpack.c.l.b16 %v60
  %v404 = vunpack.c.h.b16 %v60
  %v405 = vunpack.c.l.b16 %v61
  %v406 = vunpack.c.h.b16 %v61
  %v407 = vunpack.c.l.b16 %v62
  %v408 = vunpack.c.h.b16 %v62
  %v409 = vunpack.c.l.b16 %v63
  %v410 = vunpack.c.h.b16 %v63
  %v411 = vunpack.c.l.b16 %v64
  %v412 = vunpack.c.h.b16 %v64
  %v413 = vunpack.c.l.b16 %v65
  %v414 = vunpack.c.h.b16 %v65
  %v415 = vunpack.c.l.b16 %v66
  %v416 = vunpack.c.h.b16 %v66
  %v417 = vunpack.c.l.b16 %v67
  %v418 = vunpack.c.h.b16 %v67
  %v419 = vunpack.c.l.b16 %v68
  %v420 = vunpack.c.h.b16 %v68
  %v421 = vunpack.c.l.b16 %v69
  %v422 = vunpack.c.h.b16 %v69
  %v423 = vunpack.c.l.b16 %v70
  %v424 = vunpack.c.h.b16 %v70
  %v425 = vunpack.c.l.b16 %v71
  %v426 = vunpack.c.h.b16 %v71
  %v427 = vunpack.c.l.b16 %v72
  %v428 = vunpack.c.h.b16 %v72
  %v429 = vunpack.c.l.b16 %v73
  %v430 = vunpack.c.h.b16 %v73
  %v431 = vunpack.c.l.b16 %v74
  %v432 = vunpack.c.h.b16 %v74
  %v433 = vunpack.c.l.b16 %v75
  %v434 = vunpack.c.h.b16 %v75
  %v435 = vunpack.c.l.b16 %v76
  %v436 = vunpack.c.h.b16 %v76
  %v437 = vunpack.c.l.b16 %v77
  %v438 = vunpack.c.h.b16 %v77
  %v439 = vunpack.c.l.b16 %v78
  %v440 = vunpack.c.h.b16 %v78
  %v441 = vunpack.c.l.b16 %v79
  %v442 = vunpack.c.h.b16 %v79
  %v443 = vunpack.c.l.b16 %v80
  %v444 = vunpack.c.h.b16 %v80
  %v445 = vunpack.c.l.b16 %v81
  %v446 = vunpack.c.h.b16 %v81
  %v447 = vunpack.c.l.b16 %v82
  %v448 = vunpack.c.h.b16 %v82
  %v449 = vunpack.c.l.b16 %v83
  %v450 = vunpack.c.h.b16 %v83
  %v451 = vunpack.c.l.b16 %v84
  %v452 = vunpack.c.h.b16 %v84
  %v453 = vunpack.c.l.b16 %v85
  %v454 = vunpack.c.h.b16 %v85
  %v455 = vunpack.c.l.b16 %v86
  %v456 = vunpack.c.h.b16 %v86
  %v457 = vunpack.c.l.b16 %v87
  %v458 = vunpack.c.h.b16 %v87
  %v459 = vunpack.c.l.b16 %v88
  %v460 = vunpack.c.h.b16 %v88
  %v461 = vunpack.c.l.b16 %v89
  %v462 = vunpack.c.h.b16 %v89
  %v463 = vunpack.c.l.b16 %v90
  %v464 = vunpack.c.h.b16 %v90
  %v465 = vunpack.c.l.b16 %v91
  %v466 = vunpack.c.h.b16 %v91
  %v467 = vunpack.c.l.b16 %v92
  %v468 = vunpack.c.h.b16 %v92
  %v469 = vunpack.c.l.b16 %v93
  %v470 = vunpack.c.h.b16 %v93
  %v471 = vunpack.c.l.b16 %v94
  %v472 = vunpack.c.h.b16 %v94
  %v473 = vunpack.c.l.b16 %v95
  %v474 = vunpack.c.h.b16 %v95
  %v475 = vunpack.c.l.b16 %v96
  %v476 = vunpack.c.h.b16 %v96
  %v477 = vunpack.c.l.b16 %v97
  %v478 = vunpack.c.h.b16 %v97
  %v479 = vunpack.c.l.b16 %v98
  %v480 = vunpack.c.h.b16 %v98
  %v481 = vunpack.c.l.b16 %v99
  %v482 = vunpack.c.h.b16 %v99
  %v483 = vunpack.c.l.b16 %v100
  %v484 = vunpack.c.h.b16 %v100
  %v485 = vunpack.c.l.b16 %v101
  %v486 = vunpack.c.h.b16 %v101
  %v487 = vunpack.c.l.b16 %v102
  %v488 = vunpack.c.h.b16 %v102
  %v489 = vunpack.c.l.b16 %v103
  %v490 = vunpack.c.h.b16 %v103
  %v491 = vunpack.c.l.b16 %v104
  %v492 = vunpack.c.h.b16 %v104
  %v493 = vunpack.c.l.b16 %v105
  %v494 = vunpack.c.h.b16 %v105
  %v495 = vunpack.c.l.b16 %v106
  %v496 = vunpack.c.h.b16 %v106
  %v497 = vunpack.c.l.b16 %v107
  %v498 = vunpack.c.h.b16 %v107
  %v499 = vunpack.c.l.b16 %v108
  %v500 = vunpack.c.h.b16 %v108
  %v501 = vunpack.c.l.b16 %v109
  %v502 = vunpack.c.h.b16 %v109
  %v503 = vunpack.c.l.b16 %v110
  %v504 = vunpack.c.h.b16 %v110
  %v505 = vunpack.c.l.b16 %v111
  %v506 = vunpack.c.h.b16 %v111
  %v507 = vunpack.c.l.b16 %v112
  %v508 = vunpack.c.h.b16 %v112
  %v509 = vunpack.c.l.b16 %v113
  %v510 = vunpack.c.h.b16 %v113
  %v511 = vunpack.c.l.b16 %v114
  %v512 = vunpack.c.h.b16 %v114
  %v513 = vunpack.c.l.b16 %v115
  %v514 = vunpack.c.h.b16 %v115
  %v515 = vunpack.c.l.b16 %v116
  %v516 = vunpack.c.h.b16 %v116
  %v517 = vunpack.c.l.b16 %v117
  %v518 = vunpack.c.h.b16 %v117
  %v519 = vunpack.c.l.b16 %v118
  %v520 = vunpack.c.h.b16 %v118
  %v521 = vunpack.c.l.b16 %v119
  %v522 = vunpack.c.h.b16 %v119
  %v523 = vunpack.c.l.b16 %v120
  %v524 = vunpack.c.h.b16 %v120
  %v525 = vunpack.c.l.b16 %v121
  %v526 = vunpack.c.h.b16 %v121
  %v527 = vunpack.c.l.b16 %v122
  %v528 = vunpack.c.h.b16 %v122
  %v529 = vunpack.c.l.b16 %v123
  %v530 = vunpack.c.h.b16 %v123
  %v531 = vunpack.c.l.b16 %v124
  %v532 = vunpack.c.h.b16 %v124
  %v533 = vunpack.c.l.b16 %v125
  %v534 = vunpack.c.h.b16 %v125
  %v535 = vunpack.c.l.b16 %v126
  %v536 = vunpack.c.h.b16 %v126
  %v537 = vunpack.c.l.b16 %v127
  %v538 = vunpack.c.h.b16 %v127
  %v539 = vunpack.c.l.b16 %v128
  %v540 = vunpack.c.h.b16 %v128
  %v541 = vunpack.c.l.b16 %v129
  %v542 = vunpack.c.h.b16 %v129
  %v543 = vunpack.c.l.b16 %v130
  %v544 = vunpack.c.h.b16 %v130
  %v545 = vunpack.c.l.b16 %v131
  %v546 = vunpack.c.h.b16 %v131
  %v547 = vunpack.c.l.b16 %v132
  %v548 = vunpack.c.h.b16 %v132
  %v549 = vunpack.c.l.b16 %v133
  %v550 = vunpack.c.h.b16 %v133
  %v551 = vunpack.c.l.b16 %v134
  %v552 = vunpack.c.h.b16 %v134
  %v553 = vunpack.c.l.b16 %v135
  %v554 = vunpack.c.h.b16 %v135
  %v555 = vunpack.c.l.b16 %v136
  %v556 = vunpack.c.h.b16 %v136
  %v557 = vunpack.c.l.b16 %v137
  %v558 = vunpack.c.h.b16 %v137
  %v559 = vunpack.c.l.b16 %v138
  %v560 = vunpack.c.h.b16 %v138
  %v561 = vunpack.c.l.b16 %v139
  %v562 = vunpack.c.h.b16 %v139
  %v563 = vunpack.c.l.b16 %v140
  %v564 = vunpack.c.h.b16 %v140
  %v565 = vunpack.c.l.b16 %v141
  %v566 = vunpack.c.h.b16 %v141
  %v567 = vunpack.c.l.b16 %v142
  %v568 = vunpack.c.h.b16 %v142
  %v569 = vunpack.c.l.b16 %v143
  %v570 = vunpack.c.h.b16 %v143
  %v571 = vunpack.c.l.b16 %v144
  %v572 = vunpack.c.h.b16 %v144
  %v573 = vunpack.c.l.b16 %v145
  %v574 = vunpack.c.h.b16 %v145
  %v575 = vunpack.c.l.b16 %v146
  %v576 = vunpack.c.h.b16 %v146
  %v577 = vunpack.c.l.b16 %v147
  %v578 = vunpack.c.h.b16 %v147
  %v579 = vunpack.c.l.b16 %v148
  %v580 = vunpack.c.h.b16 %v148
  %v581 = vunpack.c.l.b16 %v149
  %v582 = vunpack.c.h.b16 %v149
  %v583 = vunpack.c.l.b16 %v150
  %v584 = vunpack.c.h.b16 %v150
  %v585 = vunpack.c.l.b16 %v151
  %v586 = vunpack.c.h.b16 %v151
  %v587 = vunpack.c.l.b16 %v152
  %v588 = vunpack.c.h.b16 %v152
  %v589 = vunpack.c.l.b16 %v153
  %v590 = vunpack.c.h.b16 %v153
  %v591 = vunpack.c.l.b16 %v154
  %v592 = vunpack.c.h.b16 %v154
  %v593 = vpack.c.b16 %v341, %v337
  %v594 = vpack.c.b16 %v342, %v338
  %v595 = vpack.c.b16 %v343, %v339
  %v596 = vpack.c.b16 %v344, %v340
  %v597 = vpack.c.b16 %v349, %v345
  %v598 = vpack.c.b16 %v350, %v346
  %v599 = vpack.c.b16 %v351, %v347
  %v600 = vpack.c.b16 %v352, %v348
  %v601 = vpack.c.b16 %v357, %v353
  %v602 = vpack.c.b16 %v358, %v354
  %v603 = vpack.c.b16 %v359, %v355
  %v604 = vpack.c.b16 %v360, %v356
  %v605 = vpack.c.b16 %v365, %v361
  %v606 = vpack.c.b16 %v366, %v362
  %v607 = vpack.c.b16 %v367, %v363
  %v608 = vpack.c.b16 %v368, %v364
  %v609 = vpack.c.b16 %v373, %v369
  %v610 = vpack.c.b16 %v374, %v370
  %v611 = vpack.c.b16 %v375, %v371
  %v612 = vpack.c.b16 %v376, %v372
  %v613 = vpack.c.b16 %v381, %v377
  %v614 = vpack.c.b16 %v382, %v378
  %v615 = vpack.c.b16 %v383, %v379
  %v616 = vpack.c.b16 %v384, %v380
  %v617 = vpack.c.b16 %v389, %v385
  %v618 = vpack.c.b16 %v390, %v386
  %v619 = vpack.c.b16 %v391, %v387
  %v620 = vpack.c.b16 %v392, %v388
  %v621 = vpack.c.b16 %v397, %v393
  %v622 = vpack.c.b16 %v398, %v394
  %v623 = vpack.c.b16 %v399, %v395
  %v624 = vpack.c.b16 %v400, %v396
  %v625 = vpack.c.b16 %v405, %v401
  %v626 = vpack.c.b16 %v406, %v402
  %v627 = vpack.c.b16 %v407, %v403
  %v628 = vpack.c.b16 %v408, %v404
  %v629 = vpack.c.b16 %v413, %v409
  %v630 = vpack.c.b16 %v414, %v410
  %v631 = vpack.c.b16 %v415, %v411
  %v632 = vpack.c.b16 %v416, %v412
  %v633 = vpack.c.b16 %v421, %v417
  %v634 = vpack.c.b16 %v422, %v418
  %v635 = vpack.c.b16 %v423, %v419
  %v636 = vpack.c.b16 %v424, %v420
  %v637 = vpack.c.b16 %v429, %v425
  %v638 = vpack.c.b16 %v430, %v426
  %v639 = vpack.c.b16 %v431, %v427
  %v640 = vpack.c.b16 %v432, %v428
  %v641 = vpack.c.b16 %v437, %v433
  %v642 = vpack.c.b16 %v438, %v434
  %v643 = vpack.c.b16 %v439, %v435
  %v644 = vpack.c.b16 %v440, %v436
  %v645 = vpack.c.b16 %v445, %v441
  %v646 = vpack.c.b16 %v446, %v442
  %v647 = vpack.c.b16 %v447, %v443
  %v648 = vpack.c.b16 %v448, %v444
  %v649 = vpack.c.b16 %v453, %v449
  %v650 = vpack.c.b16 %v454, %v450
  %v651 = vpack.c.b16 %v455, %v451
  %v652 = vpack.c.b16 %v456, %v452
  %v653 = vpack.c.b16 %v461, %v457
  %v654 = vpack.c.b16 %v462, %v458
  %v655 = vpack.c.b16 %v463, %v459
  %v656 = vpack.c.b16 %v464, %v460
  %v657 = vpack.c.b16 %v469, %v465
  %v658 = vpack.c.b16 %v470, %v466
  %v659 = vpack.c.b16 %v471, %v467
  %v660 = vpack.c.b16 %v472, %v468
  %v661 = vpack.c.b16 %v477, %v473
  %v662 = vpack.c.b16 %v478, %v474
  %v663 = vpack.c.b16 %v479, %v475
  %v664 = vpack.c.b16 %v480, %v476
  %v665 = vpack.c.b16 %v485, %v481
  %v666 = vpack.c.b16 %v486, %v482
  %v667 = vpack.c.b16 %v487, %v483
  %v668 = vpack.c.b16 %v488, %v484
  %v669 = vpack.c.b16 %v493, %v489
  %v670 = vpack.c.b16 %v494, %v490
  %v671 = vpack.c.b16 %v495, %v491
  %v672 = vpack.c.b16 %v496, %v492
  %v673 = vpack.c.b16 %v501, %v497
  %v674 = vpack.c.b16 %v502, %v498
  %v675 = vpack.c.b16 %v503, %v499
  %v676 = vpack.c.b16 %v504, %v500
  %v677 = vpack.c.b16 %v509, %v505
  %v678 = vpack.c.b16 %v510, %v506
  %v679 = vpack.c.b16 %v511, %v507
  %v680 = vpack.c.b16 %v512, %v508
  %v681 = vpack.c.b16 %v517, %v513
  %v682 = vpack.c.b16 %v518, %v514
  %v683 = vpack.c.b16 %v519, %v515
  %v684 = vpack.c.b16 %v520, %v516
  %v685 = vpack.c.b16 %v525, %v521
  %v686 = vpack.c.b16 %v526, %v522
  %v687 = vpack.c.b16 %v527, %v523
  %v688 = vpack.c.b16 %v528, %v524
  %v689 = vpack.c.b16 %v533, %v529
  %v690 = vpack.c.b16 %v534, %v530
  %v691 = vpack.c.b16 %v535, %v531
  %v692 = vpack.c.b16 %v536, %v532
  %v693 = vpack.c.b16 %v541, %v537
  %v694 = vpack.c.b16 %v542, %v538
  %v695 = vpack.c.b16 %v543, %v539
  %v696 = vpack.c.b16 %v544, %v540
  %v697 = vpack.c.b16 %v549, %v545
  %v698 = vpack.c.b16 %v550, %v546
  %v699 = vpack.c.b16 %v551, %v547
  %v700 = vpack.c.b16 %v552, %v548
  %v701 = vpack.c.b16 %v557, %v553
  %v702 = vpack.c.b16 %v558, %v554
  %v703 = vpack.c.b16 %v559, %v555
  %v704 = vpack.c.b16 %v560, %v556
  %v705 = vpack.c.b16 %v565, %v561
  %v706 = vpack.c.b16 %v566, %v562
  %v707 = vpack.c.b16 %v567, %v563
  %v708 = vpack.c.b16 %v568, %v564
  %v709 = vpack.c.b16 %v573, %v569
  %v710 = vpack.c.b16 %v574, %v570
  %v711 = vpack.c.b16 %v575, %v571
  %v712 = vpack.c.b16 %v576, %v572
  %v713 = vpack.c.b16 %v581, %v577
  %v714 = vpack.c.b16 %v582, %v578
  %v715 = vpack.c.b16 %v583, %v579
  %v716 = vpack.c.b16 %v584, %v580
  %v717 = vpack.c.b16 %v589, %v585
  %v718 = vpack.c.b16 %v590, %v586
  %v719 = vpack.c.b16 %v591, %v587
  %v720 = vpack.c.b16 %v592, %v588
  %v871 = vunpack.c.l.b16 %v155
  %v872 = vunpack.c.l.b16 %v156
  %v873 = vunpack.c.l.b16 %v157
  %v874 = vunpack.c.l.b16 %v158
  %v875 = vunpack.c.l.b16 %v159
  %v876 = vunpack.c.l.b16 %v160
  %v877 = vunpack.c.l.b16 %v161
  %v878 = vunpack.c.l.b16 %v162
  %v879 = vunpack.c.l.b16 %v163
  %v880 = vunpack.c.l.b16 %v164
  %v881 = vunpack.c.l.b16 %v165
  %v882 = vunpack.c.l.b16 %v166
  %v883 = vunpack.c.l.b16 %v167
  %v884 = vunpack.c.l.b16 %v168
  %v885 = vunpack.c.l.b16 %v169
  %v886 = vunpack.c.l.b16 %v170
  %v887 = vunpack.c.l.b16 %v171
  %v888 = vunpack.c.l.b16 %v172
  %v889 = vunpack.c.l.b16 %v173
  %v890 = vunpack.c.l.b16 %v174
  %v891 = vunpack.c.l.b16 %v175
  %v892 = vunpack.c.l.b16 %v176
  %v893 = vunpack.c.l.b16 %v177
  %v894 = vunpack.c.l.b16 %v178
  %v895 = vunpack.c.l.b16 %v179
  %v896 = vunpack.c.l.b16 %v180
  %v897 = vunpack.c.l.b16 %v181
  %v898 = vunpack.c.l.b16 %v182
  %v899 = vunpack.c.l.b16 %v183
  %v900 = vunpack.c.l.b16 %v184
  %v901 = vunpack.c.l.b16 %v185
  %v902 = vunpack.c.l.b16 %v186
  %v903 = vunpack.c.l.b16 %v187
  %v904 = vunpack.c.l.b16 %v188
  %v905 = vunpack.c.l.b16 %v189
  %v906 = vunpack.c.l.b16 %v190
  %v907 = vunpack.c.l.b16 %v191
  %v908 = vunpack.c.l.b16 %v192
  %v909 = vunpack.c.l.b16 %v193
  %v910 = vunpack.c.l.b16 %v194
  %v911 = vunpack.c.l.b16 %v195
  %v912 = vunpack.c.l.b16 %v196
  %v913 = vunpack.c.l.b16 %v197
  %v914 = vunpack.c.l.b16 %v198
  %v915 = vunpack.c.l.b16 %v199
  %v916 = vunpack.c.l.b16 %v200
  %v917 = vunpack.c.l.b16 %v201
  %v918 = vunpack.c.l.b16 %v202
  %v919 = vunpack.c.l.b16 %v203
  %v920 = vunpack.c.l.b16 %v204
  %v921 = vunpack.c.l.b16 %v205
  %v922 = vunpack.c.l.b16 %v206
  %v923 = vunpack.c.l.b16 %v207
  %v924 = vunpack.c.l.b16 %v208
  %v925 = vpack.c.b16 %v872, %v871
  %v926 = vpack.c.b16 %v874, %v873
  %v927 = vpack.c.b16 %v876, %v875
  %v928 = vpack.c.b16 %v878, %v877
  %v929 = vpack.c.b16 %v880, %v879
  %v930 = vpack.c.b16 %v882, %v881
  %v931 = vpack.c.b16 %v884, %v883
  %v932 = vpack.c.b16 %v886, %v885
  %v933 = vpack.c.b16 %v888, %v887
  %v934 = vpack.c.b16 %v890, %v889
  %v935 = vpack.c.b16 %v892, %v891
  %v936 = vpack.c.b16 %v894, %v893
  %v937 = vpack.c.b16 %v896, %v895
  %v938 = vpack.c.b16 %v898, %v897
  %v939 = vpack.c.b16 %v900, %v899
  %v940 = vpack.c.b16 %v902, %v901
  %v941 = vpack.c.b16 %v904, %v903
  %v942 = vpack.c.b16 %v906, %v905
  %v943 = vpack.c.b16 %v908, %v907
  %v944 = vpack.c.b16 %v910, %v909
  %v945 = vpack.c.b16 %v912, %v911
  %v946 = vpack.c.b16 %v914, %v913
  %v947 = vpack.c.b16 %v916, %v915
  %v948 = vpack.c.b16 %v918, %v917
  %v949 = vpack.c.b16 %v920, %v919
  %v950 = vpack.c.b16 %v922, %v921
  %v951 = vpack.c.b16 %v924, %v923
  %vm979 = vcmask 392192
  %v981 = vsel %vm979, %v596, 0
  %v984 = vsel %vm979, %v600, 0
  %v987 = vsel %vm979, %v604, 0
  %v990 = vsel %vm979, %v608, 0
  %v993 = vsel %vm979, %v612, 0
  %v996 = vsel %vm979, %v616, 0
  %v999 = vsel %vm979, %v620, 0
  %v1002 = vsel %vm979, %v624, 0
  %v1005 = vsel %vm979, %v628, 0
  %v1008 = vsel %vm979, %v632, 0
  %v1011 = vsel %vm979, %v636, 0
  %v1014 = vsel %vm979, %v640, 0
  %v1017 = vsel %vm979, %v644, 0
  %v1020 = vsel %vm979, %v648, 0
  %v1023 = vsel %vm979, %v652, 0
  %v1026 = vsel %vm979, %v656, 0
  %v1029 = vsel %vm979, %v660, 0
  %v1032 = vsel %vm979, %v664, 0
  %v1035 = vsel %vm979, %v668, 0
  %v1038 = vsel %vm979, %v672, 0
  %v1041 = vsel %vm979, %v676, 0
  %v1044 = vsel %vm979, %v680, 0
  %v1047 = vsel %vm979, %v684, 0
  %v1050 = vsel %vm979, %v688, 0
  %v1053 = vsel %vm979, %v692, 0
  %v1056 = vsel %vm979, %v696, 0
  %v1059 = vsel %vm979, %v700, 0
  %v1062 = vsel %vm979, %v704, 0
  %v1065 = vsel %vm979, %v708, 0
  %v1068 = vsel %vm979, %v712, 0
  %v1071 = vsel %vm979, %v716, 0
  %v1074 = vsel %vm979, %v720, 0
  %1076 = vmatpush.bf16.msra.mxu0 %v932
  %1077 = vmatpush.bf16.msra.mxu0 %v931
  %1078 = vmatpush.bf16.msra.mxu0 %v930
  %1079 = vmatpush.bf16.msra.mxu0 %v929
  %1080 = vmatpush.bf16.msra.mxu0 %v928
  %1081 = vmatpush.bf16.msra.mxu0 %v927
  %1082 = vmatpush.bf16.msra.mxu0 %v926
  %1083 = vmatpush.bf16.msra.mxu0 %v925
  %1084 = vmatmul.bf16.gmra.mxu0 %v593
  %v1085 = vpop.f32.mrf.mxu0
  %v1086 = vadd.f32 0.0, %v1085
  %v1087 = vpop.f32.mrf.mxu0
  %v1088 = vadd.f32 0.0, %v1087
  %1089 = vmatmul.bf16.gmra.mxu0 %v597
  %v1090 = vpop.f32.mrf.mxu0
  %v1091 = vadd.f32 0.0, %v1090
  %v1092 = vpop.f32.mrf.mxu0
  %v1093 = vadd.f32 0.0, %v1092
  %1094 = vmatmul.bf16.gmra.mxu0 %v601
  %v1095 = vpop.f32.mrf.mxu0
  %v1096 = vadd.f32 0.0, %v1095
  %v1097 = vpop.f32.mrf.mxu0
  %v1098 = vadd.f32 0.0, %v1097
  %1099 = vmatmul.bf16.gmra.mxu0 %v605
  %v1100 = vpop.f32.mrf.mxu0
  %v1101 = vadd.f32 0.0, %v1100
  %v1102 = vpop.f32.mrf.mxu0
  %v1103 = vadd.f32 0.0, %v1102
  %1104 = vmatmul.bf16.gmra.mxu0 %v609
  %v1105 = vpop.f32.mrf.mxu0
  %v1106 = vadd.f32 0.0, %v1105
  %v1107 = vpop.f32.mrf.mxu0
  %v1108 = vadd.f32 0.0, %v1107
  %1109 = vmatmul.bf16.gmra.mxu0 %v613
  %v1110 = vpop.f32.mrf.mxu0
  %v1111 = vadd.f32 0.0, %v1110
  %v1112 = vpop.f32.mrf.mxu0
  %v1113 = vadd.f32 0.0, %v1112
  %1114 = vmatmul.bf16.gmra.mxu0 %v617
  %v1115 = vpop.f32.mrf.mxu0
  %v1116 = vadd.f32 0.0, %v1115
  %v1117 = vpop.f32.mrf.mxu0
  %v1118 = vadd.f32 0.0, %v1117
  %1119 = vmatmul.bf16.gmra.mxu0 %v621
  %v1120 = vpop.f32.mrf.mxu0
  %v1121 = vadd.f32 0.0, %v1120
  %v1122 = vpop.f32.mrf.mxu0
  %v1123 = vadd.f32 0.0, %v1122
  %1124 = vmatmul.bf16.gmra.mxu0 %v625
  %v1125 = vpop.f32.mrf.mxu0
  %v1126 = vadd.f32 0.0, %v1125
  %v1127 = vpop.f32.mrf.mxu0
  %v1128 = vadd.f32 0.0, %v1127
  %1129 = vmatmul.bf16.gmra.mxu0 %v629
  %v1130 = vpop.f32.mrf.mxu0
  %v1131 = vadd.f32 0.0, %v1130
  %v1132 = vpop.f32.mrf.mxu0
  %v1133 = vadd.f32 0.0, %v1132
  %1134 = vmatmul.bf16.gmra.mxu0 %v633
  %v1135 = vpop.f32.mrf.mxu0
  %v1136 = vadd.f32 0.0, %v1135
  %v1137 = vpop.f32.mrf.mxu0
  %v1138 = vadd.f32 0.0, %v1137
  %1139 = vmatmul.bf16.gmra.mxu0 %v637
  %v1140 = vpop.f32.mrf.mxu0
  %v1141 = vadd.f32 0.0, %v1140
  %v1142 = vpop.f32.mrf.mxu0
  %v1143 = vadd.f32 0.0, %v1142
  %1144 = vmatmul.bf16.gmra.mxu0 %v641
  %v1145 = vpop.f32.mrf.mxu0
  %v1146 = vadd.f32 0.0, %v1145
  %v1147 = vpop.f32.mrf.mxu0
  %v1148 = vadd.f32 0.0, %v1147
  %1149 = vmatmul.bf16.gmra.mxu0 %v645
  %v1150 = vpop.f32.mrf.mxu0
  %v1151 = vadd.f32 0.0, %v1150
  %v1152 = vpop.f32.mrf.mxu0
  %v1153 = vadd.f32 0.0, %v1152
  %1154 = vmatmul.bf16.gmra.mxu0 %v649
  %v1155 = vpop.f32.mrf.mxu0
  %v1156 = vadd.f32 0.0, %v1155
  %v1157 = vpop.f32.mrf.mxu0
  %v1158 = vadd.f32 0.0, %v1157
  %1159 = vmatmul.bf16.gmra.mxu0 %v653
  %v1160 = vpop.f32.mrf.mxu0
  %v1161 = vadd.f32 0.0, %v1160
  %v1162 = vpop.f32.mrf.mxu0
  %v1163 = vadd.f32 0.0, %v1162
  %1164 = vmatmul.bf16.gmra.mxu0 %v657
  %v1165 = vpop.f32.mrf.mxu0
  %v1166 = vadd.f32 0.0, %v1165
  %v1167 = vpop.f32.mrf.mxu0
  %v1168 = vadd.f32 0.0, %v1167
  %1169 = vmatmul.bf16.gmra.mxu0 %v661
  %v1170 = vpop.f32.mrf.mxu0
  %v1171 = vadd.f32 0.0, %v1170
  %v1172 = vpop.f32.mrf.mxu0
  %v1173 = vadd.f32 0.0, %v1172
  %1174 = vmatmul.bf16.gmra.mxu0 %v665
  %v1175 = vpop.f32.mrf.mxu0
  %v1176 = vadd.f32 0.0, %v1175
  %v1177 = vpop.f32.mrf.mxu0
  %v1178 = vadd.f32 0.0, %v1177
  %1179 = vmatmul.bf16.gmra.mxu0 %v669
  %v1180 = vpop.f32.mrf.mxu0
  %v1181 = vadd.f32 0.0, %v1180
  %v1182 = vpop.f32.mrf.mxu0
  %v1183 = vadd.f32 0.0, %v1182
  %1184 = vmatmul.bf16.gmra.mxu0 %v673
  %v1185 = vpop.f32.mrf.mxu0
  %v1186 = vadd.f32 0.0, %v1185
  %v1187 = vpop.f32.mrf.mxu0
  %v1188 = vadd.f32 0.0, %v1187
  %1189 = vmatmul.bf16.gmra.mxu0 %v677
  %v1190 = vpop.f32.mrf.mxu0
  %v1191 = vadd.f32 0.0, %v1190
  %v1192 = vpop.f32.mrf.mxu0
  %v1193 = vadd.f32 0.0, %v1192
  %1194 = vmatmul.bf16.gmra.mxu0 %v681
  %v1195 = vpop.f32.mrf.mxu0
  %v1196 = vadd.f32 0.0, %v1195
  %v1197 = vpop.f32.mrf.mxu0
  %v1198 = vadd.f32 0.0, %v1197
  %1199 = vmatmul.bf16.gmra.mxu0 %v685
  %v1200 = vpop.f32.mrf.mxu0
  %v1201 = vadd.f32 0.0, %v1200
  %v1202 = vpop.f32.mrf.mxu0
  %v1203 = vadd.f32 0.0, %v1202
  %1204 = vmatmul.bf16.gmra.mxu0 %v689
  %v1205 = vpop.f32.mrf.mxu0
  %v1206 = vadd.f32 0.0, %v1205
  %v1207 = vpop.f32.mrf.mxu0
  %v1208 = vadd.f32 0.0, %v1207
  %1209 = vmatmul.bf16.gmra.mxu0 %v693
  %v1210 = vpop.f32.mrf.mxu0
  %v1211 = vadd.f32 0.0, %v1210
  %v1212 = vpop.f32.mrf.mxu0
  %v1213 = vadd.f32 0.0, %v1212
  %1214 = vmatmul.bf16.gmra.mxu0 %v697
  %v1215 = vpop.f32.mrf.mxu0
  %v1216 = vadd.f32 0.0, %v1215
  %v1217 = vpop.f32.mrf.mxu0
  %v1218 = vadd.f32 0.0, %v1217
  %1219 = vmatmul.bf16.gmra.mxu0 %v701
  %v1220 = vpop.f32.mrf.mxu0
  %v1221 = vadd.f32 0.0, %v1220
  %v1222 = vpop.f32.mrf.mxu0
  %v1223 = vadd.f32 0.0, %v1222
  %1224 = vmatmul.bf16.gmra.mxu0 %v705
  %v1225 = vpop.f32.mrf.mxu0
  %v1226 = vadd.f32 0.0, %v1225
  %v1227 = vpop.f32.mrf.mxu0
  %v1228 = vadd.f32 0.0, %v1227
  %1229 = vmatmul.bf16.gmra.mxu0 %v709
  %v1230 = vpop.f32.mrf.mxu0
  %v1231 = vadd.f32 0.0, %v1230
  %v1232 = vpop.f32.mrf.mxu0
  %v1233 = vadd.f32 0.0, %v1232
  %1234 = vmatmul.bf16.gmra.mxu0 %v713
  %v1235 = vpop.f32.mrf.mxu0
  %v1236 = vadd.f32 0.0, %v1235
  %v1237 = vpop.f32.mrf.mxu0
  %v1238 = vadd.f32 0.0, %v1237
  %1239 = vmatmul.bf16.gmra.mxu0 %v717
  %v1240 = vpop.f32.mrf.mxu0
  %v1241 = vadd.f32 0.0, %v1240
  %v1242 = vpop.f32.mrf.mxu0
  %v1243 = vadd.f32 0.0, %v1242
  %1244 = vdwg.mxu0
  %1245 = vmatpush.bf16.msra.mxu0 %v940
  %1246 = vmatpush.bf16.msra.mxu0 %v939
  %1247 = vmatpush.bf16.msra.mxu0 %v938
  %1248 = vmatpush.bf16.msra.mxu0 %v937
  %1249 = vmatpush.bf16.msra.mxu0 %v936
  %1250 = vmatpush.bf16.msra.mxu0 %v935
  %1251 = vmatpush.bf16.msra.mxu0 %v934
  %1252 = vmatpush.bf16.msra.mxu0 %v933
  %1253 = vmatmul.bf16.gmra.mxu0 %v594
  %v1254 = vpop.f32.mrf.mxu0
  %v1255 = vadd.f32 %v1086, %v1254
  %v1256 = vpop.f32.mrf.mxu0
  %v1257 = vadd.f32 %v1088, %v1256
  %1258 = vmatmul.bf16.gmra.mxu0 %v598
  %v1259 = vpop.f32.mrf.mxu0
  %v1260 = vadd.f32 %v1091, %v1259
  %v1261 = vpop.f32.mrf.mxu0
  %v1262 = vadd.f32 %v1093, %v1261
  %1263 = vmatmul.bf16.gmra.mxu0 %v602
  %v1264 = vpop.f32.mrf.mxu0
  %v1265 = vadd.f32 %v1096, %v1264
  %v1266 = vpop.f32.mrf.mxu0
  %v1267 = vadd.f32 %v1098, %v1266
  %1268 = vmatmul.bf16.gmra.mxu0 %v606
  %v1269 = vpop.f32.mrf.mxu0
  %v1270 = vadd.f32 %v1101, %v1269
  %v1271 = vpop.f32.mrf.mxu0
  %v1272 = vadd.f32 %v1103, %v1271
  %1273 = vmatmul.bf16.gmra.mxu0 %v610
  %v1274 = vpop.f32.mrf.mxu0
  %v1275 = vadd.f32 %v1106, %v1274
  %v1276 = vpop.f32.mrf.mxu0
  %v1277 = vadd.f32 %v1108, %v1276
  %1278 = vmatmul.bf16.gmra.mxu0 %v614
  %v1279 = vpop.f32.mrf.mxu0
  %v1280 = vadd.f32 %v1111, %v1279
  %v1281 = vpop.f32.mrf.mxu0
  %v1282 = vadd.f32 %v1113, %v1281
  %1283 = vmatmul.bf16.gmra.mxu0 %v618
  %v1284 = vpop.f32.mrf.mxu0
  %v1285 = vadd.f32 %v1116, %v1284
  %v1286 = vpop.f32.mrf.mxu0
  %v1287 = vadd.f32 %v1118, %v1286
  %1288 = vmatmul.bf16.gmra.mxu0 %v622
  %v1289 = vpop.f32.mrf.mxu0
  %v1290 = vadd.f32 %v1121, %v1289
  %v1291 = vpop.f32.mrf.mxu0
  %v1292 = vadd.f32 %v1123, %v1291
  %1293 = vmatmul.bf16.gmra.mxu0 %v626
  %v1294 = vpop.f32.mrf.mxu0
  %v1295 = vadd.f32 %v1126, %v1294
  %v1296 = vpop.f32.mrf.mxu0
  %v1297 = vadd.f32 %v1128, %v1296
  %1298 = vmatmul.bf16.gmra.mxu0 %v630
  %v1299 = vpop.f32.mrf.mxu0
  %v1300 = vadd.f32 %v1131, %v1299
  %v1301 = vpop.f32.mrf.mxu0
  %v1302 = vadd.f32 %v1133, %v1301
  %1303 = vmatmul.bf16.gmra.mxu0 %v634
  %v1304 = vpop.f32.mrf.mxu0
  %v1305 = vadd.f32 %v1136, %v1304
  %v1306 = vpop.f32.mrf.mxu0
  %v1307 = vadd.f32 %v1138, %v1306
  %1308 = vmatmul.bf16.gmra.mxu0 %v638
  %v1309 = vpop.f32.mrf.mxu0
  %v1310 = vadd.f32 %v1141, %v1309
  %v1311 = vpop.f32.mrf.mxu0
  %v1312 = vadd.f32 %v1143, %v1311
  %1313 = vmatmul.bf16.gmra.mxu0 %v642
  %v1314 = vpop.f32.mrf.mxu0
  %v1315 = vadd.f32 %v1146, %v1314
  %v1316 = vpop.f32.mrf.mxu0
  %v1317 = vadd.f32 %v1148, %v1316
  %1318 = vmatmul.bf16.gmra.mxu0 %v646
  %v1319 = vpop.f32.mrf.mxu0
  %v1320 = vadd.f32 %v1151, %v1319
  %v1321 = vpop.f32.mrf.mxu0
  %v1322 = vadd.f32 %v1153, %v1321
  %1323 = vmatmul.bf16.gmra.mxu0 %v650
  %v1324 = vpop.f32.mrf.mxu0
  %v1325 = vadd.f32 %v1156, %v1324
  %v1326 = vpop.f32.mrf.mxu0
  %v1327 = vadd.f32 %v1158, %v1326
  %1328 = vmatmul.bf16.gmra.mxu0 %v654
  %v1329 = vpop.f32.mrf.mxu0
  %v1330 = vadd.f32 %v1161, %v1329
  %v1331 = vpop.f32.mrf.mxu0
  %v1332 = vadd.f32 %v1163, %v1331
  %1333 = vmatmul.bf16.gmra.mxu0 %v658
  %v1334 = vpop.f32.mrf.mxu0
  %v1335 = vadd.f32 %v1166, %v1334
  %v1336 = vpop.f32.mrf.mxu0
  %v1337 = vadd.f32 %v1168, %v1336
  %1338 = vmatmul.bf16.gmra.mxu0 %v662
  %v1339 = vpop.f32.mrf.mxu0
  %v1340 = vadd.f32 %v1171, %v1339
  %v1341 = vpop.f32.mrf.mxu0
  %v1342 = vadd.f32 %v1173, %v1341
  %1343 = vmatmul.bf16.gmra.mxu0 %v666
  %v1344 = vpop.f32.mrf.mxu0
  %v1345 = vadd.f32 %v1176, %v1344
  %v1346 = vpop.f32.mrf.mxu0
  %v1347 = vadd.f32 %v1178, %v1346
  %1348 = vmatmul.bf16.gmra.mxu0 %v670
  %v1349 = vpop.f32.mrf.mxu0
  %v1350 = vadd.f32 %v1181, %v1349
  %v1351 = vpop.f32.mrf.mxu0
  %v1352 = vadd.f32 %v1183, %v1351
  %1353 = vmatmul.bf16.gmra.mxu0 %v674
  %v1354 = vpop.f32.mrf.mxu0
  %v1355 = vadd.f32 %v1186, %v1354
  %v1356 = vpop.f32.mrf.mxu0
  %v1357 = vadd.f32 %v1188, %v1356
  %1358 = vmatmul.bf16.gmra.mxu0 %v678
  %v1359 = vpop.f32.mrf.mxu0
  %v1360 = vadd.f32 %v1191, %v1359
  %v1361 = vpop.f32.mrf.mxu0
  %v1362 = vadd.f32 %v1193, %v1361
  %1363 = vmatmul.bf16.gmra.mxu0 %v682
  %v1364 = vpop.f32.mrf.mxu0
  %v1365 = vadd.f32 %v1196, %v1364
  %v1366 = vpop.f32.mrf.mxu0
  %v1367 = vadd.f32 %v1198, %v1366
  %1368 = vmatmul.bf16.gmra.mxu0 %v686
  %v1369 = vpop.f32.mrf.mxu0
  %v1370 = vadd.f32 %v1201, %v1369
  %v1371 = vpop.f32.mrf.mxu0
  %v1372 = vadd.f32 %v1203, %v1371
  %1373 = vmatmul.bf16.gmra.mxu0 %v690
  %v1374 = vpop.f32.mrf.mxu0
  %v1375 = vadd.f32 %v1206, %v1374
  %v1376 = vpop.f32.mrf.mxu0
  %v1377 = vadd.f32 %v1208, %v1376
  %1378 = vmatmul.bf16.gmra.mxu0 %v694
  %v1379 = vpop.f32.mrf.mxu0
  %v1380 = vadd.f32 %v1211, %v1379
  %v1381 = vpop.f32.mrf.mxu0
  %v1382 = vadd.f32 %v1213, %v1381
  %1383 = vmatmul.bf16.gmra.mxu0 %v698
  %v1384 = vpop.f32.mrf.mxu0
  %v1385 = vadd.f32 %v1216, %v1384
  %v1386 = vpop.f32.mrf.mxu0
  %v1387 = vadd.f32 %v1218, %v1386
  %1388 = vmatmul.bf16.gmra.mxu0 %v702
  %v1389 = vpop.f32.mrf.mxu0
  %v1390 = vadd.f32 %v1221, %v1389
  %v1391 = vpop.f32.mrf.mxu0
  %v1392 = vadd.f32 %v1223, %v1391
  %1393 = vmatmul.bf16.gmra.mxu0 %v706
  %v1394 = vpop.f32.mrf.mxu0
  %v1395 = vadd.f32 %v1226, %v1394
  %v1396 = vpop.f32.mrf.mxu0
  %v1397 = vadd.f32 %v1228, %v1396
  %1398 = vmatmul.bf16.gmra.mxu0 %v710
  %v1399 = vpop.f32.mrf.mxu0
  %v1400 = vadd.f32 %v1231, %v1399
  %v1401 = vpop.f32.mrf.mxu0
  %v1402 = vadd.f32 %v1233, %v1401
  %1403 = vmatmul.bf16.gmra.mxu0 %v714
  %v1404 = vpop.f32.mrf.mxu0
  %v1405 = vadd.f32 %v1236, %v1404
  %v1406 = vpop.f32.mrf.mxu0
  %v1407 = vadd.f32 %v1238, %v1406
  %1408 = vmatmul.bf16.gmra.mxu0 %v718
  %v1409 = vpop.f32.mrf.mxu0
  %v1410 = vadd.f32 %v1241, %v1409
  %v1411 = vpop.f32.mrf.mxu0
  %v1412 = vadd.f32 %v1243, %v1411
  %1413 = vdwg.mxu0
  %1414 = vmatpush.bf16.msra.mxu0 %v948
  %1415 = vmatpush.bf16.msra.mxu0 %v947
  %1416 = vmatpush.bf16.msra.mxu0 %v946
  %1417 = vmatpush.bf16.msra.mxu0 %v945
  %1418 = vmatpush.bf16.msra.mxu0 %v944
  %1419 = vmatpush.bf16.msra.mxu0 %v943
  %1420 = vmatpush.bf16.msra.mxu0 %v942
  %1421 = vmatpush.bf16.msra.mxu0 %v941
  %1422 = vmatmul.bf16.gmra.mxu0 %v595
  %v1423 = vpop.f32.mrf.mxu0
  %v1424 = vadd.f32 %v1255, %v1423
  %v1425 = vpop.f32.mrf.mxu0
  %v1426 = vadd.f32 %v1257, %v1425
  %1427 = vmatmul.bf16.gmra.mxu0 %v599
  %v1428 = vpop.f32.mrf.mxu0
  %v1429 = vadd.f32 %v1260, %v1428
  %v1430 = vpop.f32.mrf.mxu0
  %v1431 = vadd.f32 %v1262, %v1430
  %1432 = vmatmul.bf16.gmra.mxu0 %v603
  %v1433 = vpop.f32.mrf.mxu0
  %v1434 = vadd.f32 %v1265, %v1433
  %v1435 = vpop.f32.mrf.mxu0
  %v1436 = vadd.f32 %v1267, %v1435
  %1437 = vmatmul.bf16.gmra.mxu0 %v607
  %v1438 = vpop.f32.mrf.mxu0
  %v1439 = vadd.f32 %v1270, %v1438
  %v1440 = vpop.f32.mrf.mxu0
  %v1441 = vadd.f32 %v1272, %v1440
  %1442 = vmatmul.bf16.gmra.mxu0 %v611
  %v1443 = vpop.f32.mrf.mxu0
  %v1444 = vadd.f32 %v1275, %v1443
  %v1445 = vpop.f32.mrf.mxu0
  %v1446 = vadd.f32 %v1277, %v1445
  %1447 = vmatmul.bf16.gmra.mxu0 %v615
  %v1448 = vpop.f32.mrf.mxu0
  %v1449 = vadd.f32 %v1280, %v1448
  %v1450 = vpop.f32.mrf.mxu0
  %v1451 = vadd.f32 %v1282, %v1450
  %1452 = vmatmul.bf16.gmra.mxu0 %v619
  %v1453 = vpop.f32.mrf.mxu0
  %v1454 = vadd.f32 %v1285, %v1453
  %v1455 = vpop.f32.mrf.mxu0
  %v1456 = vadd.f32 %v1287, %v1455
  %1457 = vmatmul.bf16.gmra.mxu0 %v623
  %v1458 = vpop.f32.mrf.mxu0
  %v1459 = vadd.f32 %v1290, %v1458
  %v1460 = vpop.f32.mrf.mxu0
  %v1461 = vadd.f32 %v1292, %v1460
  %1462 = vmatmul.bf16.gmra.mxu0 %v627
  %v1463 = vpop.f32.mrf.mxu0
  %v1464 = vadd.f32 %v1295, %v1463
  %v1465 = vpop.f32.mrf.mxu0
  %v1466 = vadd.f32 %v1297, %v1465
  %1467 = vmatmul.bf16.gmra.mxu0 %v631
  %v1468 = vpop.f32.mrf.mxu0
  %v1469 = vadd.f32 %v1300, %v1468
  %v1470 = vpop.f32.mrf.mxu0
  %v1471 = vadd.f32 %v1302, %v1470
  %1472 = vmatmul.bf16.gmra.mxu0 %v635
  %v1473 = vpop.f32.mrf.mxu0
  %v1474 = vadd.f32 %v1305, %v1473
  %v1475 = vpop.f32.mrf.mxu0
  %v1476 = vadd.f32 %v1307, %v1475
  %1477 = vmatmul.bf16.gmra.mxu0 %v639
  %v1478 = vpop.f32.mrf.mxu0
  %v1479 = vadd.f32 %v1310, %v1478
  %v1480 = vpop.f32.mrf.mxu0
  %v1481 = vadd.f32 %v1312, %v1480
  %1482 = vmatmul.bf16.gmra.mxu0 %v643
  %v1483 = vpop.f32.mrf.mxu0
  %v1484 = vadd.f32 %v1315, %v1483
  %v1485 = vpop.f32.mrf.mxu0
  %v1486 = vadd.f32 %v1317, %v1485
  %1487 = vmatmul.bf16.gmra.mxu0 %v647
  %v1488 = vpop.f32.mrf.mxu0
  %v1489 = vadd.f32 %v1320, %v1488
  %v1490 = vpop.f32.mrf.mxu0
  %v1491 = vadd.f32 %v1322, %v1490
  %1492 = vmatmul.bf16.gmra.mxu0 %v651
  %v1493 = vpop.f32.mrf.mxu0
  %v1494 = vadd.f32 %v1325, %v1493
  %v1495 = vpop.f32.mrf.mxu0
  %v1496 = vadd.f32 %v1327, %v1495
  %1497 = vmatmul.bf16.gmra.mxu0 %v655
  %v1498 = vpop.f32.mrf.mxu0
  %v1499 = vadd.f32 %v1330, %v1498
  %v1500 = vpop.f32.mrf.mxu0
  %v1501 = vadd.f32 %v1332, %v1500
  %1502 = vmatmul.bf16.gmra.mxu0 %v659
  %v1503 = vpop.f32.mrf.mxu0
  %v1504 = vadd.f32 %v1335, %v1503
  %v1505 = vpop.f32.mrf.mxu0
  %v1506 = vadd.f32 %v1337, %v1505
  %1507 = vmatmul.bf16.gmra.mxu0 %v663
  %v1508 = vpop.f32.mrf.mxu0
  %v1509 = vadd.f32 %v1340, %v1508
  %v1510 = vpop.f32.mrf.mxu0
  %v1511 = vadd.f32 %v1342, %v1510
  %1512 = vmatmul.bf16.gmra.mxu0 %v667
  %v1513 = vpop.f32.mrf.mxu0
  %v1514 = vadd.f32 %v1345, %v1513
  %v1515 = vpop.f32.mrf.mxu0
  %v1516 = vadd.f32 %v1347, %v1515
  %1517 = vmatmul.bf16.gmra.mxu0 %v671
  %v1518 = vpop.f32.mrf.mxu0
  %v1519 = vadd.f32 %v1350, %v1518
  %v1520 = vpop.f32.mrf.mxu0
  %v1521 = vadd.f32 %v1352, %v1520
  %1522 = vmatmul.bf16.gmra.mxu0 %v675
  %v1523 = vpop.f32.mrf.mxu0
  %v1524 = vadd.f32 %v1355, %v1523
  %v1525 = vpop.f32.mrf.mxu0
  %v1526 = vadd.f32 %v1357, %v1525
  %1527 = vmatmul.bf16.gmra.mxu0 %v679
  %v1528 = vpop.f32.mrf.mxu0
  %v1529 = vadd.f32 %v1360, %v1528
  %v1530 = vpop.f32.mrf.mxu0
  %v1531 = vadd.f32 %v1362, %v1530
  %1532 = vmatmul.bf16.gmra.mxu0 %v683
  %v1533 = vpop.f32.mrf.mxu0
  %v1534 = vadd.f32 %v1365, %v1533
  %v1535 = vpop.f32.mrf.mxu0
  %v1536 = vadd.f32 %v1367, %v1535
  %1537 = vmatmul.bf16.gmra.mxu0 %v687
  %v1538 = vpop.f32.mrf.mxu0
  %v1539 = vadd.f32 %v1370, %v1538
  %v1540 = vpop.f32.mrf.mxu0
  %v1541 = vadd.f32 %v1372, %v1540
  %1542 = vmatmul.bf16.gmra.mxu0 %v691
  %v1543 = vpop.f32.mrf.mxu0
  %v1544 = vadd.f32 %v1375, %v1543
  %v1545 = vpop.f32.mrf.mxu0
  %v1546 = vadd.f32 %v1377, %v1545
  %1547 = vmatmul.bf16.gmra.mxu0 %v695
  %v1548 = vpop.f32.mrf.mxu0
  %v1549 = vadd.f32 %v1380, %v1548
  %v1550 = vpop.f32.mrf.mxu0
  %v1551 = vadd.f32 %v1382, %v1550
  %1552 = vmatmul.bf16.gmra.mxu0 %v699
  %v1553 = vpop.f32.mrf.mxu0
  %v1554 = vadd.f32 %v1385, %v1553
  %v1555 = vpop.f32.mrf.mxu0
  %v1556 = vadd.f32 %v1387, %v1555
  %1557 = vmatmul.bf16.gmra.mxu0 %v703
  %v1558 = vpop.f32.mrf.mxu0
  %v1559 = vadd.f32 %v1390, %v1558
  %v1560 = vpop.f32.mrf.mxu0
  %v1561 = vadd.f32 %v1392, %v1560
  %1562 = vmatmul.bf16.gmra.mxu0 %v707
  %v1563 = vpop.f32.mrf.mxu0
  %v1564 = vadd.f32 %v1395, %v1563
  %v1565 = vpop.f32.mrf.mxu0
  %v1566 = vadd.f32 %v1397, %v1565
  %1567 = vmatmul.bf16.gmra.mxu0 %v711
  %v1568 = vpop.f32.mrf.mxu0
  %v1569 = vadd.f32 %v1400, %v1568
  %v1570 = vpop.f32.mrf.mxu0
  %v1571 = vadd.f32 %v1402, %v1570
  %1572 = vmatmul.bf16.gmra.mxu0 %v715
  %v1573 = vpop.f32.mrf.mxu0
  %v1574 = vadd.f32 %v1405, %v1573
  %v1575 = vpop.f32.mrf.mxu0
  %v1576 = vadd.f32 %v1407, %v1575
  %1577 = vmatmul.bf16.gmra.mxu0 %v719
  %v1578 = vpop.f32.mrf.mxu0
  %v1579 = vadd.f32 %v1410, %v1578
  %v1580 = vpop.f32.mrf.mxu0
  %v1581 = vadd.f32 %v1412, %v1580
  %1582 = vdwg.mxu0
  %1583 = vmatpush.bf16.msra.mxu0 0
  %1584 = vmatpush.bf16.msra.mxu0 0
  %1585 = vmatpush.bf16.msra.mxu0 0
  %1586 = vmatpush.bf16.msra.mxu0 0
  %1587 = vmatpush.bf16.msra.mxu0 0
  %1588 = vmatpush.bf16.msra.mxu0 %v951
  %1589 = vmatpush.bf16.msra.mxu0 %v950
  %1590 = vmatpush.bf16.msra.mxu0 %v949
  %1591 = vmatmul.bf16.gmra.mxu0 %v981
  %v1592 = vpop.f32.mrf.mxu0
  %v1593 = vadd.f32 %v1424, %v1592
  %v1594 = vpop.f32.mrf.mxu0
  %v1595 = vadd.f32 %v1426, %v1594
  %1596 = vmatmul.bf16.gmra.mxu0 %v984
  %v1597 = vpop.f32.mrf.mxu0
  %v1598 = vadd.f32 %v1429, %v1597
  %v1599 = vpop.f32.mrf.mxu0
  %v1600 = vadd.f32 %v1431, %v1599
  %1601 = vmatmul.bf16.gmra.mxu0 %v987
  %v1602 = vpop.f32.mrf.mxu0
  %v1603 = vadd.f32 %v1434, %v1602
  %v1604 = vpop.f32.mrf.mxu0
  %v1605 = vadd.f32 %v1436, %v1604
  %1606 = vmatmul.bf16.gmra.mxu0 %v990
  %v1607 = vpop.f32.mrf.mxu0
  %v1608 = vadd.f32 %v1439, %v1607
  %v1609 = vpop.f32.mrf.mxu0
  %v1610 = vadd.f32 %v1441, %v1609
  %1611 = vmatmul.bf16.gmra.mxu0 %v993
  %v1612 = vpop.f32.mrf.mxu0
  %v1613 = vadd.f32 %v1444, %v1612
  %v1614 = vpop.f32.mrf.mxu0
  %v1615 = vadd.f32 %v1446, %v1614
  %1616 = vmatmul.bf16.gmra.mxu0 %v996
  %v1617 = vpop.f32.mrf.mxu0
  %v1618 = vadd.f32 %v1449, %v1617
  %v1619 = vpop.f32.mrf.mxu0
  %v1620 = vadd.f32 %v1451, %v1619
  %1621 = vmatmul.bf16.gmra.mxu0 %v999
  %v1622 = vpop.f32.mrf.mxu0
  %v1623 = vadd.f32 %v1454, %v1622
  %v1624 = vpop.f32.mrf.mxu0
  %v1625 = vadd.f32 %v1456, %v1624
  %1626 = vmatmul.bf16.gmra.mxu0 %v1002
  %v1627 = vpop.f32.mrf.mxu0
  %v1628 = vadd.f32 %v1459, %v1627
  %v1629 = vpop.f32.mrf.mxu0
  %v1630 = vadd.f32 %v1461, %v1629
  %1631 = vmatmul.bf16.gmra.mxu0 %v1005
  %v1632 = vpop.f32.mrf.mxu0
  %v1633 = vadd.f32 %v1464, %v1632
  %v1634 = vpop.f32.mrf.mxu0
  %v1635 = vadd.f32 %v1466, %v1634
  %1636 = vmatmul.bf16.gmra.mxu0 %v1008
  %v1637 = vpop.f32.mrf.mxu0
  %v1638 = vadd.f32 %v1469, %v1637
  %v1639 = vpop.f32.mrf.mxu0
  %v1640 = vadd.f32 %v1471, %v1639
  %1641 = vmatmul.bf16.gmra.mxu0 %v1011
  %v1642 = vpop.f32.mrf.mxu0
  %v1643 = vadd.f32 %v1474, %v1642
  %v1644 = vpop.f32.mrf.mxu0
  %v1645 = vadd.f32 %v1476, %v1644
  %1646 = vmatmul.bf16.gmra.mxu0 %v1014
  %v1647 = vpop.f32.mrf.mxu0
  %v1648 = vadd.f32 %v1479, %v1647
  %v1649 = vpop.f32.mrf.mxu0
  %v1650 = vadd.f32 %v1481, %v1649
  %1651 = vmatmul.bf16.gmra.mxu0 %v1017
  %v1652 = vpop.f32.mrf.mxu0
  %v1653 = vadd.f32 %v1484, %v1652
  %v1654 = vpop.f32.mrf.mxu0
  %v1655 = vadd.f32 %v1486, %v1654
  %1656 = vmatmul.bf16.gmra.mxu0 %v1020
  %v1657 = vpop.f32.mrf.mxu0
  %v1658 = vadd.f32 %v1489, %v1657
  %v1659 = vpop.f32.mrf.mxu0
  %v1660 = vadd.f32 %v1491, %v1659
  %1661 = vmatmul.bf16.gmra.mxu0 %v1023
  %v1662 = vpop.f32.mrf.mxu0
  %v1663 = vadd.f32 %v1494, %v1662
  %v1664 = vpop.f32.mrf.mxu0
  %v1665 = vadd.f32 %v1496, %v1664
  %1666 = vmatmul.bf16.gmra.mxu0 %v1026
  %v1667 = vpop.f32.mrf.mxu0
  %v1668 = vadd.f32 %v1499, %v1667
  %v1669 = vpop.f32.mrf.mxu0
  %v1670 = vadd.f32 %v1501, %v1669
  %1671 = vmatmul.bf16.gmra.mxu0 %v1029
  %v1672 = vpop.f32.mrf.mxu0
  %v1673 = vadd.f32 %v1504, %v1672
  %v1674 = vpop.f32.mrf.mxu0
  %v1675 = vadd.f32 %v1506, %v1674
  %1676 = vmatmul.bf16.gmra.mxu0 %v1032
  %v1677 = vpop.f32.mrf.mxu0
  %v1678 = vadd.f32 %v1509, %v1677
  %v1679 = vpop.f32.mrf.mxu0
  %v1680 = vadd.f32 %v1511, %v1679
  %1681 = vmatmul.bf16.gmra.mxu0 %v1035
  %v1682 = vpop.f32.mrf.mxu0
  %v1683 = vadd.f32 %v1514, %v1682
  %v1684 = vpop.f32.mrf.mxu0
  %v1685 = vadd.f32 %v1516, %v1684
  %1686 = vmatmul.bf16.gmra.mxu0 %v1038
  %v1687 = vpop.f32.mrf.mxu0
  %v1688 = vadd.f32 %v1519, %v1687
  %v1689 = vpop.f32.mrf.mxu0
  %v1690 = vadd.f32 %v1521, %v1689
  %1691 = vmatmul.bf16.gmra.mxu0 %v1041
  %v1692 = vpop.f32.mrf.mxu0
  %v1693 = vadd.f32 %v1524, %v1692
  %v1694 = vpop.f32.mrf.mxu0
  %v1695 = vadd.f32 %v1526, %v1694
  %1696 = vmatmul.bf16.gmra.mxu0 %v1044
  %v1697 = vpop.f32.mrf.mxu0
  %v1698 = vadd.f32 %v1529, %v1697
  %v1699 = vpop.f32.mrf.mxu0
  %v1700 = vadd.f32 %v1531, %v1699
  %1701 = vmatmul.bf16.gmra.mxu0 %v1047
  %v1702 = vpop.f32.mrf.mxu0
  %v1703 = vadd.f32 %v1534, %v1702
  %v1704 = vpop.f32.mrf.mxu0
  %v1705 = vadd.f32 %v1536, %v1704
  %1706 = vmatmul.bf16.gmra.mxu0 %v1050
  %v1707 = vpop.f32.mrf.mxu0
  %v1708 = vadd.f32 %v1539, %v1707
  %v1709 = vpop.f32.mrf.mxu0
  %v1710 = vadd.f32 %v1541, %v1709
  %1711 = vmatmul.bf16.gmra.mxu0 %v1053
  %v1712 = vpop.f32.mrf.mxu0
  %v1713 = vadd.f32 %v1544, %v1712
  %v1714 = vpop.f32.mrf.mxu0
  %v1715 = vadd.f32 %v1546, %v1714
  %1716 = vmatmul.bf16.gmra.mxu0 %v1056
  %v1717 = vpop.f32.mrf.mxu0
  %v1718 = vadd.f32 %v1549, %v1717
  %v1719 = vpop.f32.mrf.mxu0
  %v1720 = vadd.f32 %v1551, %v1719
  %1721 = vmatmul.bf16.gmra.mxu0 %v1059
  %v1722 = vpop.f32.mrf.mxu0
  %v1723 = vadd.f32 %v1554, %v1722
  %v1724 = vpop.f32.mrf.mxu0
  %v1725 = vadd.f32 %v1556, %v1724
  %1726 = vmatmul.bf16.gmra.mxu0 %v1062
  %v1727 = vpop.f32.mrf.mxu0
  %v1728 = vadd.f32 %v1559, %v1727
  %v1729 = vpop.f32.mrf.mxu0
  %v1730 = vadd.f32 %v1561, %v1729
  %1731 = vmatmul.bf16.gmra.mxu0 %v1065
  %v1732 = vpop.f32.mrf.mxu0
  %v1733 = vadd.f32 %v1564, %v1732
  %v1734 = vpop.f32.mrf.mxu0
  %v1735 = vadd.f32 %v1566, %v1734
  %1736 = vmatmul.bf16.gmra.mxu0 %v1068
  %v1737 = vpop.f32.mrf.mxu0
  %v1738 = vadd.f32 %v1569, %v1737
  %v1739 = vpop.f32.mrf.mxu0
  %v1740 = vadd.f32 %v1571, %v1739
  %1741 = vmatmul.bf16.gmra.mxu0 %v1071
  %v1742 = vpop.f32.mrf.mxu0
  %v1743 = vadd.f32 %v1574, %v1742
  %v1744 = vpop.f32.mrf.mxu0
  %v1745 = vadd.f32 %v1576, %v1744
  %1746 = vmatmul.bf16.gmra.mxu0 %v1074
  %v1747 = vpop.f32.mrf.mxu0
  %v1748 = vadd.f32 %v1579, %v1747
  %v1749 = vpop.f32.mrf.mxu0
  %v1750 = vadd.f32 %v1581, %v1749
  %1751 = vdwg.mxu0
  %v1752 = vmul.f32 %v1593, 0.25
  %v1753 = vmul.f32 %v1595, 0.25
  %v1754 = vmul.f32 %v1598, 0.25
  %v1755 = vmul.f32 %v1600, 0.25
  %v1756 = vmul.f32 %v1603, 0.25
  %v1757 = vmul.f32 %v1605, 0.25
  %v1758 = vmul.f32 %v1608, 0.25
  %v1759 = vmul.f32 %v1610, 0.25
  %v1760 = vmul.f32 %v1613, 0.25
  %v1761 = vmul.f32 %v1615, 0.25
  %v1762 = vmul.f32 %v1618, 0.25
  %v1763 = vmul.f32 %v1620, 0.25
  %v1764 = vmul.f32 %v1623, 0.25
  %v1765 = vmul.f32 %v1625, 0.25
  %v1766 = vmul.f32 %v1628, 0.25
  %v1767 = vmul.f32 %v1630, 0.25
  %v1768 = vmul.f32 %v1633, 0.25
  %v1769 = vmul.f32 %v1635, 0.25
  %v1770 = vmul.f32 %v1638, 0.25
  %v1771 = vmul.f32 %v1640, 0.25
  %v1772 = vmul.f32 %v1643, 0.25
  %v1773 = vmul.f32 %v1645, 0.25
  %v1774 = vmul.f32 %v1648, 0.25
  %v1775 = vmul.f32 %v1650, 0.25
  %v1776 = vmul.f32 %v1653, 0.25
  %v1777 = vmul.f32 %v1655, 0.25
  %v1778 = vmul.f32 %v1658, 0.25
  %v1779 = vmul.f32 %v1660, 0.25
  %v1780 = vmul.f32 %v1663, 0.25
  %v1781 = vmul.f32 %v1665, 0.25
  %v1782 = vmul.f32 %v1668, 0.25
  %v1783 = vmul.f32 %v1670, 0.25
  %v1784 = vmul.f32 %v1673, 0.25
  %v1785 = vmul.f32 %v1675, 0.25
  %v1786 = vmul.f32 %v1678, 0.25
  %v1787 = vmul.f32 %v1680, 0.25
  %v1788 = vmul.f32 %v1683, 0.25
  %v1789 = vmul.f32 %v1685, 0.25
  %v1790 = vmul.f32 %v1688, 0.25
  %v1791 = vmul.f32 %v1690, 0.25
  %v1792 = vmul.f32 %v1693, 0.25
  %v1793 = vmul.f32 %v1695, 0.25
  %v1794 = vmul.f32 %v1698, 0.25
  %v1795 = vmul.f32 %v1700, 0.25
  %v1796 = vmul.f32 %v1703, 0.25
  %v1797 = vmul.f32 %v1705, 0.25
  %v1798 = vmul.f32 %v1708, 0.25
  %v1799 = vmul.f32 %v1710, 0.25
  %v1800 = vmul.f32 %v1713, 0.25
  %v1801 = vmul.f32 %v1715, 0.25
  %v1802 = vmul.f32 %v1718, 0.25
  %v1803 = vmul.f32 %v1720, 0.25
  %v1804 = vmul.f32 %v1723, 0.25
  %v1805 = vmul.f32 %v1725, 0.25
  %v1806 = vmul.f32 %v1728, 0.25
  %v1807 = vmul.f32 %v1730, 0.25
  %v1808 = vmul.f32 %v1733, 0.25
  %v1809 = vmul.f32 %v1735, 0.25
  %v1810 = vmul.f32 %v1738, 0.25
  %v1811 = vmul.f32 %v1740, 0.25
  %v1812 = vmul.f32 %v1743, 0.25
  %v1813 = vmul.f32 %v1745, 0.25
  %v1814 = vmul.f32 %v1748, 0.25
  %v1815 = vmul.f32 %v1750, 0.25
  %v1816 = vld [vmem:[%s2] sm:$0x1]
  %v1818 = vperm.slane %v1816, 0
  %v1820 = vadd.f32 %v1752, %v1818
  %v1821 = vadd.f32 %v1753, %v1818
  %v1822 = vadd.f32 %v1754, %v1818
  %v1823 = vadd.f32 %v1755, %v1818
  %v1824 = vadd.f32 %v1756, %v1818
  %v1825 = vadd.f32 %v1757, %v1818
  %v1826 = vadd.f32 %v1758, %v1818
  %v1827 = vadd.f32 %v1759, %v1818
  %v1828 = vadd.f32 %v1760, %v1818
  %v1829 = vadd.f32 %v1761, %v1818
  %v1830 = vadd.f32 %v1762, %v1818
  %v1831 = vadd.f32 %v1763, %v1818
  %v1832 = vadd.f32 %v1764, %v1818
  %v1833 = vadd.f32 %v1765, %v1818
  %v1834 = vadd.f32 %v1766, %v1818
  %v1835 = vadd.f32 %v1767, %v1818
  %v1836 = vadd.f32 %v1768, %v1818
  %v1837 = vadd.f32 %v1769, %v1818
  %v1838 = vadd.f32 %v1770, %v1818
  %v1839 = vadd.f32 %v1771, %v1818
  %v1840 = vadd.f32 %v1772, %v1818
  %v1841 = vadd.f32 %v1773, %v1818
  %v1842 = vadd.f32 %v1774, %v1818
  %v1843 = vadd.f32 %v1775, %v1818
  %v1844 = vadd.f32 %v1776, %v1818
  %v1845 = vadd.f32 %v1777, %v1818
  %v1846 = vadd.f32 %v1778, %v1818
  %v1847 = vadd.f32 %v1779, %v1818
  %v1848 = vadd.f32 %v1780, %v1818
  %v1849 = vadd.f32 %v1781, %v1818
  %v1850 = vadd.f32 %v1782, %v1818
  %v1851 = vadd.f32 %v1783, %v1818
  %v1852 = vadd.f32 %v1784, %v1818
  %v1853 = vadd.f32 %v1785, %v1818
  %v1854 = vadd.f32 %v1786, %v1818
  %v1855 = vadd.f32 %v1787, %v1818
  %v1856 = vadd.f32 %v1788, %v1818
  %v1857 = vadd.f32 %v1789, %v1818
  %v1858 = vadd.f32 %v1790, %v1818
  %v1859 = vadd.f32 %v1791, %v1818
  %v1860 = vadd.f32 %v1792, %v1818
  %v1861 = vadd.f32 %v1793, %v1818
  %v1862 = vadd.f32 %v1794, %v1818
  %v1863 = vadd.f32 %v1795, %v1818
  %v1864 = vadd.f32 %v1796, %v1818
  %v1865 = vadd.f32 %v1797, %v1818
  %v1866 = vadd.f32 %v1798, %v1818
  %v1867 = vadd.f32 %v1799, %v1818
  %v1868 = vadd.f32 %v1800, %v1818
  %v1869 = vadd.f32 %v1801, %v1818
  %v1870 = vadd.f32 %v1802, %v1818
  %v1871 = vadd.f32 %v1803, %v1818
  %v1872 = vadd.f32 %v1804, %v1818
  %v1873 = vadd.f32 %v1805, %v1818
  %v1874 = vadd.f32 %v1806, %v1818
  %v1875 = vadd.f32 %v1807, %v1818
  %v1876 = vadd.f32 %v1808, %v1818
  %v1877 = vadd.f32 %v1809, %v1818
  %v1878 = vadd.f32 %v1810, %v1818
  %v1879 = vadd.f32 %v1811, %v1818
  %v1880 = vadd.f32 %v1812, %v1818
  %v1881 = vadd.f32 %v1813, %v1818
  %v1882 = vadd.f32 %v1814, %v1818
  %v1883 = vadd.f32 %v1815, %v1818
  %v1884 = vmul.f32 %v1820, %v1820
  %v1885 = vmul.f32 %v1821, %v1821
  %v1886 = vmul.f32 %v1822, %v1822
  %v1887 = vmul.f32 %v1823, %v1823
  %v1888 = vmul.f32 %v1824, %v1824
  %v1889 = vmul.f32 %v1825, %v1825
  %v1890 = vmul.f32 %v1826, %v1826
  %v1891 = vmul.f32 %v1827, %v1827
  %v1892 = vmul.f32 %v1828, %v1828
  %v1893 = vmul.f32 %v1829, %v1829
  %v1894 = vmul.f32 %v1830, %v1830
  %v1895 = vmul.f32 %v1831, %v1831
  %v1896 = vmul.f32 %v1832, %v1832
  %v1897 = vmul.f32 %v1833, %v1833
  %v1898 = vmul.f32 %v1834, %v1834
  %v1899 = vmul.f32 %v1835, %v1835
  %v1900 = vmul.f32 %v1836, %v1836
  %v1901 = vmul.f32 %v1837, %v1837
  %v1902 = vmul.f32 %v1838, %v1838
  %v1903 = vmul.f32 %v1839, %v1839
  %v1904 = vmul.f32 %v1840, %v1840
  %v1905 = vmul.f32 %v1841, %v1841
  %v1906 = vmul.f32 %v1842, %v1842
  %v1907 = vmul.f32 %v1843, %v1843
  %v1908 = vmul.f32 %v1844, %v1844
  %v1909 = vmul.f32 %v1845, %v1845
  %v1910 = vmul.f32 %v1846, %v1846
  %v1911 = vmul.f32 %v1847, %v1847
  %v1912 = vmul.f32 %v1848, %v1848
  %v1913 = vmul.f32 %v1849, %v1849
  %v1914 = vmul.f32 %v1850, %v1850
  %v1915 = vmul.f32 %v1851, %v1851
  %v1916 = vmul.f32 %v1852, %v1852
  %v1917 = vmul.f32 %v1853, %v1853
  %v1918 = vmul.f32 %v1854, %v1854
  %v1919 = vmul.f32 %v1855, %v1855
  %v1920 = vmul.f32 %v1856, %v1856
  %v1921 = vmul.f32 %v1857, %v1857
  %v1922 = vmul.f32 %v1858, %v1858
  %v1923 = vmul.f32 %v1859, %v1859
  %v1924 = vmul.f32 %v1860, %v1860
  %v1925 = vmul.f32 %v1861, %v1861
  %v1926 = vmul.f32 %v1862, %v1862
  %v1927 = vmul.f32 %v1863, %v1863
  %v1928 = vmul.f32 %v1864, %v1864
  %v1929 = vmul.f32 %v1865, %v1865
  %v1930 = vmul.f32 %v1866, %v1866
  %v1931 = vmul.f32 %v1867, %v1867
  %v1932 = vmul.f32 %v1868, %v1868
  %v1933 = vmul.f32 %v1869, %v1869
  %v1934 = vmul.f32 %v1870, %v1870
  %v1935 = vmul.f32 %v1871, %v1871
  %v1936 = vmul.f32 %v1872, %v1872
  %v1937 = vmul.f32 %v1873, %v1873
  %v1938 = vmul.f32 %v1874, %v1874
  %v1939 = vmul.f32 %v1875, %v1875
  %v1940 = vmul.f32 %v1876, %v1876
  %v1941 = vmul.f32 %v1877, %v1877
  %v1942 = vmul.f32 %v1878, %v1878
  %v1943 = vmul.f32 %v1879, %v1879
  %v1944 = vmul.f32 %v1880, %v1880
  %v1945 = vmul.f32 %v1881, %v1881
  %v1946 = vmul.f32 %v1882, %v1882
  %v1947 = vmul.f32 %v1883, %v1883
  %v1948 = vpack.c.bf16 %v1884, %v1884
  %v1949 = vpack.c.bf16 %v1885, %v1885
  %v1950 = vpack.c.bf16 %v1886, %v1886
  %v1951 = vpack.c.bf16 %v1887, %v1887
  %v1952 = vpack.c.bf16 %v1888, %v1888
  %v1953 = vpack.c.bf16 %v1889, %v1889
  %v1954 = vpack.c.bf16 %v1890, %v1890
  %v1955 = vpack.c.bf16 %v1891, %v1891
  %v1956 = vpack.c.bf16 %v1892, %v1892
  %v1957 = vpack.c.bf16 %v1893, %v1893
  %v1958 = vpack.c.bf16 %v1894, %v1894
  %v1959 = vpack.c.bf16 %v1895, %v1895
  %v1960 = vpack.c.bf16 %v1896, %v1896
  %v1961 = vpack.c.bf16 %v1897, %v1897
  %v1962 = vpack.c.bf16 %v1898, %v1898
  %v1963 = vpack.c.bf16 %v1899, %v1899
  %v1964 = vpack.c.bf16 %v1900, %v1900
  %v1965 = vpack.c.bf16 %v1901, %v1901
  %v1966 = vpack.c.bf16 %v1902, %v1902
  %v1967 = vpack.c.bf16 %v1903, %v1903
  %v1968 = vpack.c.bf16 %v1904, %v1904
  %v1969 = vpack.c.bf16 %v1905, %v1905
  %v1970 = vpack.c.bf16 %v1906, %v1906
  %v1971 = vpack.c.bf16 %v1907, %v1907
  %v1972 = vpack.c.bf16 %v1908, %v1908
  %v1973 = vpack.c.bf16 %v1909, %v1909
  %v1974 = vpack.c.bf16 %v1910, %v1910
  %v1975 = vpack.c.bf16 %v1911, %v1911
  %v1976 = vpack.c.bf16 %v1912, %v1912
  %v1977 = vpack.c.bf16 %v1913, %v1913
  %v1978 = vpack.c.bf16 %v1914, %v1914
  %v1979 = vpack.c.bf16 %v1915, %v1915
  %v1980 = vpack.c.bf16 %v1916, %v1916
  %v1981 = vpack.c.bf16 %v1917, %v1917
  %v1982 = vpack.c.bf16 %v1918, %v1918
  %v1983 = vpack.c.bf16 %v1919, %v1919
  %v1984 = vpack.c.bf16 %v1920, %v1920
  %v1985 = vpack.c.bf16 %v1921, %v1921
  %v1986 = vpack.c.bf16 %v1922, %v1922
  %v1987 = vpack.c.bf16 %v1923, %v1923
  %v1988 = vpack.c.bf16 %v1924, %v1924
  %v1989 = vpack.c.bf16 %v1925, %v1925
  %v1990 = vpack.c.bf16 %v1926, %v1926
  %v1991 = vpack.c.bf16 %v1927, %v1927
  %v1992 = vpack.c.bf16 %v1928, %v1928
  %v1993 = vpack.c.bf16 %v1929, %v1929
  %v1994 = vpack.c.bf16 %v1930, %v1930
  %v1995 = vpack.c.bf16 %v1931, %v1931
  %v1996 = vpack.c.bf16 %v1932, %v1932
  %v1997 = vpack.c.bf16 %v1933, %v1933
  %v1998 = vpack.c.bf16 %v1934, %v1934
  %v1999 = vpack.c.bf16 %v1935, %v1935
  %v2000 = vpack.c.bf16 %v1936, %v1936
  %v2001 = vpack.c.bf16 %v1937, %v1937
  %v2002 = vpack.c.bf16 %v1938, %v1938
  %v2003 = vpack.c.bf16 %v1939, %v1939
  %v2004 = vpack.c.bf16 %v1940, %v1940
  %v2005 = vpack.c.bf16 %v1941, %v1941
  %v2006 = vpack.c.bf16 %v1942, %v1942
  %v2007 = vpack.c.bf16 %v1943, %v1943
  %v2008 = vpack.c.bf16 %v1944, %v1944
  %v2009 = vpack.c.bf16 %v1945, %v1945
  %v2010 = vpack.c.bf16 %v1946, %v1946
  %v2011 = vpack.c.bf16 %v1947, %v1947
  %v2012 = vld [vmem:[%s3] sm:$0xf]
  %v2013 = vld [vmem:[%s3 + $0x4] sm:$0xf]
  %v2014 = vld [vmem:[%s3 + $0x8] sm:$0xf]
  %v2015 = vld [vmem:[%s3 + $0xc] sm:$0xf]
  %v2016 = vld [vmem:[%s3 + $0x10] sm:$0xf]
  %v2017 = vld [vmem:[%s3 + $0x14] sm:$0xf]
  %v2018 = vld [vmem:[%s3 + $0x18] sm:$0xf]
  %v2019 = vld [vmem:[%s3 + $0x1c] sm:$0xf]
  %v2020 = vld [vmem:[%s3 + $0x20] sm:$0xf]
  %v2021 = vld [vmem:[%s3 + $0x24] sm:$0xf]
  %v2022 = vld [vmem:[%s3 + $0x28] sm:$0xf]
  %v2023 = vld [vmem:[%s3 + $0x2c] sm:$0xf]
  %v2024 = vld [vmem:[%s3 + $0x30] sm:$0xf]
  %v2025 = vld [vmem:[%s3 + $0x34] sm:$0xf]
  %v2026 = vld [vmem:[%s3 + $0x38] sm:$0xf]
  %v2027 = vld [vmem:[%s3 + $0x3c] sm:$0xf]
  %v2028 = vld [vmem:[%s3 + $0x40] sm:$0xf]
  %v2029 = vld [vmem:[%s3 + $0x44] sm:$0xf]
  %v2030 = vld [vmem:[%s3 + $0x48] sm:$0xf]
  %v2031 = vld [vmem:[%s3 + $0x4c] sm:$0xf]
  %v2032 = vld [vmem:[%s3 + $0x50] sm:$0xf]
  %v2033 = vld [vmem:[%s3 + $0x54] sm:$0xf]
  %v2034 = vld [vmem:[%s3 + $0x58] sm:$0xf]
  %v2035 = vld [vmem:[%s3 + $0x5c] sm:$0xf]
  %v2036 = vld [vmem:[%s3 + $0x60] sm:$0xf]
  %v2037 = vld [vmem:[%s3 + $0x64] sm:$0xf]
  %v2038 = vld [vmem:[%s3 + $0x68] sm:$0xf]
  %v2039 = vld [vmem:[%s3 + $0x6c] sm:$0xf]
  %v2040 = vld [vmem:[%s3 + $0x70] sm:$0xf]
  %v2041 = vld [vmem:[%s3 + $0x74] sm:$0xf]
  %v2042 = vld [vmem:[%s3 + $0x78] sm:$0xf]
  %v2043 = vld [vmem:[%s3 + $0x7c] sm:$0xf]
  %v2044 = vld [vmem:[%s3 + $0x80] sm:$0xf]
  %v2045 = vld [vmem:[%s3 + $0x84] sm:$0xf]
  %v2046 = vld [vmem:[%s3 + $0x88] sm:$0xf]
  %v2047 = vld [vmem:[%s3 + $0x8c] sm:$0xf]
  %v2048 = vld [vmem:[%s3 + $0x90] sm:$0xf]
  %v2049 = vld [vmem:[%s3 + $0x94] sm:$0xf]
  %v2050 = vld [vmem:[%s3 + $0x98] sm:$0xf]
  %v2051 = vld [vmem:[%s3 + $0x9c] sm:$0xf]
  %v2052 = vld [vmem:[%s3 + $0xa0] sm:$0xf]
  %v2053 = vld [vmem:[%s3 + $0xa4] sm:$0xf]
  %v2054 = vld [vmem:[%s3 + $0xa8] sm:$0xf]
  %v2055 = vld [vmem:[%s3 + $0xac] sm:$0xf]
  %v2056 = vld [vmem:[%s3 + $0xb0] sm:$0xf]
  %v2057 = vld [vmem:[%s3 + $0xb4] sm:$0xf]
  %v2058 = vld [vmem:[%s3 + $0xb8] sm:$0xf]
  %v2059 = vld [vmem:[%s3 + $0xbc] sm:$0xf]
  %v2060 = vld [vmem:[%s3 + $0xc0] sm:$0xf]
  %v2061 = vld [vmem:[%s3 + $0xc4] sm:$0xf]
  %v2062 = vld [vmem:[%s3 + $0xc8] sm:$0xf]
  %v2063 = vld [vmem:[%s3 + $0xcc] sm:$0xf]
  %v2064 = vld [vmem:[%s3 + $0xd0] sm:$0xf]
  %v2065 = vld [vmem:[%s3 + $0xd4] sm:$0xf]
  %v2066 = vld [vmem:[%s3 + $0xd8] sm:$0xf]
  %v2067 = vld [vmem:[%s3 + $0xdc] sm:$0xf]
  %v2068 = vld [vmem:[%s3 + $0xe0] sm:$0xf]
  %v2069 = vld [vmem:[%s3 + $0xe4] sm:$0xf]
  %v2070 = vld [vmem:[%s3 + $0xe8] sm:$0xf]
  %v2071 = vld [vmem:[%s3 + $0xec] sm:$0xf]
  %v2072 = vld [vmem:[%s3 + $0xf0] sm:$0xf]
  %v2073 = vld [vmem:[%s3 + $0xf4] sm:$0xf]
  %v2074 = vld [vmem:[%s3 + $0xf8] sm:$0xf]
  %v2075 = vld [vmem:[%s3 + $0xfc] sm:$0xf]
  %v2076 = vld [vmem:[%s3 + $0x100] sm:$0xf]
  %v2077 = vld [vmem:[%s3 + $0x104] sm:$0xf]
  %v2078 = vld [vmem:[%s3 + $0x108] sm:$0xf]
  %v2079 = vld [vmem:[%s3 + $0x10c] sm:$0xf]
  %v2080 = vld [vmem:[%s3 + $0x110] sm:$0xf]
  %v2081 = vld [vmem:[%s3 + $0x114] sm:$0xf]
  %v2082 = vld [vmem:[%s3 + $0x118] sm:$0xf]
  %v2083 = vld [vmem:[%s3 + $0x11c] sm:$0xf]
  %v2084 = vld [vmem:[%s3 + $0x120] sm:$0xf]
  %v2085 = vld [vmem:[%s3 + $0x124] sm:$0xf]
  %v2086 = vld [vmem:[%s3 + $0x128] sm:$0xf]
  %v2087 = vld [vmem:[%s3 + $0x12c] sm:$0xf]
  %v2088 = vld [vmem:[%s3 + $0x130] sm:$0xf]
  %v2089 = vld [vmem:[%s3 + $0x134] sm:$0xf]
  %v2090 = vld [vmem:[%s3 + $0x138] sm:$0xf]
  %v2091 = vld [vmem:[%s3 + $0x13c] sm:$0xf]
  %v2092 = vld [vmem:[%s3 + $0x140] sm:$0xf]
  %v2093 = vld [vmem:[%s3 + $0x144] sm:$0xf]
  %v2094 = vld [vmem:[%s3 + $0x148] sm:$0xf]
  %v2095 = vld [vmem:[%s3 + $0x14c] sm:$0xf]
  %v2096 = vld [vmem:[%s3 + $0x150] sm:$0xf]
  %v2097 = vld [vmem:[%s3 + $0x154] sm:$0xf]
  %v2098 = vld [vmem:[%s3 + $0x158] sm:$0xf]
  %v2099 = vld [vmem:[%s3 + $0x15c] sm:$0xf]
  %v2100 = vld [vmem:[%s3 + $0x160] sm:$0xf]
  %v2101 = vld [vmem:[%s3 + $0x164] sm:$0xf]
  %v2102 = vld [vmem:[%s3 + $0x168] sm:$0xf]
  %v2103 = vld [vmem:[%s3 + $0x16c] sm:$0xf]
  %v2104 = vld [vmem:[%s3 + $0x170] sm:$0xf]
  %v2105 = vld [vmem:[%s3 + $0x174] sm:$0xf]
  %v2106 = vld [vmem:[%s3 + $0x178] sm:$0xf]
  %v2107 = vld [vmem:[%s3 + $0x17c] sm:$0xf]
  %v2108 = vld [vmem:[%s3 + $0x180] sm:$0xf]
  %v2109 = vld [vmem:[%s3 + $0x184] sm:$0xf]
  %v2110 = vld [vmem:[%s3 + $0x188] sm:$0xf]
  %v2111 = vld [vmem:[%s3 + $0x18c] sm:$0xf]
  %v2112 = vld [vmem:[%s3 + $0x190] sm:$0xf]
  %v2113 = vld [vmem:[%s3 + $0x194] sm:$0xf]
  %v2114 = vld [vmem:[%s3 + $0x198] sm:$0xf]
  %v2115 = vld [vmem:[%s3 + $0x19c] sm:$0xf]
  %v2116 = vld [vmem:[%s3 + $0x1a0] sm:$0xf]
  %v2117 = vld [vmem:[%s3 + $0x1a4] sm:$0xf]
  %v2118 = vld [vmem:[%s3 + $0x1a8] sm:$0xf]
  %v2119 = vld [vmem:[%s3 + $0x1ac] sm:$0xf]
  %v2120 = vld [vmem:[%s3 + $0x1b0] sm:$0xf]
  %v2121 = vld [vmem:[%s3 + $0x1b4] sm:$0xf]
  %v2122 = vld [vmem:[%s3 + $0x1b8] sm:$0xf]
  %v2123 = vld [vmem:[%s3 + $0x1bc] sm:$0xf]
  %v2124 = vld [vmem:[%s3 + $0x1c0] sm:$0xf]
  %v2125 = vld [vmem:[%s3 + $0x1c4] sm:$0xf]
  %v2126 = vld [vmem:[%s3 + $0x1c8] sm:$0xf]
  %v2127 = vld [vmem:[%s3 + $0x1cc] sm:$0xf]
  %v2128 = vld [vmem:[%s3 + $0x1d0] sm:$0xf]
  %v2129 = vld [vmem:[%s3 + $0x1d4] sm:$0xf]
  %v2130 = vld [vmem:[%s3 + $0x1d8] sm:$0xf]
  %v2131 = vld [vmem:[%s3 + $0x1dc] sm:$0xf]
  %v2132 = vld [vmem:[%s3 + $0x1e0] sm:$0xf]
  %v2133 = vld [vmem:[%s3 + $0x1e4] sm:$0xf]
  %v2134 = vld [vmem:[%s3 + $0x1e8] sm:$0xf]
  %v2135 = vld [vmem:[%s3 + $0x1ec] sm:$0xf]
  %v2136 = vld [vmem:[%s3 + $0x1f0] sm:$0xf]
  %v2137 = vld [vmem:[%s3 + $0x1f4] sm:$0xf]
  %v2138 = vld [vmem:[%s3 + $0x1f8] sm:$0xf]
  %v2139 = vld [vmem:[%s3 + $0x1fc] sm:$0xf]
  %v2140 = vld [vmem:[%s3 + $0x200] sm:$0xf]
  %v2141 = vld [vmem:[%s3 + $0x204] sm:$0xf]
  %v2142 = vld [vmem:[%s3 + $0x208] sm:$0xf]
  %v2143 = vld [vmem:[%s3 + $0x20c] sm:$0xf]
  %v2144 = vld [vmem:[%s3 + $0x210] sm:$0xf]
  %v2145 = vld [vmem:[%s3 + $0x214] sm:$0xf]
  %v2146 = vld [vmem:[%s3 + $0x218] sm:$0xf]
  %v2147 = vld [vmem:[%s3 + $0x21c] sm:$0xf]
  %v2148 = vld [vmem:[%s3 + $0x220] sm:$0xf]
  %v2149 = vld [vmem:[%s3 + $0x224] sm:$0xf]
  %v2150 = vld [vmem:[%s3 + $0x228] sm:$0xf]
  %v2151 = vld [vmem:[%s3 + $0x22c] sm:$0xf]
  %v2152 = vld [vmem:[%s3 + $0x230] sm:$0xf]
  %v2153 = vld [vmem:[%s3 + $0x234] sm:$0xf]
  %v2154 = vld [vmem:[%s3 + $0x238] sm:$0xf]
  %v2155 = vld [vmem:[%s3 + $0x23c] sm:$0xf]
  %v2156 = vld [vmem:[%s3 + $0x240] sm:$0xf]
  %v2157 = vld [vmem:[%s3 + $0x244] sm:$0xf]
  %v2158 = vld [vmem:[%s3 + $0x248] sm:$0xf]
  %v2159 = vld [vmem:[%s3 + $0x24c] sm:$0xf]
  %v2160 = vld [vmem:[%s3 + $0x250] sm:$0xf]
  %v2161 = vld [vmem:[%s3 + $0x254] sm:$0xf]
  %v2162 = vld [vmem:[%s3 + $0x258] sm:$0xf]
  %v2163 = vld [vmem:[%s3 + $0x25c] sm:$0xf]
  %v2164 = vld [vmem:[%s3 + $0x260] sm:$0xf]
  %v2165 = vld [vmem:[%s3 + $0x264] sm:$0xf]
  %v2166 = vld [vmem:[%s3 + $0x268] sm:$0xf]
  %v2167 = vld [vmem:[%s3 + $0x26c] sm:$0xf]
  %v2168 = vld [vmem:[%s3 + $0x270] sm:$0xf]
  %v2169 = vld [vmem:[%s3 + $0x274] sm:$0xf]
  %v2170 = vld [vmem:[%s3 + $0x278] sm:$0xf]
  %v2171 = vld [vmem:[%s3 + $0x27c] sm:$0xf]
  %v2172 = vld [vmem:[%s3 + $0x280] sm:$0xf]
  %v2173 = vld [vmem:[%s3 + $0x284] sm:$0xf]
  %v2174 = vld [vmem:[%s3 + $0x288] sm:$0xf]
  %v2175 = vld [vmem:[%s3 + $0x28c] sm:$0xf]
  %v2176 = vld [vmem:[%s3 + $0x290] sm:$0xf]
  %v2177 = vld [vmem:[%s3 + $0x294] sm:$0xf]
  %v2178 = vld [vmem:[%s3 + $0x298] sm:$0xf]
  %v2179 = vld [vmem:[%s3 + $0x29c] sm:$0xf]
  %v2180 = vld [vmem:[%s3 + $0x2a0] sm:$0xf]
  %v2181 = vld [vmem:[%s3 + $0x2a4] sm:$0xf]
  %v2182 = vld [vmem:[%s3 + $0x2a8] sm:$0xf]
  %v2183 = vld [vmem:[%s3 + $0x2ac] sm:$0xf]
  %v2184 = vld [vmem:[%s3 + $0x2b0] sm:$0xf]
  %v2185 = vld [vmem:[%s3 + $0x2b4] sm:$0xf]
  %v2186 = vld [vmem:[%s3 + $0x2b8] sm:$0xf]
  %v2187 = vld [vmem:[%s3 + $0x2bc] sm:$0xf]
  %v2188 = vld [vmem:[%s3 + $0x2c0] sm:$0xf]
  %v2189 = vld [vmem:[%s3 + $0x2c4] sm:$0xf]
  %v2190 = vld [vmem:[%s3 + $0x2c8] sm:$0xf]
  %v2191 = vld [vmem:[%s3 + $0x2cc] sm:$0xf]
  %v2192 = vld [vmem:[%s3 + $0x2d0] sm:$0xf]
  %v2193 = vld [vmem:[%s3 + $0x2d4] sm:$0xf]
  %v2194 = vld [vmem:[%s3 + $0x2d8] sm:$0xf]
  %v2195 = vld [vmem:[%s3 + $0x2dc] sm:$0xf]
  %v2196 = vld [vmem:[%s3 + $0x2e0] sm:$0xf]
  %v2197 = vld [vmem:[%s3 + $0x2e4] sm:$0xf]
  %v2198 = vld [vmem:[%s3 + $0x2e8] sm:$0xf]
  %v2199 = vld [vmem:[%s3 + $0x2ec] sm:$0xf]
  %v2200 = vld [vmem:[%s3 + $0x2f0] sm:$0xf]
  %v2201 = vld [vmem:[%s3 + $0x2f4] sm:$0xf]
  %v2202 = vld [vmem:[%s3 + $0x2f8] sm:$0xf]
  %v2203 = vld [vmem:[%s3 + $0x2fc] sm:$0xf]
  %v2204 = vld [vmem:[%s3 + $0x300] sm:$0xf]
  %v2205 = vld [vmem:[%s3 + $0x304] sm:$0xf]
  %v2206 = vld [vmem:[%s3 + $0x308] sm:$0xf]
  %v2207 = vld [vmem:[%s3 + $0x30c] sm:$0xf]
  %v2208 = vld [vmem:[%s3 + $0x310] sm:$0xf]
  %v2209 = vld [vmem:[%s3 + $0x314] sm:$0xf]
  %v2210 = vld [vmem:[%s3 + $0x318] sm:$0xf]
  %v2211 = vld [vmem:[%s3 + $0x31c] sm:$0xf]
  %v2212 = vld [vmem:[%s3 + $0x320] sm:$0xf]
  %v2213 = vld [vmem:[%s3 + $0x324] sm:$0xf]
  %v2214 = vld [vmem:[%s3 + $0x328] sm:$0xf]
  %v2215 = vld [vmem:[%s3 + $0x32c] sm:$0xf]
  %v2216 = vld [vmem:[%s3 + $0x330] sm:$0xf]
  %v2217 = vld [vmem:[%s3 + $0x334] sm:$0xf]
  %v2218 = vld [vmem:[%s3 + $0x338] sm:$0xf]
  %v2219 = vld [vmem:[%s3 + $0x33c] sm:$0xf]
  %v2220 = vld [vmem:[%s3 + $0x340] sm:$0xf]
  %v2221 = vld [vmem:[%s3 + $0x344] sm:$0xf]
  %v2222 = vld [vmem:[%s3 + $0x348] sm:$0xf]
  %v2223 = vld [vmem:[%s3 + $0x34c] sm:$0xf]
  %v2224 = vld [vmem:[%s3 + $0x350] sm:$0xf]
  %v2225 = vld [vmem:[%s3 + $0x354] sm:$0xf]
  %v2226 = vld [vmem:[%s3 + $0x358] sm:$0xf]
  %v2227 = vld [vmem:[%s3 + $0x35c] sm:$0xf]
  %v2228 = vld [vmem:[%s3 + $0x360] sm:$0xf]
  %v2229 = vld [vmem:[%s3 + $0x364] sm:$0xf]
  %v2230 = vld [vmem:[%s3 + $0x368] sm:$0xf]
  %v2231 = vld [vmem:[%s3 + $0x36c] sm:$0xf]
  %v2232 = vld [vmem:[%s3 + $0x370] sm:$0xf]
  %v2233 = vld [vmem:[%s3 + $0x374] sm:$0xf]
  %v2234 = vld [vmem:[%s3 + $0x378] sm:$0xf]
  %v2235 = vld [vmem:[%s3 + $0x37c] sm:$0xf]
  %v2236 = vld [vmem:[%s3 + $0x380] sm:$0xf]
  %v2237 = vld [vmem:[%s3 + $0x384] sm:$0xf]
  %v2238 = vld [vmem:[%s3 + $0x388] sm:$0xf]
  %v2239 = vld [vmem:[%s3 + $0x38c] sm:$0xf]
  %v2240 = vld [vmem:[%s3 + $0x390] sm:$0xf]
  %v2241 = vld [vmem:[%s3 + $0x394] sm:$0xf]
  %v2242 = vld [vmem:[%s3 + $0x398] sm:$0xf]
  %v2243 = vld [vmem:[%s3 + $0x39c] sm:$0xf]
  %v2244 = vld [vmem:[%s3 + $0x3a0] sm:$0xf]
  %v2245 = vld [vmem:[%s3 + $0x3a4] sm:$0xf]
  %v2246 = vld [vmem:[%s3 + $0x3a8] sm:$0xf]
  %v2247 = vld [vmem:[%s3 + $0x3ac] sm:$0xf]
  %v2248 = vld [vmem:[%s3 + $0x3b0] sm:$0xf]
  %v2249 = vld [vmem:[%s3 + $0x3b4] sm:$0xf]
  %v2250 = vld [vmem:[%s3 + $0x3b8] sm:$0xf]
  %v2251 = vld [vmem:[%s3 + $0x3bc] sm:$0xf]
  %v2252 = vld [vmem:[%s3 + $0x3c0] sm:$0xf]
  %v2253 = vld [vmem:[%s3 + $0x3c4] sm:$0xf]
  %v2254 = vld [vmem:[%s3 + $0x3c8] sm:$0xf]
  %v2255 = vld [vmem:[%s3 + $0x3cc] sm:$0xf]
  %v2256 = vld [vmem:[%s3 + $0x3d0] sm:$0xf]
  %v2257 = vld [vmem:[%s3 + $0x3d4] sm:$0xf]
  %v2258 = vld [vmem:[%s3 + $0x3d8] sm:$0xf]
  %v2259 = vld [vmem:[%s3 + $0x3dc] sm:$0xf]
  %v2260 = vld [vmem:[%s3 + $0x3e0] sm:$0xf]
  %v2261 = vld [vmem:[%s3 + $0x3e4] sm:$0xf]
  %v2262 = vld [vmem:[%s3 + $0x3e8] sm:$0xf]
  %v2263 = vld [vmem:[%s3 + $0x3ec] sm:$0xf]
  %v2264 = vld [vmem:[%s3 + $0x3f0] sm:$0xf]
  %v2265 = vld [vmem:[%s3 + $0x3f4] sm:$0xf]
  %v2266 = vld [vmem:[%s3 + $0x3f8] sm:$0xf]
  %v2267 = vld [vmem:[%s3 + $0x3fc] sm:$0xf]
  %v2268 = vld [vmem:[%s3 + $0x400] sm:$0xf]
  %v2269 = vld [vmem:[%s3 + $0x404] sm:$0xf]
  %v2270 = vld [vmem:[%s3 + $0x408] sm:$0xf]
  %v2271 = vld [vmem:[%s3 + $0x40c] sm:$0xf]
  %v2272 = vld [vmem:[%s3 + $0x410] sm:$0xf]
  %v2273 = vld [vmem:[%s3 + $0x414] sm:$0xf]
  %v2274 = vld [vmem:[%s3 + $0x418] sm:$0xf]
  %v2275 = vld [vmem:[%s3 + $0x41c] sm:$0xf]
  %v2276 = vld [vmem:[%s3 + $0x420] sm:$0xf]
  %v2277 = vld [vmem:[%s3 + $0x424] sm:$0xf]
  %v2278 = vld [vmem:[%s3 + $0x428] sm:$0xf]
  %v2279 = vld [vmem:[%s3 + $0x42c] sm:$0xf]
  %v2280 = vld [vmem:[%s3 + $0x430] sm:$0xf]
  %v2281 = vld [vmem:[%s3 + $0x434] sm:$0xf]
  %v2282 = vld [vmem:[%s3 + $0x438] sm:$0xf]
  %v2283 = vld [vmem:[%s3 + $0x43c] sm:$0xf]
  %v2284 = vld [vmem:[%s3 + $0x440] sm:$0xf]
  %v2285 = vld [vmem:[%s3 + $0x444] sm:$0xf]
  %v2286 = vld [vmem:[%s3 + $0x448] sm:$0xf]
  %v2287 = vld [vmem:[%s3 + $0x44c] sm:$0xf]
  %v2288 = vld [vmem:[%s3 + $0x450] sm:$0xf]
  %v2289 = vld [vmem:[%s3 + $0x454] sm:$0xf]
  %v2290 = vld [vmem:[%s3 + $0x458] sm:$0xf]
  %v2291 = vld [vmem:[%s3 + $0x45c] sm:$0xf]
  %v2292 = vld [vmem:[%s3 + $0x460] sm:$0xf]
  %v2293 = vld [vmem:[%s3 + $0x464] sm:$0xf]
  %v2294 = vld [vmem:[%s3 + $0x468] sm:$0xf]
  %v2295 = vld [vmem:[%s3 + $0x46c] sm:$0xf]
  %v2296 = vld [vmem:[%s3 + $0x470] sm:$0xf]
  %v2297 = vld [vmem:[%s3 + $0x474] sm:$0xf]
  %v2298 = vld [vmem:[%s3 + $0x478] sm:$0xf]
  %v2299 = vld [vmem:[%s3 + $0x47c] sm:$0xf]
  %v2300 = vld [vmem:[%s3 + $0x480] sm:$0xf]
  %v2301 = vld [vmem:[%s3 + $0x484] sm:$0xf]
  %v2302 = vld [vmem:[%s3 + $0x488] sm:$0xf]
  %v2303 = vld [vmem:[%s3 + $0x48c] sm:$0xf]
  %v2304 = vld [vmem:[%s3 + $0x490] sm:$0xf]
  %v2305 = vld [vmem:[%s3 + $0x494] sm:$0xf]
  %v2306 = vld [vmem:[%s3 + $0x498] sm:$0xf]
  %v2307 = vld [vmem:[%s3 + $0x49c] sm:$0xf]
  %v2308 = vld [vmem:[%s3 + $0x4a0] sm:$0xf]
  %v2309 = vld [vmem:[%s3 + $0x4a4] sm:$0xf]
  %v2310 = vld [vmem:[%s3 + $0x4a8] sm:$0xf]
  %v2311 = vld [vmem:[%s3 + $0x4ac] sm:$0xf]
  %v2312 = vld [vmem:[%s3 + $0x4b0] sm:$0xf]
  %v2313 = vld [vmem:[%s3 + $0x4b4] sm:$0xf]
  %v2314 = vld [vmem:[%s3 + $0x4b8] sm:$0xf]
  %v2315 = vld [vmem:[%s3 + $0x4bc] sm:$0xf]
  %v2316 = vld [vmem:[%s3 + $0x4c0] sm:$0xf]
  %v2317 = vld [vmem:[%s3 + $0x4c4] sm:$0xf]
  %v2318 = vld [vmem:[%s3 + $0x4c8] sm:$0xf]
  %v2319 = vld [vmem:[%s3 + $0x4cc] sm:$0xf]
  %v2320 = vld [vmem:[%s3 + $0x4d0] sm:$0xf]
  %v2321 = vld [vmem:[%s3 + $0x4d4] sm:$0xf]
  %v2322 = vld [vmem:[%s3 + $0x4d8] sm:$0xf]
  %v2323 = vld [vmem:[%s3 + $0x4dc] sm:$0xf]
  %v2324 = vld [vmem:[%s3 + $0x4e0] sm:$0xf]
  %v2325 = vld [vmem:[%s3 + $0x4e4] sm:$0xf]
  %v2326 = vld [vmem:[%s3 + $0x4e8] sm:$0xf]
  %v2327 = vld [vmem:[%s3 + $0x4ec] sm:$0xf]
  %v2328 = vld [vmem:[%s3 + $0x4f0] sm:$0xf]
  %v2329 = vld [vmem:[%s3 + $0x4f4] sm:$0xf]
  %v2330 = vld [vmem:[%s3 + $0x4f8] sm:$0xf]
  %v2331 = vld [vmem:[%s3 + $0x4fc] sm:$0xf]
  %v2332 = vld [vmem:[%s3 + $0x500] sm:$0xf]
  %v2333 = vld [vmem:[%s3 + $0x504] sm:$0xf]
  %v2334 = vld [vmem:[%s3 + $0x508] sm:$0xf]
  %v2335 = vld [vmem:[%s3 + $0x50c] sm:$0xf]
  %v2336 = vld [vmem:[%s3 + $0x510] sm:$0xf]
  %v2337 = vld [vmem:[%s3 + $0x514] sm:$0xf]
  %v2338 = vld [vmem:[%s3 + $0x518] sm:$0xf]
  %v2339 = vld [vmem:[%s3 + $0x51c] sm:$0xf]
  %v2340 = vld [vmem:[%s3 + $0x520] sm:$0xf]
  %v2341 = vld [vmem:[%s3 + $0x524] sm:$0xf]
  %v2342 = vld [vmem:[%s3 + $0x528] sm:$0xf]
  %v2343 = vld [vmem:[%s3 + $0x52c] sm:$0xf]
  %v2344 = vld [vmem:[%s3 + $0x530] sm:$0xf]
  %v2345 = vld [vmem:[%s3 + $0x534] sm:$0xf]
  %v2346 = vld [vmem:[%s3 + $0x538] sm:$0xf]
  %v2347 = vld [vmem:[%s3 + $0x53c] sm:$0xf]
  %v2348 = vld [vmem:[%s3 + $0x540] sm:$0xf]
  %v2349 = vld [vmem:[%s3 + $0x544] sm:$0xf]
  %v2350 = vld [vmem:[%s3 + $0x548] sm:$0xf]
  %v2351 = vld [vmem:[%s3 + $0x54c] sm:$0xf]
  %v2352 = vld [vmem:[%s3 + $0x550] sm:$0xf]
  %v2353 = vld [vmem:[%s3 + $0x554] sm:$0xf]
  %v2354 = vld [vmem:[%s3 + $0x558] sm:$0xf]
  %v2355 = vld [vmem:[%s3 + $0x55c] sm:$0xf]
  %v2356 = vld [vmem:[%s3 + $0x560] sm:$0xf]
  %v2357 = vld [vmem:[%s3 + $0x564] sm:$0xf]
  %v2358 = vld [vmem:[%s3 + $0x568] sm:$0xf]
  %v2359 = vld [vmem:[%s3 + $0x56c] sm:$0xf]
  %v2360 = vld [vmem:[%s3 + $0x570] sm:$0xf]
  %v2361 = vld [vmem:[%s3 + $0x574] sm:$0xf]
  %v2362 = vld [vmem:[%s3 + $0x578] sm:$0xf]
  %v2363 = vld [vmem:[%s3 + $0x57c] sm:$0xf]
  %v2364 = vld [vmem:[%s3 + $0x580] sm:$0xf]
  %v2365 = vld [vmem:[%s3 + $0x584] sm:$0xf]
  %v2366 = vld [vmem:[%s3 + $0x588] sm:$0xf]
  %v2367 = vld [vmem:[%s3 + $0x58c] sm:$0xf]
  %v2368 = vld [vmem:[%s3 + $0x590] sm:$0xf]
  %v2369 = vld [vmem:[%s3 + $0x594] sm:$0xf]
  %v2370 = vld [vmem:[%s3 + $0x598] sm:$0xf]
  %v2371 = vld [vmem:[%s3 + $0x59c] sm:$0xf]
  %v2372 = vld [vmem:[%s3 + $0x5a0] sm:$0xf]
  %v2373 = vld [vmem:[%s3 + $0x5a4] sm:$0xf]
  %v2374 = vld [vmem:[%s3 + $0x5a8] sm:$0xf]
  %v2375 = vld [vmem:[%s3 + $0x5ac] sm:$0xf]
  %v2376 = vld [vmem:[%s3 + $0x5b0] sm:$0xf]
  %v2377 = vld [vmem:[%s3 + $0x5b4] sm:$0xf]
  %v2378 = vld [vmem:[%s3 + $0x5b8] sm:$0xf]
  %v2379 = vld [vmem:[%s3 + $0x5bc] sm:$0xf]
  %v2380 = vld [vmem:[%s3 + $0x5c0] sm:$0xf]
  %v2381 = vld [vmem:[%s3 + $0x5c4] sm:$0xf]
  %v2382 = vld [vmem:[%s3 + $0x5c8] sm:$0xf]
  %v2383 = vld [vmem:[%s3 + $0x5cc] sm:$0xf]
  %v2384 = vld [vmem:[%s3 + $0x5d0] sm:$0xf]
  %v2385 = vld [vmem:[%s3 + $0x5d4] sm:$0xf]
  %v2386 = vld [vmem:[%s3 + $0x5d8] sm:$0xf]
  %v2387 = vld [vmem:[%s3 + $0x5dc] sm:$0xf]
  %v2388 = vld [vmem:[%s3 + $0x5e0] sm:$0xf]
  %v2389 = vld [vmem:[%s3 + $0x5e4] sm:$0xf]
  %v2390 = vld [vmem:[%s3 + $0x5e8] sm:$0xf]
  %v2391 = vld [vmem:[%s3 + $0x5ec] sm:$0xf]
  %v2392 = vld [vmem:[%s3 + $0x5f0] sm:$0xf]
  %v2393 = vld [vmem:[%s3 + $0x5f4] sm:$0xf]
  %v2394 = vld [vmem:[%s3 + $0x5f8] sm:$0xf]
  %v2395 = vld [vmem:[%s3 + $0x5fc] sm:$0xf]
  %v2396 = vld [vmem:[%s3 + $0x600] sm:$0xf]
  %v2397 = vld [vmem:[%s3 + $0x604] sm:$0xf]
  %v2398 = vld [vmem:[%s3 + $0x608] sm:$0xf]
  %v2399 = vld [vmem:[%s3 + $0x60c] sm:$0xf]
  %v2400 = vld [vmem:[%s3 + $0x610] sm:$0xf]
  %v2401 = vld [vmem:[%s3 + $0x614] sm:$0xf]
  %v2402 = vld [vmem:[%s3 + $0x618] sm:$0xf]
  %v2403 = vld [vmem:[%s3 + $0x61c] sm:$0xf]
  %v2404 = vld [vmem:[%s3 + $0x620] sm:$0xf]
  %v2405 = vld [vmem:[%s3 + $0x624] sm:$0xf]
  %v2406 = vld [vmem:[%s3 + $0x628] sm:$0xf]
  %v2407 = vld [vmem:[%s3 + $0x62c] sm:$0xf]
  %v2408 = vld [vmem:[%s3 + $0x630] sm:$0xf]
  %v2409 = vld [vmem:[%s3 + $0x634] sm:$0xf]
  %v2410 = vld [vmem:[%s3 + $0x638] sm:$0xf]
  %v2411 = vld [vmem:[%s3 + $0x63c] sm:$0xf]
  %v2412 = vld [vmem:[%s3 + $0x640] sm:$0xf]
  %v2413 = vld [vmem:[%s3 + $0x644] sm:$0xf]
  %v2414 = vld [vmem:[%s3 + $0x648] sm:$0xf]
  %v2415 = vld [vmem:[%s3 + $0x64c] sm:$0xf]
  %v2416 = vld [vmem:[%s3 + $0x650] sm:$0xf]
  %v2417 = vld [vmem:[%s3 + $0x654] sm:$0xf]
  %v2418 = vld [vmem:[%s3 + $0x658] sm:$0xf]
  %v2419 = vld [vmem:[%s3 + $0x65c] sm:$0xf]
  %v2420 = vld [vmem:[%s3 + $0x660] sm:$0xf]
  %v2421 = vld [vmem:[%s3 + $0x664] sm:$0xf]
  %v2422 = vld [vmem:[%s3 + $0x668] sm:$0xf]
  %v2423 = vld [vmem:[%s3 + $0x66c] sm:$0xf]
  %v2424 = vld [vmem:[%s3 + $0x670] sm:$0xf]
  %v2425 = vld [vmem:[%s3 + $0x674] sm:$0xf]
  %v2426 = vld [vmem:[%s3 + $0x678] sm:$0xf]
  %v2427 = vld [vmem:[%s3 + $0x67c] sm:$0xf]
  %v2428 = vld [vmem:[%s3 + $0x680] sm:$0xf]
  %v2429 = vld [vmem:[%s3 + $0x684] sm:$0xf]
  %v2430 = vld [vmem:[%s3 + $0x688] sm:$0xf]
  %v2431 = vld [vmem:[%s3 + $0x68c] sm:$0xf]
  %v2432 = vld [vmem:[%s3 + $0x690] sm:$0xf]
  %v2433 = vld [vmem:[%s3 + $0x694] sm:$0xf]
  %v2434 = vld [vmem:[%s3 + $0x698] sm:$0xf]
  %v2435 = vld [vmem:[%s3 + $0x69c] sm:$0xf]
  %v2436 = vld [vmem:[%s3 + $0x6a0] sm:$0xf]
  %v2437 = vld [vmem:[%s3 + $0x6a4] sm:$0xf]
  %v2438 = vld [vmem:[%s3 + $0x6a8] sm:$0xf]
  %v2439 = vld [vmem:[%s3 + $0x6ac] sm:$0xf]
  %v2440 = vld [vmem:[%s3 + $0x6b0] sm:$0xf]
  %v2441 = vld [vmem:[%s3 + $0x6b4] sm:$0xf]
  %v2442 = vld [vmem:[%s3 + $0x6b8] sm:$0xf]
  %v2443 = vld [vmem:[%s3 + $0x6bc] sm:$0xf]
  %v2444 = vld [vmem:[%s3 + $0x6c0] sm:$0xf]
  %v2445 = vld [vmem:[%s3 + $0x6c4] sm:$0xf]
  %v2446 = vld [vmem:[%s3 + $0x6c8] sm:$0xf]
  %v2447 = vld [vmem:[%s3 + $0x6cc] sm:$0xf]
  %v2448 = vld [vmem:[%s3 + $0x6d0] sm:$0xf]
  %v2449 = vld [vmem:[%s3 + $0x6d4] sm:$0xf]
  %v2450 = vld [vmem:[%s3 + $0x6d8] sm:$0xf]
  %v2451 = vld [vmem:[%s3 + $0x6dc] sm:$0xf]
  %v2452 = vld [vmem:[%s3 + $0x6e0] sm:$0xf]
  %v2453 = vld [vmem:[%s3 + $0x6e4] sm:$0xf]
  %v2454 = vld [vmem:[%s3 + $0x6e8] sm:$0xf]
  %v2455 = vld [vmem:[%s3 + $0x6ec] sm:$0xf]
  %v2456 = vld [vmem:[%s3 + $0x6f0] sm:$0xf]
  %v2457 = vld [vmem:[%s3 + $0x6f4] sm:$0xf]
  %v2458 = vld [vmem:[%s3 + $0x6f8] sm:$0xf]
  %v2459 = vld [vmem:[%s3 + $0x6fc] sm:$0xf]
  %v2460 = vld [vmem:[%s3 + $0x700] sm:$0xf]
  %v2461 = vld [vmem:[%s3 + $0x704] sm:$0xf]
  %v2462 = vld [vmem:[%s3 + $0x708] sm:$0xf]
  %v2463 = vld [vmem:[%s3 + $0x70c] sm:$0xf]
  %v2464 = vld [vmem:[%s3 + $0x710] sm:$0xf]
  %v2465 = vld [vmem:[%s3 + $0x714] sm:$0xf]
  %v2466 = vld [vmem:[%s3 + $0x718] sm:$0xf]
  %v2467 = vld [vmem:[%s3 + $0x71c] sm:$0xf]
  %v2468 = vld [vmem:[%s3 + $0x720] sm:$0xf]
  %v2469 = vld [vmem:[%s3 + $0x724] sm:$0xf]
  %v2470 = vld [vmem:[%s3 + $0x728] sm:$0xf]
  %v2471 = vld [vmem:[%s3 + $0x72c] sm:$0xf]
  %v2472 = vld [vmem:[%s3 + $0x730] sm:$0xf]
  %v2473 = vld [vmem:[%s3 + $0x734] sm:$0xf]
  %v2474 = vld [vmem:[%s3 + $0x738] sm:$0xf]
  %v2475 = vld [vmem:[%s3 + $0x73c] sm:$0xf]
  %v2476 = vld [vmem:[%s3 + $0x740] sm:$0xf]
  %v2477 = vld [vmem:[%s3 + $0x744] sm:$0xf]
  %v2478 = vld [vmem:[%s3 + $0x748] sm:$0xf]
  %v2479 = vld [vmem:[%s3 + $0x74c] sm:$0xf]
  %v2480 = vld [vmem:[%s3 + $0x750] sm:$0xf]
  %v2481 = vld [vmem:[%s3 + $0x754] sm:$0xf]
  %v2482 = vld [vmem:[%s3 + $0x758] sm:$0xf]
  %v2483 = vld [vmem:[%s3 + $0x75c] sm:$0xf]
  %v2484 = vld [vmem:[%s3 + $0x760] sm:$0xf]
  %v2485 = vld [vmem:[%s3 + $0x764] sm:$0xf]
  %v2486 = vld [vmem:[%s3 + $0x768] sm:$0xf]
  %v2487 = vld [vmem:[%s3 + $0x76c] sm:$0xf]
  %v2488 = vld [vmem:[%s3 + $0x770] sm:$0xf]
  %v2489 = vld [vmem:[%s3 + $0x774] sm:$0xf]
  %v2490 = vld [vmem:[%s3 + $0x778] sm:$0xf]
  %v2491 = vld [vmem:[%s3 + $0x77c] sm:$0xf]
  %v2492 = vld [vmem:[%s3 + $0x780] sm:$0xf]
  %v2493 = vld [vmem:[%s3 + $0x784] sm:$0xf]
  %v2494 = vld [vmem:[%s3 + $0x788] sm:$0xf]
  %v2495 = vld [vmem:[%s3 + $0x78c] sm:$0xf]
  %v2496 = vld [vmem:[%s3 + $0x790] sm:$0xf]
  %v2497 = vld [vmem:[%s3 + $0x794] sm:$0xf]
  %v2498 = vld [vmem:[%s3 + $0x798] sm:$0xf]
  %v2499 = vld [vmem:[%s3 + $0x79c] sm:$0xf]
  %v2500 = vld [vmem:[%s3 + $0x7a0] sm:$0xf]
  %v2501 = vld [vmem:[%s3 + $0x7a4] sm:$0xf]
  %v2502 = vld [vmem:[%s3 + $0x7a8] sm:$0xf]
  %v2503 = vld [vmem:[%s3 + $0x7ac] sm:$0xf]
  %v2504 = vld [vmem:[%s3 + $0x7b0] sm:$0xf]
  %v2505 = vld [vmem:[%s3 + $0x7b4] sm:$0xf]
  %v2506 = vld [vmem:[%s3 + $0x7b8] sm:$0xf]
  %v2507 = vld [vmem:[%s3 + $0x7bc] sm:$0xf]
  %v2508 = vld [vmem:[%s3 + $0x7c0] sm:$0xf]
  %v2509 = vld [vmem:[%s3 + $0x7c4] sm:$0xf]
  %v2510 = vld [vmem:[%s3 + $0x7c8] sm:$0xf]
  %v2511 = vld [vmem:[%s3 + $0x7cc] sm:$0xf]
  %v2512 = vld [vmem:[%s3 + $0x7d0] sm:$0xf]
  %v2513 = vld [vmem:[%s3 + $0x7d4] sm:$0xf]
  %v2514 = vld [vmem:[%s3 + $0x7d8] sm:$0xf]
  %v2515 = vld [vmem:[%s3 + $0x7dc] sm:$0xf]
  %v2516 = vld [vmem:[%s3 + $0x7e0] sm:$0xf]
  %v2517 = vld [vmem:[%s3 + $0x7e4] sm:$0xf]
  %v2518 = vld [vmem:[%s3 + $0x7e8] sm:$0xf]
  %v2519 = vld [vmem:[%s3 + $0x7ec] sm:$0xf]
  %v2520 = vld [vmem:[%s3 + $0x7f0] sm:$0xf]
  %v2521 = vld [vmem:[%s3 + $0x7f4] sm:$0xf]
  %v2522 = vld [vmem:[%s3 + $0x7f8] sm:$0xf]
  %v2523 = vld [vmem:[%s3 + $0x7fc] sm:$0xf]
  %v2524 = vld [vmem:[%s3 + $0x800] sm:$0xf]
  %v2525 = vld [vmem:[%s3 + $0x804] sm:$0xf]
  %v2526 = vld [vmem:[%s3 + $0x808] sm:$0xf]
  %v2527 = vld [vmem:[%s3 + $0x80c] sm:$0xf]
  %v2528 = vld [vmem:[%s3 + $0x810] sm:$0xf]
  %v2529 = vld [vmem:[%s3 + $0x814] sm:$0xf]
  %v2530 = vld [vmem:[%s3 + $0x818] sm:$0xf]
  %v2531 = vld [vmem:[%s3 + $0x81c] sm:$0xf]
  %v2532 = vld [vmem:[%s3 + $0x820] sm:$0xf]
  %v2533 = vld [vmem:[%s3 + $0x824] sm:$0xf]
  %v2534 = vld [vmem:[%s3 + $0x828] sm:$0xf]
  %v2535 = vld [vmem:[%s3 + $0x82c] sm:$0xf]
  %v2536 = vld [vmem:[%s3 + $0x830] sm:$0xf]
  %v2537 = vld [vmem:[%s3 + $0x834] sm:$0xf]
  %v2538 = vld [vmem:[%s3 + $0x838] sm:$0xf]
  %v2539 = vld [vmem:[%s3 + $0x83c] sm:$0xf]
  %v2540 = vld [vmem:[%s3 + $0x840] sm:$0xf]
  %v2541 = vld [vmem:[%s3 + $0x844] sm:$0xf]
  %v2542 = vld [vmem:[%s3 + $0x848] sm:$0xf]
  %v2543 = vld [vmem:[%s3 + $0x84c] sm:$0xf]
  %v2544 = vld [vmem:[%s3 + $0x850] sm:$0xf]
  %v2545 = vld [vmem:[%s3 + $0x854] sm:$0xf]
  %v2546 = vld [vmem:[%s3 + $0x858] sm:$0xf]
  %v2547 = vld [vmem:[%s3 + $0x85c] sm:$0xf]
  %v2548 = vld [vmem:[%s3 + $0x860] sm:$0xf]
  %v2549 = vld [vmem:[%s3 + $0x864] sm:$0xf]
  %v2550 = vld [vmem:[%s3 + $0x868] sm:$0xf]
  %v2551 = vld [vmem:[%s3 + $0x86c] sm:$0xf]
  %v2552 = vld [vmem:[%s3 + $0x870] sm:$0xf]
  %v2553 = vld [vmem:[%s3 + $0x874] sm:$0xf]
  %v2554 = vld [vmem:[%s3 + $0x878] sm:$0xf]
  %v2555 = vld [vmem:[%s3 + $0x87c] sm:$0xf]
  %v2556 = vld [vmem:[%s3 + $0x880] sm:$0xf]
  %v2557 = vld [vmem:[%s3 + $0x884] sm:$0xf]
  %v2558 = vld [vmem:[%s3 + $0x888] sm:$0xf]
  %v2559 = vld [vmem:[%s3 + $0x88c] sm:$0xf]
  %v2560 = vld [vmem:[%s3 + $0x890] sm:$0xf]
  %v2561 = vld [vmem:[%s3 + $0x894] sm:$0xf]
  %v2562 = vld [vmem:[%s3 + $0x898] sm:$0xf]
  %v2563 = vld [vmem:[%s3 + $0x89c] sm:$0xf]
  %v2564 = vld [vmem:[%s3 + $0x8a0] sm:$0xf]
  %v2565 = vld [vmem:[%s3 + $0x8a4] sm:$0xf]
  %v2566 = vld [vmem:[%s3 + $0x8a8] sm:$0xf]
  %v2567 = vld [vmem:[%s3 + $0x8ac] sm:$0xf]
  %v2568 = vld [vmem:[%s3 + $0x8b0] sm:$0xf]
  %v2569 = vld [vmem:[%s3 + $0x8b4] sm:$0xf]
  %v2570 = vld [vmem:[%s3 + $0x8b8] sm:$0xf]
  %v2571 = vld [vmem:[%s3 + $0x8bc] sm:$0xf]
  %v2572 = vld [vmem:[%s3 + $0x8c0] sm:$0xf]
  %v2573 = vld [vmem:[%s3 + $0x8c4] sm:$0xf]
  %v2574 = vld [vmem:[%s3 + $0x8c8] sm:$0xf]
  %v2575 = vld [vmem:[%s3 + $0x8cc] sm:$0xf]
  %v2576 = vld [vmem:[%s3 + $0x8d0] sm:$0xf]
  %v2577 = vld [vmem:[%s3 + $0x8d4] sm:$0xf]
  %v2578 = vld [vmem:[%s3 + $0x8d8] sm:$0xf]
  %v2579 = vld [vmem:[%s3 + $0x8dc] sm:$0xf]
  %v2580 = vld [vmem:[%s3 + $0x8e0] sm:$0xf]
  %v2581 = vld [vmem:[%s3 + $0x8e4] sm:$0xf]
  %v2582 = vld [vmem:[%s3 + $0x8e8] sm:$0xf]
  %v2583 = vld [vmem:[%s3 + $0x8ec] sm:$0xf]
  %v2584 = vld [vmem:[%s3 + $0x8f0] sm:$0xf]
  %v2585 = vld [vmem:[%s3 + $0x8f4] sm:$0xf]
  %v2586 = vld [vmem:[%s3 + $0x8f8] sm:$0xf]
  %v2587 = vld [vmem:[%s3 + $0x8fc] sm:$0xf]
  %v2588 = vld [vmem:[%s3 + $0x900] sm:$0xf]
  %v2589 = vld [vmem:[%s3 + $0x904] sm:$0xf]
  %v2590 = vld [vmem:[%s3 + $0x908] sm:$0xf]
  %v2591 = vld [vmem:[%s3 + $0x90c] sm:$0xf]
  %v2592 = vld [vmem:[%s3 + $0x910] sm:$0xf]
  %v2593 = vld [vmem:[%s3 + $0x914] sm:$0xf]
  %v2594 = vld [vmem:[%s3 + $0x918] sm:$0xf]
  %v2595 = vld [vmem:[%s3 + $0x91c] sm:$0xf]
  %v2596 = vld [vmem:[%s3 + $0x920] sm:$0xf]
  %v2597 = vld [vmem:[%s3 + $0x924] sm:$0xf]
  %v2598 = vld [vmem:[%s3 + $0x928] sm:$0xf]
  %v2599 = vld [vmem:[%s3 + $0x92c] sm:$0xf]
  %v2600 = vld [vmem:[%s3 + $0x930] sm:$0xf]
  %v2601 = vld [vmem:[%s3 + $0x934] sm:$0xf]
  %v2602 = vld [vmem:[%s3 + $0x938] sm:$0xf]
  %v2603 = vld [vmem:[%s3 + $0x93c] sm:$0xf]
  %v2604 = vld [vmem:[%s3 + $0x940] sm:$0xf]
  %v2605 = vld [vmem:[%s3 + $0x944] sm:$0xf]
  %v2606 = vld [vmem:[%s3 + $0x948] sm:$0xf]
  %v2607 = vld [vmem:[%s3 + $0x94c] sm:$0xf]
  %v2608 = vld [vmem:[%s3 + $0x950] sm:$0xf]
  %v2609 = vld [vmem:[%s3 + $0x954] sm:$0xf]
  %v2610 = vld [vmem:[%s3 + $0x958] sm:$0xf]
  %v2611 = vld [vmem:[%s3 + $0x95c] sm:$0xf]
  %v2612 = vld [vmem:[%s3 + $0x960] sm:$0xf]
  %v2613 = vld [vmem:[%s3 + $0x964] sm:$0xf]
  %v2614 = vld [vmem:[%s3 + $0x968] sm:$0xf]
  %v2615 = vld [vmem:[%s3 + $0x96c] sm:$0xf]
  %v2616 = vld [vmem:[%s3 + $0x970] sm:$0xf]
  %v2617 = vld [vmem:[%s3 + $0x974] sm:$0xf]
  %v2618 = vld [vmem:[%s3 + $0x978] sm:$0xf]
  %v2619 = vld [vmem:[%s3 + $0x97c] sm:$0xf]
  %v2620 = vld [vmem:[%s3 + $0x980] sm:$0xf]
  %v2621 = vld [vmem:[%s3 + $0x984] sm:$0xf]
  %v2622 = vld [vmem:[%s3 + $0x988] sm:$0xf]
  %v2623 = vld [vmem:[%s3 + $0x98c] sm:$0xf]
  %v2624 = vld [vmem:[%s3 + $0x990] sm:$0xf]
  %v2625 = vld [vmem:[%s3 + $0x994] sm:$0xf]
  %v2626 = vld [vmem:[%s3 + $0x998] sm:$0xf]
  %v2627 = vld [vmem:[%s3 + $0x99c] sm:$0xf]
  %v2628 = vld [vmem:[%s3 + $0x9a0] sm:$0xf]
  %v2629 = vld [vmem:[%s3 + $0x9a4] sm:$0xf]
  %v2630 = vld [vmem:[%s3 + $0x9a8] sm:$0xf]
  %v2631 = vld [vmem:[%s3 + $0x9ac] sm:$0xf]
  %v2632 = vld [vmem:[%s3 + $0x9b0] sm:$0xf]
  %v2633 = vld [vmem:[%s3 + $0x9b4] sm:$0xf]
  %v2634 = vld [vmem:[%s3 + $0x9b8] sm:$0xf]
  %v2635 = vld [vmem:[%s3 + $0x9bc] sm:$0xf]
  %v2636 = vld [vmem:[%s3 + $0x9c0] sm:$0xf]
  %v2637 = vld [vmem:[%s3 + $0x9c4] sm:$0xf]
  %v2638 = vld [vmem:[%s3 + $0x9c8] sm:$0xf]
  %v2639 = vld [vmem:[%s3 + $0x9cc] sm:$0xf]
  %v2640 = vld [vmem:[%s3 + $0x9d0] sm:$0xf]
  %v2641 = vld [vmem:[%s3 + $0x9d4] sm:$0xf]
  %v2642 = vld [vmem:[%s3 + $0x9d8] sm:$0xf]
  %v2643 = vld [vmem:[%s3 + $0x9dc] sm:$0xf]
  %v2644 = vld [vmem:[%s3 + $0x9e0] sm:$0xf]
  %v2645 = vld [vmem:[%s3 + $0x9e4] sm:$0xf]
  %v2646 = vld [vmem:[%s3 + $0x9e8] sm:$0xf]
  %v2647 = vld [vmem:[%s3 + $0x9ec] sm:$0xf]
  %v2648 = vld [vmem:[%s3 + $0x9f0] sm:$0xf]
  %v2649 = vld [vmem:[%s3 + $0x9f4] sm:$0xf]
  %v2650 = vld [vmem:[%s3 + $0x9f8] sm:$0xf]
  %v2651 = vld [vmem:[%s3 + $0x9fc] sm:$0xf]
  %v2652 = vld [vmem:[%s3 + $0xa00] sm:$0xf]
  %v2653 = vld [vmem:[%s3 + $0xa04] sm:$0xf]
  %v2654 = vld [vmem:[%s3 + $0xa08] sm:$0xf]
  %v2655 = vld [vmem:[%s3 + $0xa0c] sm:$0xf]
  %v2656 = vld [vmem:[%s3 + $0xa10] sm:$0xf]
  %v2657 = vld [vmem:[%s3 + $0xa14] sm:$0xf]
  %v2658 = vld [vmem:[%s3 + $0xa18] sm:$0xf]
  %v2659 = vld [vmem:[%s3 + $0xa1c] sm:$0xf]
  %v2660 = vld [vmem:[%s3 + $0xa20] sm:$0xf]
  %v2661 = vld [vmem:[%s3 + $0xa24] sm:$0xf]
  %v2662 = vld [vmem:[%s3 + $0xa28] sm:$0xf]
  %v2663 = vld [vmem:[%s3 + $0xa2c] sm:$0xf]
  %v2664 = vld [vmem:[%s3 + $0xa30] sm:$0xf]
  %v2665 = vld [vmem:[%s3 + $0xa34] sm:$0xf]
  %v2666 = vld [vmem:[%s3 + $0xa38] sm:$0xf]
  %v2667 = vld [vmem:[%s3 + $0xa3c] sm:$0xf]
  %v2668 = vld [vmem:[%s3 + $0xa40] sm:$0xf]
  %v2669 = vld [vmem:[%s3 + $0xa44] sm:$0xf]
  %v2670 = vld [vmem:[%s3 + $0xa48] sm:$0xf]
  %v2671 = vld [vmem:[%s3 + $0xa4c] sm:$0xf]
  %v2672 = vld [vmem:[%s3 + $0xa50] sm:$0xf]
  %v2673 = vld [vmem:[%s3 + $0xa54] sm:$0xf]
  %v2674 = vld [vmem:[%s3 + $0xa58] sm:$0xf]
  %v2675 = vld [vmem:[%s3 + $0xa5c] sm:$0xf]
  %v2676 = vld [vmem:[%s3 + $0xa60] sm:$0xf]
  %v2677 = vld [vmem:[%s3 + $0xa64] sm:$0xf]
  %v2678 = vld [vmem:[%s3 + $0xa68] sm:$0xf]
  %v2679 = vld [vmem:[%s3 + $0xa6c] sm:$0xf]
  %v2680 = vld [vmem:[%s3 + $0xa70] sm:$0xf]
  %v2681 = vld [vmem:[%s3 + $0xa74] sm:$0xf]
  %v2682 = vld [vmem:[%s3 + $0xa78] sm:$0xf]
  %v2683 = vld [vmem:[%s3 + $0xa7c] sm:$0xf]
  %v2684 = vld [vmem:[%s3 + $0xa80] sm:$0xf]
  %v2685 = vld [vmem:[%s3 + $0xa84] sm:$0xf]
  %v2686 = vld [vmem:[%s3 + $0xa88] sm:$0xf]
  %v2687 = vld [vmem:[%s3 + $0xa8c] sm:$0xf]
  %v2688 = vld [vmem:[%s3 + $0xa90] sm:$0xf]
  %v2689 = vld [vmem:[%s3 + $0xa94] sm:$0xf]
  %v2690 = vld [vmem:[%s3 + $0xa98] sm:$0xf]
  %v2691 = vld [vmem:[%s3 + $0xa9c] sm:$0xf]
  %v2692 = vld [vmem:[%s3 + $0xaa0] sm:$0xf]
  %v2693 = vld [vmem:[%s3 + $0xaa4] sm:$0xf]
  %v2694 = vld [vmem:[%s3 + $0xaa8] sm:$0xf]
  %v2695 = vld [vmem:[%s3 + $0xaac] sm:$0xf]
  %v2696 = vld [vmem:[%s3 + $0xab0] sm:$0xf]
  %v2697 = vld [vmem:[%s3 + $0xab4] sm:$0xf]
  %v2698 = vld [vmem:[%s3 + $0xab8] sm:$0xf]
  %v2699 = vld [vmem:[%s3 + $0xabc] sm:$0xf]
  %v2700 = vld [vmem:[%s3 + $0xac0] sm:$0xf]
  %v2701 = vld [vmem:[%s3 + $0xac4] sm:$0xf]
  %v2702 = vld [vmem:[%s3 + $0xac8] sm:$0xf]
  %v2703 = vld [vmem:[%s3 + $0xacc] sm:$0xf]
  %v2704 = vld [vmem:[%s3 + $0xad0] sm:$0xf]
  %v2705 = vld [vmem:[%s3 + $0xad4] sm:$0xf]
  %v2706 = vld [vmem:[%s3 + $0xad8] sm:$0xf]
  %v2707 = vld [vmem:[%s3 + $0xadc] sm:$0xf]
  %v2708 = vld [vmem:[%s3 + $0xae0] sm:$0xf]
  %v2709 = vld [vmem:[%s3 + $0xae4] sm:$0xf]
  %v2710 = vld [vmem:[%s3 + $0xae8] sm:$0xf]
  %v2711 = vld [vmem:[%s3 + $0xaec] sm:$0xf]
  %v2712 = vld [vmem:[%s3 + $0xaf0] sm:$0xf]
  %v2713 = vld [vmem:[%s3 + $0xaf4] sm:$0xf]
  %v2714 = vld [vmem:[%s3 + $0xaf8] sm:$0xf]
  %v2715 = vld [vmem:[%s3 + $0xafc] sm:$0xf]
  %v2716 = vld [vmem:[%s3 + $0xb00] sm:$0xf]
  %v2717 = vld [vmem:[%s3 + $0xb04] sm:$0xf]
  %v2718 = vld [vmem:[%s3 + $0xb08] sm:$0xf]
  %v2719 = vld [vmem:[%s3 + $0xb0c] sm:$0xf]
  %v2720 = vld [vmem:[%s3 + $0xb10] sm:$0xf]
  %v2721 = vld [vmem:[%s3 + $0xb14] sm:$0xf]
  %v2722 = vld [vmem:[%s3 + $0xb18] sm:$0xf]
  %v2723 = vld [vmem:[%s3 + $0xb1c] sm:$0xf]
  %v2724 = vld [vmem:[%s3 + $0xb20] sm:$0xf]
  %v2725 = vld [vmem:[%s3 + $0xb24] sm:$0xf]
  %v2726 = vld [vmem:[%s3 + $0xb28] sm:$0xf]
  %v2727 = vld [vmem:[%s3 + $0xb2c] sm:$0xf]
  %v2728 = vld [vmem:[%s3 + $0xb30] sm:$0xf]
  %v2729 = vld [vmem:[%s3 + $0xb34] sm:$0xf]
  %v2730 = vld [vmem:[%s3 + $0xb38] sm:$0xf]
  %v2731 = vld [vmem:[%s3 + $0xb3c] sm:$0xf]
  %v2732 = vld [vmem:[%s3 + $0xb40] sm:$0xf]
  %v2733 = vld [vmem:[%s3 + $0xb44] sm:$0xf]
  %v2734 = vld [vmem:[%s3 + $0xb48] sm:$0xf]
  %v2735 = vld [vmem:[%s3 + $0xb4c] sm:$0xf]
  %v2736 = vld [vmem:[%s3 + $0xb50] sm:$0xf]
  %v2737 = vld [vmem:[%s3 + $0xb54] sm:$0xf]
  %v2738 = vld [vmem:[%s3 + $0xb58] sm:$0xf]
  %v2739 = vld [vmem:[%s3 + $0xb5c] sm:$0xf]
  %v2740 = vld [vmem:[%s3 + $0xb60] sm:$0xf]
  %v2741 = vld [vmem:[%s3 + $0xb64] sm:$0xf]
  %v2742 = vld [vmem:[%s3 + $0xb68] sm:$0xf]
  %v2743 = vld [vmem:[%s3 + $0xb6c] sm:$0xf]
  %v2744 = vld [vmem:[%s3 + $0xb70] sm:$0xf]
  %v2745 = vld [vmem:[%s3 + $0xb74] sm:$0xf]
  %v2746 = vld [vmem:[%s3 + $0xb78] sm:$0xf]
  %v2747 = vld [vmem:[%s3 + $0xb7c] sm:$0xf]
  %v2748 = vld [vmem:[%s3 + $0xb80] sm:$0xf]
  %v2749 = vld [vmem:[%s3 + $0xb84] sm:$0xf]
  %v2750 = vld [vmem:[%s3 + $0xb88] sm:$0xf]
  %v2751 = vld [vmem:[%s3 + $0xb8c] sm:$0xf]
  %v2752 = vld [vmem:[%s3 + $0xb90] sm:$0xf]
  %v2753 = vld [vmem:[%s3 + $0xb94] sm:$0xf]
  %v2754 = vld [vmem:[%s3 + $0xb98] sm:$0xf]
  %v2755 = vld [vmem:[%s3 + $0xb9c] sm:$0xf]
  %v2756 = vld [vmem:[%s3 + $0xba0] sm:$0xf]
  %v2757 = vld [vmem:[%s3 + $0xba4] sm:$0xf]
  %v2758 = vld [vmem:[%s3 + $0xba8] sm:$0xf]
  %v2759 = vld [vmem:[%s3 + $0xbac] sm:$0xf]
  %v2760 = vld [vmem:[%s3 + $0xbb0] sm:$0xf]
  %v2761 = vld [vmem:[%s3 + $0xbb4] sm:$0xf]
  %v2762 = vld [vmem:[%s3 + $0xbb8] sm:$0xf]
  %v2763 = vld [vmem:[%s3 + $0xbbc] sm:$0xf]
  %v2764 = vld [vmem:[%s3 + $0xbc0] sm:$0xf]
  %v2765 = vld [vmem:[%s3 + $0xbc4] sm:$0xf]
  %v2766 = vld [vmem:[%s3 + $0xbc8] sm:$0xf]
  %v2767 = vld [vmem:[%s3 + $0xbcc] sm:$0xf]
  %v2768 = vld [vmem:[%s3 + $0xbd0] sm:$0xf]
  %v2769 = vld [vmem:[%s3 + $0xbd4] sm:$0xf]
  %v2770 = vld [vmem:[%s3 + $0xbd8] sm:$0xf]
  %v2771 = vld [vmem:[%s3 + $0xbdc] sm:$0xf]
  %v2772 = vld [vmem:[%s3 + $0xbe0] sm:$0xf]
  %v2773 = vld [vmem:[%s3 + $0xbe4] sm:$0xf]
  %v2774 = vld [vmem:[%s3 + $0xbe8] sm:$0xf]
  %v2775 = vld [vmem:[%s3 + $0xbec] sm:$0xf]
  %v2776 = vld [vmem:[%s3 + $0xbf0] sm:$0xf]
  %v2777 = vld [vmem:[%s3 + $0xbf4] sm:$0xf]
  %v2778 = vld [vmem:[%s3 + $0xbf8] sm:$0xf]
  %v2779 = vld [vmem:[%s3 + $0xbfc] sm:$0xf]
  %v2780 = vld [vmem:[%s3 + $0xc00] sm:$0xf]
  %v2781 = vld [vmem:[%s3 + $0xc04] sm:$0xf]
  %v2782 = vld [vmem:[%s3 + $0xc08] sm:$0xf]
  %v2783 = vld [vmem:[%s3 + $0xc0c] sm:$0xf]
  %v2784 = vld [vmem:[%s3 + $0xc10] sm:$0xf]
  %v2785 = vld [vmem:[%s3 + $0xc14] sm:$0xf]
  %v2786 = vld [vmem:[%s3 + $0xc18] sm:$0xf]
  %v2787 = vld [vmem:[%s3 + $0xc1c] sm:$0xf]
  %v2788 = vld [vmem:[%s3 + $0xc20] sm:$0xf]
  %v2789 = vld [vmem:[%s3 + $0xc24] sm:$0xf]
  %v2790 = vld [vmem:[%s3 + $0xc28] sm:$0xf]
  %v2791 = vld [vmem:[%s3 + $0xc2c] sm:$0xf]
  %v2792 = vld [vmem:[%s3 + $0xc30] sm:$0xf]
  %v2793 = vld [vmem:[%s3 + $0xc34] sm:$0xf]
  %v2794 = vld [vmem:[%s3 + $0xc38] sm:$0xf]
  %v2795 = vld [vmem:[%s3 + $0xc3c] sm:$0xf]
  %v2796 = vld [vmem:[%s3 + $0xc40] sm:$0xf]
  %v2797 = vld [vmem:[%s3 + $0xc44] sm:$0xf]
  %v2798 = vld [vmem:[%s3 + $0xc48] sm:$0xf]
  %v2799 = vld [vmem:[%s3 + $0xc4c] sm:$0xf]
  %v2800 = vld [vmem:[%s3 + $0xc50] sm:$0xf]
  %v2801 = vld [vmem:[%s3 + $0xc54] sm:$0xf]
  %v2802 = vld [vmem:[%s3 + $0xc58] sm:$0xf]
  %v2803 = vld [vmem:[%s3 + $0xc5c] sm:$0xf]
  %v2804 = vld [vmem:[%s3 + $0xc60] sm:$0xf]
  %v2805 = vld [vmem:[%s3 + $0xc64] sm:$0xf]
  %v2806 = vld [vmem:[%s3 + $0xc68] sm:$0xf]
  %v2807 = vld [vmem:[%s3 + $0xc6c] sm:$0xf]
  %v2808 = vld [vmem:[%s3 + $0xc70] sm:$0xf]
  %v2809 = vld [vmem:[%s3 + $0xc74] sm:$0xf]
  %v2810 = vld [vmem:[%s3 + $0xc78] sm:$0xf]
  %v2811 = vld [vmem:[%s3 + $0xc7c] sm:$0xf]
  %v2812 = vld [vmem:[%s3 + $0xc80] sm:$0xf]
  %v2813 = vld [vmem:[%s3 + $0xc84] sm:$0xf]
  %v2814 = vld [vmem:[%s3 + $0xc88] sm:$0xf]
  %v2815 = vld [vmem:[%s3 + $0xc8c] sm:$0xf]
  %v2816 = vld [vmem:[%s3 + $0xc90] sm:$0xf]
  %v2817 = vld [vmem:[%s3 + $0xc94] sm:$0xf]
  %v2818 = vld [vmem:[%s3 + $0xc98] sm:$0xf]
  %v2819 = vld [vmem:[%s3 + $0xc9c] sm:$0xf]
  %v2820 = vld [vmem:[%s3 + $0xca0] sm:$0xf]
  %v2821 = vld [vmem:[%s3 + $0xca4] sm:$0xf]
  %v2822 = vld [vmem:[%s3 + $0xca8] sm:$0xf]
  %v2823 = vld [vmem:[%s3 + $0xcac] sm:$0xf]
  %v2824 = vld [vmem:[%s3 + $0xcb0] sm:$0xf]
  %v2825 = vld [vmem:[%s3 + $0xcb4] sm:$0xf]
  %v2826 = vld [vmem:[%s3 + $0xcb8] sm:$0xf]
  %v2827 = vld [vmem:[%s3 + $0xcbc] sm:$0xf]
  %v2828 = vld [vmem:[%s3 + $0xcc0] sm:$0xf]
  %v2829 = vld [vmem:[%s3 + $0xcc4] sm:$0xf]
  %v2830 = vld [vmem:[%s3 + $0xcc8] sm:$0xf]
  %v2831 = vld [vmem:[%s3 + $0xccc] sm:$0xf]
  %v2832 = vld [vmem:[%s3 + $0xcd0] sm:$0xf]
  %v2833 = vld [vmem:[%s3 + $0xcd4] sm:$0xf]
  %v2834 = vld [vmem:[%s3 + $0xcd8] sm:$0xf]
  %v2835 = vld [vmem:[%s3 + $0xcdc] sm:$0xf]
  %v2836 = vld [vmem:[%s3 + $0xce0] sm:$0xf]
  %v2837 = vld [vmem:[%s3 + $0xce4] sm:$0xf]
  %v2838 = vld [vmem:[%s3 + $0xce8] sm:$0xf]
  %v2839 = vld [vmem:[%s3 + $0xcec] sm:$0xf]
  %v2840 = vld [vmem:[%s3 + $0xcf0] sm:$0xf]
  %v2841 = vld [vmem:[%s3 + $0xcf4] sm:$0xf]
  %v2842 = vld [vmem:[%s3 + $0xcf8] sm:$0xf]
  %v2843 = vld [vmem:[%s3 + $0xcfc] sm:$0xf]
  %v2844 = vld [vmem:[%s3 + $0xd00] sm:$0xf]
  %v2845 = vld [vmem:[%s3 + $0xd04] sm:$0xf]
  %v2846 = vld [vmem:[%s3 + $0xd08] sm:$0xf]
  %v2847 = vld [vmem:[%s3 + $0xd0c] sm:$0xf]
  %v2848 = vld [vmem:[%s3 + $0xd10] sm:$0xf]
  %v2849 = vld [vmem:[%s3 + $0xd14] sm:$0xf]
  %v2850 = vld [vmem:[%s3 + $0xd18] sm:$0xf]
  %v2851 = vld [vmem:[%s3 + $0xd1c] sm:$0xf]
  %v2852 = vld [vmem:[%s3 + $0xd20] sm:$0xf]
  %v2853 = vld [vmem:[%s3 + $0xd24] sm:$0xf]
  %v2854 = vld [vmem:[%s3 + $0xd28] sm:$0xf]
  %v2855 = vld [vmem:[%s3 + $0xd2c] sm:$0xf]
  %v2856 = vld [vmem:[%s3 + $0xd30] sm:$0xf]
  %v2857 = vld [vmem:[%s3 + $0xd34] sm:$0xf]
  %v2858 = vld [vmem:[%s3 + $0xd38] sm:$0xf]
  %v2859 = vld [vmem:[%s3 + $0xd3c] sm:$0xf]
  %v2860 = vld [vmem:[%s3 + $0xd40] sm:$0xf]
  %v2861 = vld [vmem:[%s3 + $0xd44] sm:$0xf]
  %v2862 = vld [vmem:[%s3 + $0xd48] sm:$0xf]
  %v2863 = vld [vmem:[%s3 + $0xd4c] sm:$0xf]
  %v2864 = vld [vmem:[%s3 + $0xd50] sm:$0xf]
  %v2865 = vld [vmem:[%s3 + $0xd54] sm:$0xf]
  %v2866 = vld [vmem:[%s3 + $0xd58] sm:$0xf]
  %v2867 = vld [vmem:[%s3 + $0xd5c] sm:$0xf]
  %v2868 = vld [vmem:[%s3 + $0xd60] sm:$0xf]
  %v2869 = vld [vmem:[%s3 + $0xd64] sm:$0xf]
  %v2870 = vld [vmem:[%s3 + $0xd68] sm:$0xf]
  %v2871 = vld [vmem:[%s3 + $0xd6c] sm:$0xf]
  %v2872 = vld [vmem:[%s3 + $0xd70] sm:$0xf]
  %v2873 = vld [vmem:[%s3 + $0xd74] sm:$0xf]
  %v2874 = vld [vmem:[%s3 + $0xd78] sm:$0xf]
  %v2875 = vld [vmem:[%s3 + $0xd7c] sm:$0xf]
  %v2876 = vld [vmem:[%s3 + $0xd80] sm:$0xf]
  %v2877 = vld [vmem:[%s3 + $0xd84] sm:$0xf]
  %v2878 = vld [vmem:[%s3 + $0xd88] sm:$0xf]
  %v2879 = vld [vmem:[%s3 + $0xd8c] sm:$0xf]
  %v2880 = vld [vmem:[%s3 + $0xd90] sm:$0xf]
  %v2881 = vld [vmem:[%s3 + $0xd94] sm:$0xf]
  %v2882 = vld [vmem:[%s3 + $0xd98] sm:$0xf]
  %v2883 = vld [vmem:[%s3 + $0xd9c] sm:$0xf]
  %v2884 = vld [vmem:[%s3 + $0xda0] sm:$0xf]
  %v2885 = vld [vmem:[%s3 + $0xda4] sm:$0xf]
  %v2886 = vld [vmem:[%s3 + $0xda8] sm:$0xf]
  %v2887 = vld [vmem:[%s3 + $0xdac] sm:$0xf]
  %v2888 = vld [vmem:[%s3 + $0xdb0] sm:$0xf]
  %v2889 = vld [vmem:[%s3 + $0xdb4] sm:$0xf]
  %v2890 = vld [vmem:[%s3 + $0xdb8] sm:$0xf]
  %v2891 = vld [vmem:[%s3 + $0xdbc] sm:$0xf]
  %v2892 = vld [vmem:[%s3 + $0xdc0] sm:$0xf]
  %v2893 = vld [vmem:[%s3 + $0xdc4] sm:$0xf]
  %v2894 = vld [vmem:[%s3 + $0xdc8] sm:$0xf]
  %v2895 = vld [vmem:[%s3 + $0xdcc] sm:$0xf]
  %v2896 = vld [vmem:[%s3 + $0xdd0] sm:$0xf]
  %v2897 = vld [vmem:[%s3 + $0xdd4] sm:$0xf]
  %v2898 = vld [vmem:[%s3 + $0xdd8] sm:$0xf]
  %v2899 = vld [vmem:[%s3 + $0xddc] sm:$0xf]
  %v2900 = vld [vmem:[%s3 + $0xde0] sm:$0xf]
  %v2901 = vld [vmem:[%s3 + $0xde4] sm:$0xf]
  %v2902 = vld [vmem:[%s3 + $0xde8] sm:$0xf]
  %v2903 = vld [vmem:[%s3 + $0xdec] sm:$0xf]
  %v2904 = vld [vmem:[%s3 + $0xdf0] sm:$0xf]
  %v2905 = vld [vmem:[%s3 + $0xdf4] sm:$0xf]
  %v2906 = vld [vmem:[%s3 + $0xdf8] sm:$0xf]
  %v2907 = vld [vmem:[%s3 + $0xdfc] sm:$0xf]
  %v2908 = vld [vmem:[%s3 + $0xe00] sm:$0xf]
  %v2909 = vld [vmem:[%s3 + $0xe04] sm:$0xf]
  %v2910 = vld [vmem:[%s3 + $0xe08] sm:$0xf]
  %v2911 = vld [vmem:[%s3 + $0xe0c] sm:$0xf]
  %v2912 = vld [vmem:[%s3 + $0xe10] sm:$0xf]
  %v2913 = vld [vmem:[%s3 + $0xe14] sm:$0xf]
  %v2914 = vld [vmem:[%s3 + $0xe18] sm:$0xf]
  %v2915 = vld [vmem:[%s3 + $0xe1c] sm:$0xf]
  %v2916 = vld [vmem:[%s3 + $0xe20] sm:$0xf]
  %v2917 = vld [vmem:[%s3 + $0xe24] sm:$0xf]
  %v2918 = vld [vmem:[%s3 + $0xe28] sm:$0xf]
  %v2919 = vld [vmem:[%s3 + $0xe2c] sm:$0xf]
  %v2920 = vld [vmem:[%s3 + $0xe30] sm:$0xf]
  %v2921 = vld [vmem:[%s3 + $0xe34] sm:$0xf]
  %v2922 = vld [vmem:[%s3 + $0xe38] sm:$0xf]
  %v2923 = vld [vmem:[%s3 + $0xe3c] sm:$0xf]
  %v2924 = vld [vmem:[%s3 + $0xe40] sm:$0xf]
  %v2925 = vld [vmem:[%s3 + $0xe44] sm:$0xf]
  %v2926 = vld [vmem:[%s3 + $0xe48] sm:$0xf]
  %v2927 = vld [vmem:[%s3 + $0xe4c] sm:$0xf]
  %v2928 = vld [vmem:[%s3 + $0xe50] sm:$0xf]
  %v2929 = vld [vmem:[%s3 + $0xe54] sm:$0xf]
  %v2930 = vld [vmem:[%s3 + $0xe58] sm:$0xf]
  %v2931 = vld [vmem:[%s3 + $0xe5c] sm:$0xf]
  %v2932 = vld [vmem:[%s3 + $0xe60] sm:$0xf]
  %v2933 = vld [vmem:[%s3 + $0xe64] sm:$0xf]
  %v2934 = vld [vmem:[%s3 + $0xe68] sm:$0xf]
  %v2935 = vld [vmem:[%s3 + $0xe6c] sm:$0xf]
  %v2936 = vld [vmem:[%s3 + $0xe70] sm:$0xf]
  %v2937 = vld [vmem:[%s3 + $0xe74] sm:$0xf]
  %v2938 = vld [vmem:[%s3 + $0xe78] sm:$0xf]
  %v2939 = vld [vmem:[%s3 + $0xe7c] sm:$0xf]
  %v2940 = vld [vmem:[%s3 + $0xe80] sm:$0xf]
  %v2941 = vld [vmem:[%s3 + $0xe84] sm:$0xf]
  %v2942 = vld [vmem:[%s3 + $0xe88] sm:$0xf]
  %v2943 = vld [vmem:[%s3 + $0xe8c] sm:$0xf]
  %v2944 = vld [vmem:[%s3 + $0xe90] sm:$0xf]
  %v2945 = vld [vmem:[%s3 + $0xe94] sm:$0xf]
  %v2946 = vld [vmem:[%s3 + $0xe98] sm:$0xf]
  %v2947 = vld [vmem:[%s3 + $0xe9c] sm:$0xf]
  %v2948 = vld [vmem:[%s3 + $0xea0] sm:$0xf]
  %v2949 = vld [vmem:[%s3 + $0xea4] sm:$0xf]
  %v2950 = vld [vmem:[%s3 + $0xea8] sm:$0xf]
  %v2951 = vld [vmem:[%s3 + $0xeac] sm:$0xf]
  %v2952 = vld [vmem:[%s3 + $0xeb0] sm:$0xf]
  %v2953 = vld [vmem:[%s3 + $0xeb4] sm:$0xf]
  %v2954 = vld [vmem:[%s3 + $0xeb8] sm:$0xf]
  %v2955 = vld [vmem:[%s3 + $0xebc] sm:$0xf]
  %v2956 = vld [vmem:[%s3 + $0xec0] sm:$0xf]
  %v2957 = vld [vmem:[%s3 + $0xec4] sm:$0xf]
  %v2958 = vld [vmem:[%s3 + $0xec8] sm:$0xf]
  %v2959 = vld [vmem:[%s3 + $0xecc] sm:$0xf]
  %v2960 = vld [vmem:[%s3 + $0xed0] sm:$0xf]
  %v2961 = vld [vmem:[%s3 + $0xed4] sm:$0xf]
  %v2962 = vld [vmem:[%s3 + $0xed8] sm:$0xf]
  %v2963 = vld [vmem:[%s3 + $0xedc] sm:$0xf]
  %v2964 = vld [vmem:[%s3 + $0xee0] sm:$0xf]
  %v2965 = vld [vmem:[%s3 + $0xee4] sm:$0xf]
  %v2966 = vld [vmem:[%s3 + $0xee8] sm:$0xf]
  %v2967 = vld [vmem:[%s3 + $0xeec] sm:$0xf]
  %v2968 = vld [vmem:[%s3 + $0xef0] sm:$0xf]
  %v2969 = vld [vmem:[%s3 + $0xef4] sm:$0xf]
  %v2970 = vld [vmem:[%s3 + $0xef8] sm:$0xf]
  %v2971 = vld [vmem:[%s3 + $0xefc] sm:$0xf]
  %v2972 = vld [vmem:[%s3 + $0xf00] sm:$0xf]
  %v2973 = vld [vmem:[%s3 + $0xf04] sm:$0xf]
  %v2974 = vld [vmem:[%s3 + $0xf08] sm:$0xf]
  %v2975 = vld [vmem:[%s3 + $0xf0c] sm:$0xf]
  %v2976 = vld [vmem:[%s3 + $0xf10] sm:$0xf]
  %v2977 = vld [vmem:[%s3 + $0xf14] sm:$0xf]
  %v2978 = vld [vmem:[%s3 + $0xf18] sm:$0xf]
  %v2979 = vld [vmem:[%s3 + $0xf1c] sm:$0xf]
  %v2980 = vld [vmem:[%s3 + $0xf20] sm:$0xf]
  %v2981 = vld [vmem:[%s3 + $0xf24] sm:$0xf]
  %v2982 = vld [vmem:[%s3 + $0xf28] sm:$0xf]
  %v2983 = vld [vmem:[%s3 + $0xf2c] sm:$0xf]
  %v2984 = vld [vmem:[%s3 + $0xf30] sm:$0xf]
  %v2985 = vld [vmem:[%s3 + $0xf34] sm:$0xf]
  %v2986 = vld [vmem:[%s3 + $0xf38] sm:$0xf]
  %v2987 = vld [vmem:[%s3 + $0xf3c] sm:$0xf]
  %v2988 = vld [vmem:[%s3 + $0xf40] sm:$0xf]
  %v2989 = vld [vmem:[%s3 + $0xf44] sm:$0xf]
  %v2990 = vld [vmem:[%s3 + $0xf48] sm:$0xf]
  %v2991 = vld [vmem:[%s3 + $0xf4c] sm:$0xf]
  %v2992 = vld [vmem:[%s3 + $0xf50] sm:$0xf]
  %v2993 = vld [vmem:[%s3 + $0xf54] sm:$0xf]
  %v2994 = vld [vmem:[%s3 + $0xf58] sm:$0xf]
  %v2995 = vld [vmem:[%s3 + $0xf5c] sm:$0xf]
  %v2996 = vld [vmem:[%s3 + $0xf60] sm:$0xf]
  %v2997 = vld [vmem:[%s3 + $0xf64] sm:$0xf]
  %v2998 = vld [vmem:[%s3 + $0xf68] sm:$0xf]
  %v2999 = vld [vmem:[%s3 + $0xf6c] sm:$0xf]
  %v3000 = vld [vmem:[%s3 + $0xf70] sm:$0xf]
  %v3001 = vld [vmem:[%s3 + $0xf74] sm:$0xf]
  %v3002 = vld [vmem:[%s3 + $0xf78] sm:$0xf]
  %v3003 = vld [vmem:[%s3 + $0xf7c] sm:$0xf]
  %v3004 = vld [vmem:[%s3 + $0xf80] sm:$0xf]
  %v3005 = vld [vmem:[%s3 + $0xf84] sm:$0xf]
  %v3006 = vld [vmem:[%s3 + $0xf88] sm:$0xf]
  %v3007 = vld [vmem:[%s3 + $0xf8c] sm:$0xf]
  %v3008 = vld [vmem:[%s3 + $0xf90] sm:$0xf]
  %v3009 = vld [vmem:[%s3 + $0xf94] sm:$0xf]
  %v3010 = vld [vmem:[%s3 + $0xf98] sm:$0xf]
  %v3011 = vld [vmem:[%s3 + $0xf9c] sm:$0xf]
  %v3012 = vld [vmem:[%s3 + $0xfa0] sm:$0xf]
  %v3013 = vld [vmem:[%s3 + $0xfa4] sm:$0xf]
  %v3014 = vld [vmem:[%s3 + $0xfa8] sm:$0xf]
  %v3015 = vld [vmem:[%s3 + $0xfac] sm:$0xf]
  %v3016 = vld [vmem:[%s3 + $0xfb0] sm:$0xf]
  %v3017 = vld [vmem:[%s3 + $0xfb4] sm:$0xf]
  %v3018 = vld [vmem:[%s3 + $0xfb8] sm:$0xf]
  %v3019 = vld [vmem:[%s3 + $0xfbc] sm:$0xf]
  %v3020 = vld [vmem:[%s3 + $0xfc0] sm:$0xf]
  %v3021 = vld [vmem:[%s3 + $0xfc4] sm:$0xf]
  %v3022 = vld [vmem:[%s3 + $0xfc8] sm:$0xf]
  %v3023 = vld [vmem:[%s3 + $0xfcc] sm:$0xf]
  %v3024 = vld [vmem:[%s3 + $0xfd0] sm:$0xf]
  %v3025 = vld [vmem:[%s3 + $0xfd4] sm:$0xf]
  %v3026 = vld [vmem:[%s3 + $0xfd8] sm:$0xf]
  %v3027 = vld [vmem:[%s3 + $0xfdc] sm:$0xf]
  %v3028 = vld [vmem:[%s3 + $0xfe0] sm:$0xf]
  %v3029 = vld [vmem:[%s3 + $0xfe4] sm:$0xf]
  %v3030 = vld [vmem:[%s3 + $0xfe8] sm:$0xf]
  %v3031 = vld [vmem:[%s3 + $0xfec] sm:$0xf]
  %v3032 = vld [vmem:[%s3 + $0xff0] sm:$0xf]
  %v3033 = vld [vmem:[%s3 + $0xff4] sm:$0xf]
  %v3034 = vld [vmem:[%s3 + $0xff8] sm:$0xf]
  %v3035 = vld [vmem:[%s3 + $0xffc] sm:$0xf]
  %v3052 = vunpack.c.l.b16 %v2012
  %v3053 = vunpack.c.l.b16 %v2013
  %v3054 = vunpack.c.l.b16 %v2014
  %v3055 = vunpack.c.l.b16 %v2015
  %v3056 = vunpack.c.l.b16 %v2016
  %v3057 = vunpack.c.l.b16 %v2017
  %v3058 = vunpack.c.l.b16 %v2018
  %v3059 = vunpack.c.l.b16 %v2019
  %v3060 = vunpack.c.l.b16 %v2020
  %v3061 = vunpack.c.l.b16 %v2021
  %v3062 = vunpack.c.l.b16 %v2022
  %v3063 = vunpack.c.l.b16 %v2023
  %v3064 = vunpack.c.l.b16 %v2024
  %v3065 = vunpack.c.l.b16 %v2025
  %v3066 = vunpack.c.l.b16 %v2026
  %v3067 = vunpack.c.l.b16 %v2027
  %v3068 = vpack.c.b16 %v3053, %v3052
  %v3069 = vpack.c.b16 %v3055, %v3054
  %v3070 = vpack.c.b16 %v3057, %v3056
  %v3071 = vpack.c.b16 %v3059, %v3058
  %v3072 = vpack.c.b16 %v3061, %v3060
  %v3073 = vpack.c.b16 %v3063, %v3062
  %v3074 = vpack.c.b16 %v3065, %v3064
  %v3075 = vpack.c.b16 %v3067, %v3066
  %3084 = vmatpush.bf16.msra.mxu0 %v3075
  %3085 = vmatpush.bf16.msra.mxu0 %v3074
  %3086 = vmatpush.bf16.msra.mxu0 %v3073
  %3087 = vmatpush.bf16.msra.mxu0 %v3072
  %3088 = vmatpush.bf16.msra.mxu0 %v3071
  %3089 = vmatpush.bf16.msra.mxu0 %v3070
  %3090 = vmatpush.bf16.msra.mxu0 %v3069
  %3091 = vmatpush.bf16.msra.mxu0 %v3068
  %3092 = vmatmul.bf16.gmra.mxu0 %v1948
  %v3093 = vpop.f32.mrf.mxu0
  %v3094 = vadd.f32 0.0, %v3093
  %v3095 = vpop.f32.mrf.mxu0
  %3096 = vdwg.mxu0
  %v3113 = vunpack.c.l.b16 %v2028
  %v3114 = vunpack.c.l.b16 %v2029
  %v3115 = vunpack.c.l.b16 %v2030
  %v3116 = vunpack.c.l.b16 %v2031
  %v3117 = vunpack.c.l.b16 %v2032
  %v3118 = vunpack.c.l.b16 %v2033
  %v3119 = vunpack.c.l.b16 %v2034
  %v3120 = vunpack.c.l.b16 %v2035
  %v3121 = vunpack.c.l.b16 %v2036
  %v3122 = vunpack.c.l.b16 %v2037
  %v3123 = vunpack.c.l.b16 %v2038
  %v3124 = vunpack.c.l.b16 %v2039
  %v3125 = vunpack.c.l.b16 %v2040
  %v3126 = vunpack.c.l.b16 %v2041
  %v3127 = vunpack.c.l.b16 %v2042
  %v3128 = vunpack.c.l.b16 %v2043
  %v3129 = vpack.c.b16 %v3114, %v3113
  %v3130 = vpack.c.b16 %v3116, %v3115
  %v3131 = vpack.c.b16 %v3118, %v3117
  %v3132 = vpack.c.b16 %v3120, %v3119
  %v3133 = vpack.c.b16 %v3122, %v3121
  %v3134 = vpack.c.b16 %v3124, %v3123
  %v3135 = vpack.c.b16 %v3126, %v3125
  %v3136 = vpack.c.b16 %v3128, %v3127
  %3145 = vmatpush.bf16.msra.mxu0 %v3136
  %3146 = vmatpush.bf16.msra.mxu0 %v3135
  %3147 = vmatpush.bf16.msra.mxu0 %v3134
  %3148 = vmatpush.bf16.msra.mxu0 %v3133
  %3149 = vmatpush.bf16.msra.mxu0 %v3132
  %3150 = vmatpush.bf16.msra.mxu0 %v3131
  %3151 = vmatpush.bf16.msra.mxu0 %v3130
  %3152 = vmatpush.bf16.msra.mxu0 %v3129
  %3153 = vmatmul.bf16.gmra.mxu0 %v1949
  %v3154 = vpop.f32.mrf.mxu0
  %v3155 = vadd.f32 0.0, %v3154
  %v3156 = vpop.f32.mrf.mxu0
  %3157 = vdwg.mxu0
  %v3174 = vunpack.c.l.b16 %v2044
  %v3175 = vunpack.c.l.b16 %v2045
  %v3176 = vunpack.c.l.b16 %v2046
  %v3177 = vunpack.c.l.b16 %v2047
  %v3178 = vunpack.c.l.b16 %v2048
  %v3179 = vunpack.c.l.b16 %v2049
  %v3180 = vunpack.c.l.b16 %v2050
  %v3181 = vunpack.c.l.b16 %v2051
  %v3182 = vunpack.c.l.b16 %v2052
  %v3183 = vunpack.c.l.b16 %v2053
  %v3184 = vunpack.c.l.b16 %v2054
  %v3185 = vunpack.c.l.b16 %v2055
  %v3186 = vunpack.c.l.b16 %v2056
  %v3187 = vunpack.c.l.b16 %v2057
  %v3188 = vunpack.c.l.b16 %v2058
  %v3189 = vunpack.c.l.b16 %v2059
  %v3190 = vpack.c.b16 %v3175, %v3174
  %v3191 = vpack.c.b16 %v3177, %v3176
  %v3192 = vpack.c.b16 %v3179, %v3178
  %v3193 = vpack.c.b16 %v3181, %v3180
  %v3194 = vpack.c.b16 %v3183, %v3182
  %v3195 = vpack.c.b16 %v3185, %v3184
  %v3196 = vpack.c.b16 %v3187, %v3186
  %v3197 = vpack.c.b16 %v3189, %v3188
  %3206 = vmatpush.bf16.msra.mxu0 %v3197
  %3207 = vmatpush.bf16.msra.mxu0 %v3196
  %3208 = vmatpush.bf16.msra.mxu0 %v3195
  %3209 = vmatpush.bf16.msra.mxu0 %v3194
  %3210 = vmatpush.bf16.msra.mxu0 %v3193
  %3211 = vmatpush.bf16.msra.mxu0 %v3192
  %3212 = vmatpush.bf16.msra.mxu0 %v3191
  %3213 = vmatpush.bf16.msra.mxu0 %v3190
  %3214 = vmatmul.bf16.gmra.mxu0 %v1950
  %v3215 = vpop.f32.mrf.mxu0
  %v3216 = vadd.f32 0.0, %v3215
  %v3217 = vpop.f32.mrf.mxu0
  %3218 = vdwg.mxu0
  %v3235 = vunpack.c.l.b16 %v2060
  %v3236 = vunpack.c.l.b16 %v2061
  %v3237 = vunpack.c.l.b16 %v2062
  %v3238 = vunpack.c.l.b16 %v2063
  %v3239 = vunpack.c.l.b16 %v2064
  %v3240 = vunpack.c.l.b16 %v2065
  %v3241 = vunpack.c.l.b16 %v2066
  %v3242 = vunpack.c.l.b16 %v2067
  %v3243 = vunpack.c.l.b16 %v2068
  %v3244 = vunpack.c.l.b16 %v2069
  %v3245 = vunpack.c.l.b16 %v2070
  %v3246 = vunpack.c.l.b16 %v2071
  %v3247 = vunpack.c.l.b16 %v2072
  %v3248 = vunpack.c.l.b16 %v2073
  %v3249 = vunpack.c.l.b16 %v2074
  %v3250 = vunpack.c.l.b16 %v2075
  %v3251 = vpack.c.b16 %v3236, %v3235
  %v3252 = vpack.c.b16 %v3238, %v3237
  %v3253 = vpack.c.b16 %v3240, %v3239
  %v3254 = vpack.c.b16 %v3242, %v3241
  %v3255 = vpack.c.b16 %v3244, %v3243
  %v3256 = vpack.c.b16 %v3246, %v3245
  %v3257 = vpack.c.b16 %v3248, %v3247
  %v3258 = vpack.c.b16 %v3250, %v3249
  %3267 = vmatpush.bf16.msra.mxu0 %v3258
  %3268 = vmatpush.bf16.msra.mxu0 %v3257
  %3269 = vmatpush.bf16.msra.mxu0 %v3256
  %3270 = vmatpush.bf16.msra.mxu0 %v3255
  %3271 = vmatpush.bf16.msra.mxu0 %v3254
  %3272 = vmatpush.bf16.msra.mxu0 %v3253
  %3273 = vmatpush.bf16.msra.mxu0 %v3252
  %3274 = vmatpush.bf16.msra.mxu0 %v3251
  %3275 = vmatmul.bf16.gmra.mxu0 %v1951
  %v3276 = vpop.f32.mrf.mxu0
  %v3277 = vadd.f32 0.0, %v3276
  %v3278 = vpop.f32.mrf.mxu0
  %3279 = vdwg.mxu0
  %v3296 = vunpack.c.l.b16 %v2076
  %v3297 = vunpack.c.l.b16 %v2077
  %v3298 = vunpack.c.l.b16 %v2078
  %v3299 = vunpack.c.l.b16 %v2079
  %v3300 = vunpack.c.l.b16 %v2080
  %v3301 = vunpack.c.l.b16 %v2081
  %v3302 = vunpack.c.l.b16 %v2082
  %v3303 = vunpack.c.l.b16 %v2083
  %v3304 = vunpack.c.l.b16 %v2084
  %v3305 = vunpack.c.l.b16 %v2085
  %v3306 = vunpack.c.l.b16 %v2086
  %v3307 = vunpack.c.l.b16 %v2087
  %v3308 = vunpack.c.l.b16 %v2088
  %v3309 = vunpack.c.l.b16 %v2089
  %v3310 = vunpack.c.l.b16 %v2090
  %v3311 = vunpack.c.l.b16 %v2091
  %v3312 = vpack.c.b16 %v3297, %v3296
  %v3313 = vpack.c.b16 %v3299, %v3298
  %v3314 = vpack.c.b16 %v3301, %v3300
  %v3315 = vpack.c.b16 %v3303, %v3302
  %v3316 = vpack.c.b16 %v3305, %v3304
  %v3317 = vpack.c.b16 %v3307, %v3306
  %v3318 = vpack.c.b16 %v3309, %v3308
  %v3319 = vpack.c.b16 %v3311, %v3310
  %3328 = vmatpush.bf16.msra.mxu0 %v3319
  %3329 = vmatpush.bf16.msra.mxu0 %v3318
  %3330 = vmatpush.bf16.msra.mxu0 %v3317
  %3331 = vmatpush.bf16.msra.mxu0 %v3316
  %3332 = vmatpush.bf16.msra.mxu0 %v3315
  %3333 = vmatpush.bf16.msra.mxu0 %v3314
  %3334 = vmatpush.bf16.msra.mxu0 %v3313
  %3335 = vmatpush.bf16.msra.mxu0 %v3312
  %3336 = vmatmul.bf16.gmra.mxu0 %v1952
  %v3337 = vpop.f32.mrf.mxu0
  %v3338 = vadd.f32 0.0, %v3337
  %v3339 = vpop.f32.mrf.mxu0
  %3340 = vdwg.mxu0
  %v3357 = vunpack.c.l.b16 %v2092
  %v3358 = vunpack.c.l.b16 %v2093
  %v3359 = vunpack.c.l.b16 %v2094
  %v3360 = vunpack.c.l.b16 %v2095
  %v3361 = vunpack.c.l.b16 %v2096
  %v3362 = vunpack.c.l.b16 %v2097
  %v3363 = vunpack.c.l.b16 %v2098
  %v3364 = vunpack.c.l.b16 %v2099
  %v3365 = vunpack.c.l.b16 %v2100
  %v3366 = vunpack.c.l.b16 %v2101
  %v3367 = vunpack.c.l.b16 %v2102
  %v3368 = vunpack.c.l.b16 %v2103
  %v3369 = vunpack.c.l.b16 %v2104
  %v3370 = vunpack.c.l.b16 %v2105
  %v3371 = vunpack.c.l.b16 %v2106
  %v3372 = vunpack.c.l.b16 %v2107
  %v3373 = vpack.c.b16 %v3358, %v3357
  %v3374 = vpack.c.b16 %v3360, %v3359
  %v3375 = vpack.c.b16 %v3362, %v3361
  %v3376 = vpack.c.b16 %v3364, %v3363
  %v3377 = vpack.c.b16 %v3366, %v3365
  %v3378 = vpack.c.b16 %v3368, %v3367
  %v3379 = vpack.c.b16 %v3370, %v3369
  %v3380 = vpack.c.b16 %v3372, %v3371
  %3389 = vmatpush.bf16.msra.mxu0 %v3380
  %3390 = vmatpush.bf16.msra.mxu0 %v3379
  %3391 = vmatpush.bf16.msra.mxu0 %v3378
  %3392 = vmatpush.bf16.msra.mxu0 %v3377
  %3393 = vmatpush.bf16.msra.mxu0 %v3376
  %3394 = vmatpush.bf16.msra.mxu0 %v3375
  %3395 = vmatpush.bf16.msra.mxu0 %v3374
  %3396 = vmatpush.bf16.msra.mxu0 %v3373
  %3397 = vmatmul.bf16.gmra.mxu0 %v1953
  %v3398 = vpop.f32.mrf.mxu0
  %v3399 = vadd.f32 0.0, %v3398
  %v3400 = vpop.f32.mrf.mxu0
  %3401 = vdwg.mxu0
  %v3418 = vunpack.c.l.b16 %v2108
  %v3419 = vunpack.c.l.b16 %v2109
  %v3420 = vunpack.c.l.b16 %v2110
  %v3421 = vunpack.c.l.b16 %v2111
  %v3422 = vunpack.c.l.b16 %v2112
  %v3423 = vunpack.c.l.b16 %v2113
  %v3424 = vunpack.c.l.b16 %v2114
  %v3425 = vunpack.c.l.b16 %v2115
  %v3426 = vunpack.c.l.b16 %v2116
  %v3427 = vunpack.c.l.b16 %v2117
  %v3428 = vunpack.c.l.b16 %v2118
  %v3429 = vunpack.c.l.b16 %v2119
  %v3430 = vunpack.c.l.b16 %v2120
  %v3431 = vunpack.c.l.b16 %v2121
  %v3432 = vunpack.c.l.b16 %v2122
  %v3433 = vunpack.c.l.b16 %v2123
  %v3434 = vpack.c.b16 %v3419, %v3418
  %v3435 = vpack.c.b16 %v3421, %v3420
  %v3436 = vpack.c.b16 %v3423, %v3422
  %v3437 = vpack.c.b16 %v3425, %v3424
  %v3438 = vpack.c.b16 %v3427, %v3426
  %v3439 = vpack.c.b16 %v3429, %v3428
  %v3440 = vpack.c.b16 %v3431, %v3430
  %v3441 = vpack.c.b16 %v3433, %v3432
  %3450 = vmatpush.bf16.msra.mxu0 %v3441
  %3451 = vmatpush.bf16.msra.mxu0 %v3440
  %3452 = vmatpush.bf16.msra.mxu0 %v3439
  %3453 = vmatpush.bf16.msra.mxu0 %v3438
  %3454 = vmatpush.bf16.msra.mxu0 %v3437
  %3455 = vmatpush.bf16.msra.mxu0 %v3436
  %3456 = vmatpush.bf16.msra.mxu0 %v3435
  %3457 = vmatpush.bf16.msra.mxu0 %v3434
  %3458 = vmatmul.bf16.gmra.mxu0 %v1954
  %v3459 = vpop.f32.mrf.mxu0
  %v3460 = vadd.f32 0.0, %v3459
  %v3461 = vpop.f32.mrf.mxu0
  %3462 = vdwg.mxu0
  %v3479 = vunpack.c.l.b16 %v2124
  %v3480 = vunpack.c.l.b16 %v2125
  %v3481 = vunpack.c.l.b16 %v2126
  %v3482 = vunpack.c.l.b16 %v2127
  %v3483 = vunpack.c.l.b16 %v2128
  %v3484 = vunpack.c.l.b16 %v2129
  %v3485 = vunpack.c.l.b16 %v2130
  %v3486 = vunpack.c.l.b16 %v2131
  %v3487 = vunpack.c.l.b16 %v2132
  %v3488 = vunpack.c.l.b16 %v2133
  %v3489 = vunpack.c.l.b16 %v2134
  %v3490 = vunpack.c.l.b16 %v2135
  %v3491 = vunpack.c.l.b16 %v2136
  %v3492 = vunpack.c.l.b16 %v2137
  %v3493 = vunpack.c.l.b16 %v2138
  %v3494 = vunpack.c.l.b16 %v2139
  %v3495 = vpack.c.b16 %v3480, %v3479
  %v3496 = vpack.c.b16 %v3482, %v3481
  %v3497 = vpack.c.b16 %v3484, %v3483
  %v3498 = vpack.c.b16 %v3486, %v3485
  %v3499 = vpack.c.b16 %v3488, %v3487
  %v3500 = vpack.c.b16 %v3490, %v3489
  %v3501 = vpack.c.b16 %v3492, %v3491
  %v3502 = vpack.c.b16 %v3494, %v3493
  %3511 = vmatpush.bf16.msra.mxu0 %v3502
  %3512 = vmatpush.bf16.msra.mxu0 %v3501
  %3513 = vmatpush.bf16.msra.mxu0 %v3500
  %3514 = vmatpush.bf16.msra.mxu0 %v3499
  %3515 = vmatpush.bf16.msra.mxu0 %v3498
  %3516 = vmatpush.bf16.msra.mxu0 %v3497
  %3517 = vmatpush.bf16.msra.mxu0 %v3496
  %3518 = vmatpush.bf16.msra.mxu0 %v3495
  %3519 = vmatmul.bf16.gmra.mxu0 %v1955
  %v3520 = vpop.f32.mrf.mxu0
  %v3521 = vadd.f32 0.0, %v3520
  %v3522 = vpop.f32.mrf.mxu0
  %3523 = vdwg.mxu0
  %v3540 = vunpack.c.l.b16 %v2140
  %v3541 = vunpack.c.l.b16 %v2141
  %v3542 = vunpack.c.l.b16 %v2142
  %v3543 = vunpack.c.l.b16 %v2143
  %v3544 = vunpack.c.l.b16 %v2144
  %v3545 = vunpack.c.l.b16 %v2145
  %v3546 = vunpack.c.l.b16 %v2146
  %v3547 = vunpack.c.l.b16 %v2147
  %v3548 = vunpack.c.l.b16 %v2148
  %v3549 = vunpack.c.l.b16 %v2149
  %v3550 = vunpack.c.l.b16 %v2150
  %v3551 = vunpack.c.l.b16 %v2151
  %v3552 = vunpack.c.l.b16 %v2152
  %v3553 = vunpack.c.l.b16 %v2153
  %v3554 = vunpack.c.l.b16 %v2154
  %v3555 = vunpack.c.l.b16 %v2155
  %v3556 = vpack.c.b16 %v3541, %v3540
  %v3557 = vpack.c.b16 %v3543, %v3542
  %v3558 = vpack.c.b16 %v3545, %v3544
  %v3559 = vpack.c.b16 %v3547, %v3546
  %v3560 = vpack.c.b16 %v3549, %v3548
  %v3561 = vpack.c.b16 %v3551, %v3550
  %v3562 = vpack.c.b16 %v3553, %v3552
  %v3563 = vpack.c.b16 %v3555, %v3554
  %3572 = vmatpush.bf16.msra.mxu0 %v3563
  %3573 = vmatpush.bf16.msra.mxu0 %v3562
  %3574 = vmatpush.bf16.msra.mxu0 %v3561
  %3575 = vmatpush.bf16.msra.mxu0 %v3560
  %3576 = vmatpush.bf16.msra.mxu0 %v3559
  %3577 = vmatpush.bf16.msra.mxu0 %v3558
  %3578 = vmatpush.bf16.msra.mxu0 %v3557
  %3579 = vmatpush.bf16.msra.mxu0 %v3556
  %3580 = vmatmul.bf16.gmra.mxu0 %v1956
  %v3581 = vpop.f32.mrf.mxu0
  %v3582 = vadd.f32 0.0, %v3581
  %v3583 = vpop.f32.mrf.mxu0
  %3584 = vdwg.mxu0
  %v3601 = vunpack.c.l.b16 %v2156
  %v3602 = vunpack.c.l.b16 %v2157
  %v3603 = vunpack.c.l.b16 %v2158
  %v3604 = vunpack.c.l.b16 %v2159
  %v3605 = vunpack.c.l.b16 %v2160
  %v3606 = vunpack.c.l.b16 %v2161
  %v3607 = vunpack.c.l.b16 %v2162
  %v3608 = vunpack.c.l.b16 %v2163
  %v3609 = vunpack.c.l.b16 %v2164
  %v3610 = vunpack.c.l.b16 %v2165
  %v3611 = vunpack.c.l.b16 %v2166
  %v3612 = vunpack.c.l.b16 %v2167
  %v3613 = vunpack.c.l.b16 %v2168
  %v3614 = vunpack.c.l.b16 %v2169
  %v3615 = vunpack.c.l.b16 %v2170
  %v3616 = vunpack.c.l.b16 %v2171
  %v3617 = vpack.c.b16 %v3602, %v3601
  %v3618 = vpack.c.b16 %v3604, %v3603
  %v3619 = vpack.c.b16 %v3606, %v3605
  %v3620 = vpack.c.b16 %v3608, %v3607
  %v3621 = vpack.c.b16 %v3610, %v3609
  %v3622 = vpack.c.b16 %v3612, %v3611
  %v3623 = vpack.c.b16 %v3614, %v3613
  %v3624 = vpack.c.b16 %v3616, %v3615
  %3633 = vmatpush.bf16.msra.mxu0 %v3624
  %3634 = vmatpush.bf16.msra.mxu0 %v3623
  %3635 = vmatpush.bf16.msra.mxu0 %v3622
  %3636 = vmatpush.bf16.msra.mxu0 %v3621
  %3637 = vmatpush.bf16.msra.mxu0 %v3620
  %3638 = vmatpush.bf16.msra.mxu0 %v3619
  %3639 = vmatpush.bf16.msra.mxu0 %v3618
  %3640 = vmatpush.bf16.msra.mxu0 %v3617
  %3641 = vmatmul.bf16.gmra.mxu0 %v1957
  %v3642 = vpop.f32.mrf.mxu0
  %v3643 = vadd.f32 0.0, %v3642
  %v3644 = vpop.f32.mrf.mxu0
  %3645 = vdwg.mxu0
  %v3662 = vunpack.c.l.b16 %v2172
  %v3663 = vunpack.c.l.b16 %v2173
  %v3664 = vunpack.c.l.b16 %v2174
  %v3665 = vunpack.c.l.b16 %v2175
  %v3666 = vunpack.c.l.b16 %v2176
  %v3667 = vunpack.c.l.b16 %v2177
  %v3668 = vunpack.c.l.b16 %v2178
  %v3669 = vunpack.c.l.b16 %v2179
  %v3670 = vunpack.c.l.b16 %v2180
  %v3671 = vunpack.c.l.b16 %v2181
  %v3672 = vunpack.c.l.b16 %v2182
  %v3673 = vunpack.c.l.b16 %v2183
  %v3674 = vunpack.c.l.b16 %v2184
  %v3675 = vunpack.c.l.b16 %v2185
  %v3676 = vunpack.c.l.b16 %v2186
  %v3677 = vunpack.c.l.b16 %v2187
  %v3678 = vpack.c.b16 %v3663, %v3662
  %v3679 = vpack.c.b16 %v3665, %v3664
  %v3680 = vpack.c.b16 %v3667, %v3666
  %v3681 = vpack.c.b16 %v3669, %v3668
  %v3682 = vpack.c.b16 %v3671, %v3670
  %v3683 = vpack.c.b16 %v3673, %v3672
  %v3684 = vpack.c.b16 %v3675, %v3674
  %v3685 = vpack.c.b16 %v3677, %v3676
  %3694 = vmatpush.bf16.msra.mxu0 %v3685
  %3695 = vmatpush.bf16.msra.mxu0 %v3684
  %3696 = vmatpush.bf16.msra.mxu0 %v3683
  %3697 = vmatpush.bf16.msra.mxu0 %v3682
  %3698 = vmatpush.bf16.msra.mxu0 %v3681
  %3699 = vmatpush.bf16.msra.mxu0 %v3680
  %3700 = vmatpush.bf16.msra.mxu0 %v3679
  %3701 = vmatpush.bf16.msra.mxu0 %v3678
  %3702 = vmatmul.bf16.gmra.mxu0 %v1958
  %v3703 = vpop.f32.mrf.mxu0
  %v3704 = vadd.f32 0.0, %v3703
  %v3705 = vpop.f32.mrf.mxu0
  %3706 = vdwg.mxu0
  %v3723 = vunpack.c.l.b16 %v2188
  %v3724 = vunpack.c.l.b16 %v2189
  %v3725 = vunpack.c.l.b16 %v2190
  %v3726 = vunpack.c.l.b16 %v2191
  %v3727 = vunpack.c.l.b16 %v2192
  %v3728 = vunpack.c.l.b16 %v2193
  %v3729 = vunpack.c.l.b16 %v2194
  %v3730 = vunpack.c.l.b16 %v2195
  %v3731 = vunpack.c.l.b16 %v2196
  %v3732 = vunpack.c.l.b16 %v2197
  %v3733 = vunpack.c.l.b16 %v2198
  %v3734 = vunpack.c.l.b16 %v2199
  %v3735 = vunpack.c.l.b16 %v2200
  %v3736 = vunpack.c.l.b16 %v2201
  %v3737 = vunpack.c.l.b16 %v2202
  %v3738 = vunpack.c.l.b16 %v2203
  %v3739 = vpack.c.b16 %v3724, %v3723
  %v3740 = vpack.c.b16 %v3726, %v3725
  %v3741 = vpack.c.b16 %v3728, %v3727
  %v3742 = vpack.c.b16 %v3730, %v3729
  %v3743 = vpack.c.b16 %v3732, %v3731
  %v3744 = vpack.c.b16 %v3734, %v3733
  %v3745 = vpack.c.b16 %v3736, %v3735
  %v3746 = vpack.c.b16 %v3738, %v3737
  %3755 = vmatpush.bf16.msra.mxu0 %v3746
  %3756 = vmatpush.bf16.msra.mxu0 %v3745
  %3757 = vmatpush.bf16.msra.mxu0 %v3744
  %3758 = vmatpush.bf16.msra.mxu0 %v3743
  %3759 = vmatpush.bf16.msra.mxu0 %v3742
  %3760 = vmatpush.bf16.msra.mxu0 %v3741
  %3761 = vmatpush.bf16.msra.mxu0 %v3740
  %3762 = vmatpush.bf16.msra.mxu0 %v3739
  %3763 = vmatmul.bf16.gmra.mxu0 %v1959
  %v3764 = vpop.f32.mrf.mxu0
  %v3765 = vadd.f32 0.0, %v3764
  %v3766 = vpop.f32.mrf.mxu0
  %3767 = vdwg.mxu0
  %v3784 = vunpack.c.l.b16 %v2204
  %v3785 = vunpack.c.l.b16 %v2205
  %v3786 = vunpack.c.l.b16 %v2206
  %v3787 = vunpack.c.l.b16 %v2207
  %v3788 = vunpack.c.l.b16 %v2208
  %v3789 = vunpack.c.l.b16 %v2209
  %v3790 = vunpack.c.l.b16 %v2210
  %v3791 = vunpack.c.l.b16 %v2211
  %v3792 = vunpack.c.l.b16 %v2212
  %v3793 = vunpack.c.l.b16 %v2213
  %v3794 = vunpack.c.l.b16 %v2214
  %v3795 = vunpack.c.l.b16 %v2215
  %v3796 = vunpack.c.l.b16 %v2216
  %v3797 = vunpack.c.l.b16 %v2217
  %v3798 = vunpack.c.l.b16 %v2218
  %v3799 = vunpack.c.l.b16 %v2219
  %v3800 = vpack.c.b16 %v3785, %v3784
  %v3801 = vpack.c.b16 %v3787, %v3786
  %v3802 = vpack.c.b16 %v3789, %v3788
  %v3803 = vpack.c.b16 %v3791, %v3790
  %v3804 = vpack.c.b16 %v3793, %v3792
  %v3805 = vpack.c.b16 %v3795, %v3794
  %v3806 = vpack.c.b16 %v3797, %v3796
  %v3807 = vpack.c.b16 %v3799, %v3798
  %3816 = vmatpush.bf16.msra.mxu0 %v3807
  %3817 = vmatpush.bf16.msra.mxu0 %v3806
  %3818 = vmatpush.bf16.msra.mxu0 %v3805
  %3819 = vmatpush.bf16.msra.mxu0 %v3804
  %3820 = vmatpush.bf16.msra.mxu0 %v3803
  %3821 = vmatpush.bf16.msra.mxu0 %v3802
  %3822 = vmatpush.bf16.msra.mxu0 %v3801
  %3823 = vmatpush.bf16.msra.mxu0 %v3800
  %3824 = vmatmul.bf16.gmra.mxu0 %v1960
  %v3825 = vpop.f32.mrf.mxu0
  %v3826 = vadd.f32 0.0, %v3825
  %v3827 = vpop.f32.mrf.mxu0
  %3828 = vdwg.mxu0
  %v3845 = vunpack.c.l.b16 %v2220
  %v3846 = vunpack.c.l.b16 %v2221
  %v3847 = vunpack.c.l.b16 %v2222
  %v3848 = vunpack.c.l.b16 %v2223
  %v3849 = vunpack.c.l.b16 %v2224
  %v3850 = vunpack.c.l.b16 %v2225
  %v3851 = vunpack.c.l.b16 %v2226
  %v3852 = vunpack.c.l.b16 %v2227
  %v3853 = vunpack.c.l.b16 %v2228
  %v3854 = vunpack.c.l.b16 %v2229
  %v3855 = vunpack.c.l.b16 %v2230
  %v3856 = vunpack.c.l.b16 %v2231
  %v3857 = vunpack.c.l.b16 %v2232
  %v3858 = vunpack.c.l.b16 %v2233
  %v3859 = vunpack.c.l.b16 %v2234
  %v3860 = vunpack.c.l.b16 %v2235
  %v3861 = vpack.c.b16 %v3846, %v3845
  %v3862 = vpack.c.b16 %v3848, %v3847
  %v3863 = vpack.c.b16 %v3850, %v3849
  %v3864 = vpack.c.b16 %v3852, %v3851
  %v3865 = vpack.c.b16 %v3854, %v3853
  %v3866 = vpack.c.b16 %v3856, %v3855
  %v3867 = vpack.c.b16 %v3858, %v3857
  %v3868 = vpack.c.b16 %v3860, %v3859
  %3877 = vmatpush.bf16.msra.mxu0 %v3868
  %3878 = vmatpush.bf16.msra.mxu0 %v3867
  %3879 = vmatpush.bf16.msra.mxu0 %v3866
  %3880 = vmatpush.bf16.msra.mxu0 %v3865
  %3881 = vmatpush.bf16.msra.mxu0 %v3864
  %3882 = vmatpush.bf16.msra.mxu0 %v3863
  %3883 = vmatpush.bf16.msra.mxu0 %v3862
  %3884 = vmatpush.bf16.msra.mxu0 %v3861
  %3885 = vmatmul.bf16.gmra.mxu0 %v1961
  %v3886 = vpop.f32.mrf.mxu0
  %v3887 = vadd.f32 0.0, %v3886
  %v3888 = vpop.f32.mrf.mxu0
  %3889 = vdwg.mxu0
  %v3906 = vunpack.c.l.b16 %v2236
  %v3907 = vunpack.c.l.b16 %v2237
  %v3908 = vunpack.c.l.b16 %v2238
  %v3909 = vunpack.c.l.b16 %v2239
  %v3910 = vunpack.c.l.b16 %v2240
  %v3911 = vunpack.c.l.b16 %v2241
  %v3912 = vunpack.c.l.b16 %v2242
  %v3913 = vunpack.c.l.b16 %v2243
  %v3914 = vunpack.c.l.b16 %v2244
  %v3915 = vunpack.c.l.b16 %v2245
  %v3916 = vunpack.c.l.b16 %v2246
  %v3917 = vunpack.c.l.b16 %v2247
  %v3918 = vunpack.c.l.b16 %v2248
  %v3919 = vunpack.c.l.b16 %v2249
  %v3920 = vunpack.c.l.b16 %v2250
  %v3921 = vunpack.c.l.b16 %v2251
  %v3922 = vpack.c.b16 %v3907, %v3906
  %v3923 = vpack.c.b16 %v3909, %v3908
  %v3924 = vpack.c.b16 %v3911, %v3910
  %v3925 = vpack.c.b16 %v3913, %v3912
  %v3926 = vpack.c.b16 %v3915, %v3914
  %v3927 = vpack.c.b16 %v3917, %v3916
  %v3928 = vpack.c.b16 %v3919, %v3918
  %v3929 = vpack.c.b16 %v3921, %v3920
  %3938 = vmatpush.bf16.msra.mxu0 %v3929
  %3939 = vmatpush.bf16.msra.mxu0 %v3928
  %3940 = vmatpush.bf16.msra.mxu0 %v3927
  %3941 = vmatpush.bf16.msra.mxu0 %v3926
  %3942 = vmatpush.bf16.msra.mxu0 %v3925
  %3943 = vmatpush.bf16.msra.mxu0 %v3924
  %3944 = vmatpush.bf16.msra.mxu0 %v3923
  %3945 = vmatpush.bf16.msra.mxu0 %v3922
  %3946 = vmatmul.bf16.gmra.mxu0 %v1962
  %v3947 = vpop.f32.mrf.mxu0
  %v3948 = vadd.f32 0.0, %v3947
  %v3949 = vpop.f32.mrf.mxu0
  %3950 = vdwg.mxu0
  %v3967 = vunpack.c.l.b16 %v2252
  %v3968 = vunpack.c.l.b16 %v2253
  %v3969 = vunpack.c.l.b16 %v2254
  %v3970 = vunpack.c.l.b16 %v2255
  %v3971 = vunpack.c.l.b16 %v2256
  %v3972 = vunpack.c.l.b16 %v2257
  %v3973 = vunpack.c.l.b16 %v2258
  %v3974 = vunpack.c.l.b16 %v2259
  %v3975 = vunpack.c.l.b16 %v2260
  %v3976 = vunpack.c.l.b16 %v2261
  %v3977 = vunpack.c.l.b16 %v2262
  %v3978 = vunpack.c.l.b16 %v2263
  %v3979 = vunpack.c.l.b16 %v2264
  %v3980 = vunpack.c.l.b16 %v2265
  %v3981 = vunpack.c.l.b16 %v2266
  %v3982 = vunpack.c.l.b16 %v2267
  %v3983 = vpack.c.b16 %v3968, %v3967
  %v3984 = vpack.c.b16 %v3970, %v3969
  %v3985 = vpack.c.b16 %v3972, %v3971
  %v3986 = vpack.c.b16 %v3974, %v3973
  %v3987 = vpack.c.b16 %v3976, %v3975
  %v3988 = vpack.c.b16 %v3978, %v3977
  %v3989 = vpack.c.b16 %v3980, %v3979
  %v3990 = vpack.c.b16 %v3982, %v3981
  %3999 = vmatpush.bf16.msra.mxu0 %v3990
  %4000 = vmatpush.bf16.msra.mxu0 %v3989
  %4001 = vmatpush.bf16.msra.mxu0 %v3988
  %4002 = vmatpush.bf16.msra.mxu0 %v3987
  %4003 = vmatpush.bf16.msra.mxu0 %v3986
  %4004 = vmatpush.bf16.msra.mxu0 %v3985
  %4005 = vmatpush.bf16.msra.mxu0 %v3984
  %4006 = vmatpush.bf16.msra.mxu0 %v3983
  %4007 = vmatmul.bf16.gmra.mxu0 %v1963
  %v4008 = vpop.f32.mrf.mxu0
  %v4009 = vadd.f32 0.0, %v4008
  %v4010 = vpop.f32.mrf.mxu0
  %4011 = vdwg.mxu0
  %v4028 = vunpack.c.l.b16 %v2268
  %v4029 = vunpack.c.l.b16 %v2269
  %v4030 = vunpack.c.l.b16 %v2270
  %v4031 = vunpack.c.l.b16 %v2271
  %v4032 = vunpack.c.l.b16 %v2272
  %v4033 = vunpack.c.l.b16 %v2273
  %v4034 = vunpack.c.l.b16 %v2274
  %v4035 = vunpack.c.l.b16 %v2275
  %v4036 = vunpack.c.l.b16 %v2276
  %v4037 = vunpack.c.l.b16 %v2277
  %v4038 = vunpack.c.l.b16 %v2278
  %v4039 = vunpack.c.l.b16 %v2279
  %v4040 = vunpack.c.l.b16 %v2280
  %v4041 = vunpack.c.l.b16 %v2281
  %v4042 = vunpack.c.l.b16 %v2282
  %v4043 = vunpack.c.l.b16 %v2283
  %v4044 = vpack.c.b16 %v4029, %v4028
  %v4045 = vpack.c.b16 %v4031, %v4030
  %v4046 = vpack.c.b16 %v4033, %v4032
  %v4047 = vpack.c.b16 %v4035, %v4034
  %v4048 = vpack.c.b16 %v4037, %v4036
  %v4049 = vpack.c.b16 %v4039, %v4038
  %v4050 = vpack.c.b16 %v4041, %v4040
  %v4051 = vpack.c.b16 %v4043, %v4042
  %4060 = vmatpush.bf16.msra.mxu0 %v4051
  %4061 = vmatpush.bf16.msra.mxu0 %v4050
  %4062 = vmatpush.bf16.msra.mxu0 %v4049
  %4063 = vmatpush.bf16.msra.mxu0 %v4048
  %4064 = vmatpush.bf16.msra.mxu0 %v4047
  %4065 = vmatpush.bf16.msra.mxu0 %v4046
  %4066 = vmatpush.bf16.msra.mxu0 %v4045
  %4067 = vmatpush.bf16.msra.mxu0 %v4044
  %4068 = vmatmul.bf16.gmra.mxu0 %v1964
  %v4069 = vpop.f32.mrf.mxu0
  %v4070 = vadd.f32 0.0, %v4069
  %v4071 = vpop.f32.mrf.mxu0
  %4072 = vdwg.mxu0
  %v4089 = vunpack.c.l.b16 %v2284
  %v4090 = vunpack.c.l.b16 %v2285
  %v4091 = vunpack.c.l.b16 %v2286
  %v4092 = vunpack.c.l.b16 %v2287
  %v4093 = vunpack.c.l.b16 %v2288
  %v4094 = vunpack.c.l.b16 %v2289
  %v4095 = vunpack.c.l.b16 %v2290
  %v4096 = vunpack.c.l.b16 %v2291
  %v4097 = vunpack.c.l.b16 %v2292
  %v4098 = vunpack.c.l.b16 %v2293
  %v4099 = vunpack.c.l.b16 %v2294
  %v4100 = vunpack.c.l.b16 %v2295
  %v4101 = vunpack.c.l.b16 %v2296
  %v4102 = vunpack.c.l.b16 %v2297
  %v4103 = vunpack.c.l.b16 %v2298
  %v4104 = vunpack.c.l.b16 %v2299
  %v4105 = vpack.c.b16 %v4090, %v4089
  %v4106 = vpack.c.b16 %v4092, %v4091
  %v4107 = vpack.c.b16 %v4094, %v4093
  %v4108 = vpack.c.b16 %v4096, %v4095
  %v4109 = vpack.c.b16 %v4098, %v4097
  %v4110 = vpack.c.b16 %v4100, %v4099
  %v4111 = vpack.c.b16 %v4102, %v4101
  %v4112 = vpack.c.b16 %v4104, %v4103
  %4121 = vmatpush.bf16.msra.mxu0 %v4112
  %4122 = vmatpush.bf16.msra.mxu0 %v4111
  %4123 = vmatpush.bf16.msra.mxu0 %v4110
  %4124 = vmatpush.bf16.msra.mxu0 %v4109
  %4125 = vmatpush.bf16.msra.mxu0 %v4108
  %4126 = vmatpush.bf16.msra.mxu0 %v4107
  %4127 = vmatpush.bf16.msra.mxu0 %v4106
  %4128 = vmatpush.bf16.msra.mxu0 %v4105
  %4129 = vmatmul.bf16.gmra.mxu0 %v1965
  %v4130 = vpop.f32.mrf.mxu0
  %v4131 = vadd.f32 0.0, %v4130
  %v4132 = vpop.f32.mrf.mxu0
  %4133 = vdwg.mxu0
  %v4150 = vunpack.c.l.b16 %v2300
  %v4151 = vunpack.c.l.b16 %v2301
  %v4152 = vunpack.c.l.b16 %v2302
  %v4153 = vunpack.c.l.b16 %v2303
  %v4154 = vunpack.c.l.b16 %v2304
  %v4155 = vunpack.c.l.b16 %v2305
  %v4156 = vunpack.c.l.b16 %v2306
  %v4157 = vunpack.c.l.b16 %v2307
  %v4158 = vunpack.c.l.b16 %v2308
  %v4159 = vunpack.c.l.b16 %v2309
  %v4160 = vunpack.c.l.b16 %v2310
  %v4161 = vunpack.c.l.b16 %v2311
  %v4162 = vunpack.c.l.b16 %v2312
  %v4163 = vunpack.c.l.b16 %v2313
  %v4164 = vunpack.c.l.b16 %v2314
  %v4165 = vunpack.c.l.b16 %v2315
  %v4166 = vpack.c.b16 %v4151, %v4150
  %v4167 = vpack.c.b16 %v4153, %v4152
  %v4168 = vpack.c.b16 %v4155, %v4154
  %v4169 = vpack.c.b16 %v4157, %v4156
  %v4170 = vpack.c.b16 %v4159, %v4158
  %v4171 = vpack.c.b16 %v4161, %v4160
  %v4172 = vpack.c.b16 %v4163, %v4162
  %v4173 = vpack.c.b16 %v4165, %v4164
  %4182 = vmatpush.bf16.msra.mxu0 %v4173
  %4183 = vmatpush.bf16.msra.mxu0 %v4172
  %4184 = vmatpush.bf16.msra.mxu0 %v4171
  %4185 = vmatpush.bf16.msra.mxu0 %v4170
  %4186 = vmatpush.bf16.msra.mxu0 %v4169
  %4187 = vmatpush.bf16.msra.mxu0 %v4168
  %4188 = vmatpush.bf16.msra.mxu0 %v4167
  %4189 = vmatpush.bf16.msra.mxu0 %v4166
  %4190 = vmatmul.bf16.gmra.mxu0 %v1966
  %v4191 = vpop.f32.mrf.mxu0
  %v4192 = vadd.f32 0.0, %v4191
  %v4193 = vpop.f32.mrf.mxu0
  %4194 = vdwg.mxu0
  %v4211 = vunpack.c.l.b16 %v2316
  %v4212 = vunpack.c.l.b16 %v2317
  %v4213 = vunpack.c.l.b16 %v2318
  %v4214 = vunpack.c.l.b16 %v2319
  %v4215 = vunpack.c.l.b16 %v2320
  %v4216 = vunpack.c.l.b16 %v2321
  %v4217 = vunpack.c.l.b16 %v2322
  %v4218 = vunpack.c.l.b16 %v2323
  %v4219 = vunpack.c.l.b16 %v2324
  %v4220 = vunpack.c.l.b16 %v2325
  %v4221 = vunpack.c.l.b16 %v2326
  %v4222 = vunpack.c.l.b16 %v2327
  %v4223 = vunpack.c.l.b16 %v2328
  %v4224 = vunpack.c.l.b16 %v2329
  %v4225 = vunpack.c.l.b16 %v2330
  %v4226 = vunpack.c.l.b16 %v2331
  %v4227 = vpack.c.b16 %v4212, %v4211
  %v4228 = vpack.c.b16 %v4214, %v4213
  %v4229 = vpack.c.b16 %v4216, %v4215
  %v4230 = vpack.c.b16 %v4218, %v4217
  %v4231 = vpack.c.b16 %v4220, %v4219
  %v4232 = vpack.c.b16 %v4222, %v4221
  %v4233 = vpack.c.b16 %v4224, %v4223
  %v4234 = vpack.c.b16 %v4226, %v4225
  %4243 = vmatpush.bf16.msra.mxu0 %v4234
  %4244 = vmatpush.bf16.msra.mxu0 %v4233
  %4245 = vmatpush.bf16.msra.mxu0 %v4232
  %4246 = vmatpush.bf16.msra.mxu0 %v4231
  %4247 = vmatpush.bf16.msra.mxu0 %v4230
  %4248 = vmatpush.bf16.msra.mxu0 %v4229
  %4249 = vmatpush.bf16.msra.mxu0 %v4228
  %4250 = vmatpush.bf16.msra.mxu0 %v4227
  %4251 = vmatmul.bf16.gmra.mxu0 %v1967
  %v4252 = vpop.f32.mrf.mxu0
  %v4253 = vadd.f32 0.0, %v4252
  %v4254 = vpop.f32.mrf.mxu0
  %4255 = vdwg.mxu0
  %v4272 = vunpack.c.l.b16 %v2332
  %v4273 = vunpack.c.l.b16 %v2333
  %v4274 = vunpack.c.l.b16 %v2334
  %v4275 = vunpack.c.l.b16 %v2335
  %v4276 = vunpack.c.l.b16 %v2336
  %v4277 = vunpack.c.l.b16 %v2337
  %v4278 = vunpack.c.l.b16 %v2338
  %v4279 = vunpack.c.l.b16 %v2339
  %v4280 = vunpack.c.l.b16 %v2340
  %v4281 = vunpack.c.l.b16 %v2341
  %v4282 = vunpack.c.l.b16 %v2342
  %v4283 = vunpack.c.l.b16 %v2343
  %v4284 = vunpack.c.l.b16 %v2344
  %v4285 = vunpack.c.l.b16 %v2345
  %v4286 = vunpack.c.l.b16 %v2346
  %v4287 = vunpack.c.l.b16 %v2347
  %v4288 = vpack.c.b16 %v4273, %v4272
  %v4289 = vpack.c.b16 %v4275, %v4274
  %v4290 = vpack.c.b16 %v4277, %v4276
  %v4291 = vpack.c.b16 %v4279, %v4278
  %v4292 = vpack.c.b16 %v4281, %v4280
  %v4293 = vpack.c.b16 %v4283, %v4282
  %v4294 = vpack.c.b16 %v4285, %v4284
  %v4295 = vpack.c.b16 %v4287, %v4286
  %4304 = vmatpush.bf16.msra.mxu0 %v4295
  %4305 = vmatpush.bf16.msra.mxu0 %v4294
  %4306 = vmatpush.bf16.msra.mxu0 %v4293
  %4307 = vmatpush.bf16.msra.mxu0 %v4292
  %4308 = vmatpush.bf16.msra.mxu0 %v4291
  %4309 = vmatpush.bf16.msra.mxu0 %v4290
  %4310 = vmatpush.bf16.msra.mxu0 %v4289
  %4311 = vmatpush.bf16.msra.mxu0 %v4288
  %4312 = vmatmul.bf16.gmra.mxu0 %v1968
  %v4313 = vpop.f32.mrf.mxu0
  %v4314 = vadd.f32 0.0, %v4313
  %v4315 = vpop.f32.mrf.mxu0
  %4316 = vdwg.mxu0
  %v4333 = vunpack.c.l.b16 %v2348
  %v4334 = vunpack.c.l.b16 %v2349
  %v4335 = vunpack.c.l.b16 %v2350
  %v4336 = vunpack.c.l.b16 %v2351
  %v4337 = vunpack.c.l.b16 %v2352
  %v4338 = vunpack.c.l.b16 %v2353
  %v4339 = vunpack.c.l.b16 %v2354
  %v4340 = vunpack.c.l.b16 %v2355
  %v4341 = vunpack.c.l.b16 %v2356
  %v4342 = vunpack.c.l.b16 %v2357
  %v4343 = vunpack.c.l.b16 %v2358
  %v4344 = vunpack.c.l.b16 %v2359
  %v4345 = vunpack.c.l.b16 %v2360
  %v4346 = vunpack.c.l.b16 %v2361
  %v4347 = vunpack.c.l.b16 %v2362
  %v4348 = vunpack.c.l.b16 %v2363
  %v4349 = vpack.c.b16 %v4334, %v4333
  %v4350 = vpack.c.b16 %v4336, %v4335
  %v4351 = vpack.c.b16 %v4338, %v4337
  %v4352 = vpack.c.b16 %v4340, %v4339
  %v4353 = vpack.c.b16 %v4342, %v4341
  %v4354 = vpack.c.b16 %v4344, %v4343
  %v4355 = vpack.c.b16 %v4346, %v4345
  %v4356 = vpack.c.b16 %v4348, %v4347
  %4365 = vmatpush.bf16.msra.mxu0 %v4356
  %4366 = vmatpush.bf16.msra.mxu0 %v4355
  %4367 = vmatpush.bf16.msra.mxu0 %v4354
  %4368 = vmatpush.bf16.msra.mxu0 %v4353
  %4369 = vmatpush.bf16.msra.mxu0 %v4352
  %4370 = vmatpush.bf16.msra.mxu0 %v4351
  %4371 = vmatpush.bf16.msra.mxu0 %v4350
  %4372 = vmatpush.bf16.msra.mxu0 %v4349
  %4373 = vmatmul.bf16.gmra.mxu0 %v1969
  %v4374 = vpop.f32.mrf.mxu0
  %v4375 = vadd.f32 0.0, %v4374
  %v4376 = vpop.f32.mrf.mxu0
  %4377 = vdwg.mxu0
  %v4394 = vunpack.c.l.b16 %v2364
  %v4395 = vunpack.c.l.b16 %v2365
  %v4396 = vunpack.c.l.b16 %v2366
  %v4397 = vunpack.c.l.b16 %v2367
  %v4398 = vunpack.c.l.b16 %v2368
  %v4399 = vunpack.c.l.b16 %v2369
  %v4400 = vunpack.c.l.b16 %v2370
  %v4401 = vunpack.c.l.b16 %v2371
  %v4402 = vunpack.c.l.b16 %v2372
  %v4403 = vunpack.c.l.b16 %v2373
  %v4404 = vunpack.c.l.b16 %v2374
  %v4405 = vunpack.c.l.b16 %v2375
  %v4406 = vunpack.c.l.b16 %v2376
  %v4407 = vunpack.c.l.b16 %v2377
  %v4408 = vunpack.c.l.b16 %v2378
  %v4409 = vunpack.c.l.b16 %v2379
  %v4410 = vpack.c.b16 %v4395, %v4394
  %v4411 = vpack.c.b16 %v4397, %v4396
  %v4412 = vpack.c.b16 %v4399, %v4398
  %v4413 = vpack.c.b16 %v4401, %v4400
  %v4414 = vpack.c.b16 %v4403, %v4402
  %v4415 = vpack.c.b16 %v4405, %v4404
  %v4416 = vpack.c.b16 %v4407, %v4406
  %v4417 = vpack.c.b16 %v4409, %v4408
  %4426 = vmatpush.bf16.msra.mxu0 %v4417
  %4427 = vmatpush.bf16.msra.mxu0 %v4416
  %4428 = vmatpush.bf16.msra.mxu0 %v4415
  %4429 = vmatpush.bf16.msra.mxu0 %v4414
  %4430 = vmatpush.bf16.msra.mxu0 %v4413
  %4431 = vmatpush.bf16.msra.mxu0 %v4412
  %4432 = vmatpush.bf16.msra.mxu0 %v4411
  %4433 = vmatpush.bf16.msra.mxu0 %v4410
  %4434 = vmatmul.bf16.gmra.mxu0 %v1970
  %v4435 = vpop.f32.mrf.mxu0
  %v4436 = vadd.f32 0.0, %v4435
  %v4437 = vpop.f32.mrf.mxu0
  %4438 = vdwg.mxu0
  %v4455 = vunpack.c.l.b16 %v2380
  %v4456 = vunpack.c.l.b16 %v2381
  %v4457 = vunpack.c.l.b16 %v2382
  %v4458 = vunpack.c.l.b16 %v2383
  %v4459 = vunpack.c.l.b16 %v2384
  %v4460 = vunpack.c.l.b16 %v2385
  %v4461 = vunpack.c.l.b16 %v2386
  %v4462 = vunpack.c.l.b16 %v2387
  %v4463 = vunpack.c.l.b16 %v2388
  %v4464 = vunpack.c.l.b16 %v2389
  %v4465 = vunpack.c.l.b16 %v2390
  %v4466 = vunpack.c.l.b16 %v2391
  %v4467 = vunpack.c.l.b16 %v2392
  %v4468 = vunpack.c.l.b16 %v2393
  %v4469 = vunpack.c.l.b16 %v2394
  %v4470 = vunpack.c.l.b16 %v2395
  %v4471 = vpack.c.b16 %v4456, %v4455
  %v4472 = vpack.c.b16 %v4458, %v4457
  %v4473 = vpack.c.b16 %v4460, %v4459
  %v4474 = vpack.c.b16 %v4462, %v4461
  %v4475 = vpack.c.b16 %v4464, %v4463
  %v4476 = vpack.c.b16 %v4466, %v4465
  %v4477 = vpack.c.b16 %v4468, %v4467
  %v4478 = vpack.c.b16 %v4470, %v4469
  %4487 = vmatpush.bf16.msra.mxu0 %v4478
  %4488 = vmatpush.bf16.msra.mxu0 %v4477
  %4489 = vmatpush.bf16.msra.mxu0 %v4476
  %4490 = vmatpush.bf16.msra.mxu0 %v4475
  %4491 = vmatpush.bf16.msra.mxu0 %v4474
  %4492 = vmatpush.bf16.msra.mxu0 %v4473
  %4493 = vmatpush.bf16.msra.mxu0 %v4472
  %4494 = vmatpush.bf16.msra.mxu0 %v4471
  %4495 = vmatmul.bf16.gmra.mxu0 %v1971
  %v4496 = vpop.f32.mrf.mxu0
  %v4497 = vadd.f32 0.0, %v4496
  %v4498 = vpop.f32.mrf.mxu0
  %4499 = vdwg.mxu0
  %v4516 = vunpack.c.l.b16 %v2396
  %v4517 = vunpack.c.l.b16 %v2397
  %v4518 = vunpack.c.l.b16 %v2398
  %v4519 = vunpack.c.l.b16 %v2399
  %v4520 = vunpack.c.l.b16 %v2400
  %v4521 = vunpack.c.l.b16 %v2401
  %v4522 = vunpack.c.l.b16 %v2402
  %v4523 = vunpack.c.l.b16 %v2403
  %v4524 = vunpack.c.l.b16 %v2404
  %v4525 = vunpack.c.l.b16 %v2405
  %v4526 = vunpack.c.l.b16 %v2406
  %v4527 = vunpack.c.l.b16 %v2407
  %v4528 = vunpack.c.l.b16 %v2408
  %v4529 = vunpack.c.l.b16 %v2409
  %v4530 = vunpack.c.l.b16 %v2410
  %v4531 = vunpack.c.l.b16 %v2411
  %v4532 = vpack.c.b16 %v4517, %v4516
  %v4533 = vpack.c.b16 %v4519, %v4518
  %v4534 = vpack.c.b16 %v4521, %v4520
  %v4535 = vpack.c.b16 %v4523, %v4522
  %v4536 = vpack.c.b16 %v4525, %v4524
  %v4537 = vpack.c.b16 %v4527, %v4526
  %v4538 = vpack.c.b16 %v4529, %v4528
  %v4539 = vpack.c.b16 %v4531, %v4530
  %4548 = vmatpush.bf16.msra.mxu0 %v4539
  %4549 = vmatpush.bf16.msra.mxu0 %v4538
  %4550 = vmatpush.bf16.msra.mxu0 %v4537
  %4551 = vmatpush.bf16.msra.mxu0 %v4536
  %4552 = vmatpush.bf16.msra.mxu0 %v4535
  %4553 = vmatpush.bf16.msra.mxu0 %v4534
  %4554 = vmatpush.bf16.msra.mxu0 %v4533
  %4555 = vmatpush.bf16.msra.mxu0 %v4532
  %4556 = vmatmul.bf16.gmra.mxu0 %v1972
  %v4557 = vpop.f32.mrf.mxu0
  %v4558 = vadd.f32 0.0, %v4557
  %v4559 = vpop.f32.mrf.mxu0
  %4560 = vdwg.mxu0
  %v4577 = vunpack.c.l.b16 %v2412
  %v4578 = vunpack.c.l.b16 %v2413
  %v4579 = vunpack.c.l.b16 %v2414
  %v4580 = vunpack.c.l.b16 %v2415
  %v4581 = vunpack.c.l.b16 %v2416
  %v4582 = vunpack.c.l.b16 %v2417
  %v4583 = vunpack.c.l.b16 %v2418
  %v4584 = vunpack.c.l.b16 %v2419
  %v4585 = vunpack.c.l.b16 %v2420
  %v4586 = vunpack.c.l.b16 %v2421
  %v4587 = vunpack.c.l.b16 %v2422
  %v4588 = vunpack.c.l.b16 %v2423
  %v4589 = vunpack.c.l.b16 %v2424
  %v4590 = vunpack.c.l.b16 %v2425
  %v4591 = vunpack.c.l.b16 %v2426
  %v4592 = vunpack.c.l.b16 %v2427
  %v4593 = vpack.c.b16 %v4578, %v4577
  %v4594 = vpack.c.b16 %v4580, %v4579
  %v4595 = vpack.c.b16 %v4582, %v4581
  %v4596 = vpack.c.b16 %v4584, %v4583
  %v4597 = vpack.c.b16 %v4586, %v4585
  %v4598 = vpack.c.b16 %v4588, %v4587
  %v4599 = vpack.c.b16 %v4590, %v4589
  %v4600 = vpack.c.b16 %v4592, %v4591
  %4609 = vmatpush.bf16.msra.mxu0 %v4600
  %4610 = vmatpush.bf16.msra.mxu0 %v4599
  %4611 = vmatpush.bf16.msra.mxu0 %v4598
  %4612 = vmatpush.bf16.msra.mxu0 %v4597
  %4613 = vmatpush.bf16.msra.mxu0 %v4596
  %4614 = vmatpush.bf16.msra.mxu0 %v4595
  %4615 = vmatpush.bf16.msra.mxu0 %v4594
  %4616 = vmatpush.bf16.msra.mxu0 %v4593
  %4617 = vmatmul.bf16.gmra.mxu0 %v1973
  %v4618 = vpop.f32.mrf.mxu0
  %v4619 = vadd.f32 0.0, %v4618
  %v4620 = vpop.f32.mrf.mxu0
  %4621 = vdwg.mxu0
  %v4638 = vunpack.c.l.b16 %v2428
  %v4639 = vunpack.c.l.b16 %v2429
  %v4640 = vunpack.c.l.b16 %v2430
  %v4641 = vunpack.c.l.b16 %v2431
  %v4642 = vunpack.c.l.b16 %v2432
  %v4643 = vunpack.c.l.b16 %v2433
  %v4644 = vunpack.c.l.b16 %v2434
  %v4645 = vunpack.c.l.b16 %v2435
  %v4646 = vunpack.c.l.b16 %v2436
  %v4647 = vunpack.c.l.b16 %v2437
  %v4648 = vunpack.c.l.b16 %v2438
  %v4649 = vunpack.c.l.b16 %v2439
  %v4650 = vunpack.c.l.b16 %v2440
  %v4651 = vunpack.c.l.b16 %v2441
  %v4652 = vunpack.c.l.b16 %v2442
  %v4653 = vunpack.c.l.b16 %v2443
  %v4654 = vpack.c.b16 %v4639, %v4638
  %v4655 = vpack.c.b16 %v4641, %v4640
  %v4656 = vpack.c.b16 %v4643, %v4642
  %v4657 = vpack.c.b16 %v4645, %v4644
  %v4658 = vpack.c.b16 %v4647, %v4646
  %v4659 = vpack.c.b16 %v4649, %v4648
  %v4660 = vpack.c.b16 %v4651, %v4650
  %v4661 = vpack.c.b16 %v4653, %v4652
  %4670 = vmatpush.bf16.msra.mxu0 %v4661
  %4671 = vmatpush.bf16.msra.mxu0 %v4660
  %4672 = vmatpush.bf16.msra.mxu0 %v4659
  %4673 = vmatpush.bf16.msra.mxu0 %v4658
  %4674 = vmatpush.bf16.msra.mxu0 %v4657
  %4675 = vmatpush.bf16.msra.mxu0 %v4656
  %4676 = vmatpush.bf16.msra.mxu0 %v4655
  %4677 = vmatpush.bf16.msra.mxu0 %v4654
  %4678 = vmatmul.bf16.gmra.mxu0 %v1974
  %v4679 = vpop.f32.mrf.mxu0
  %v4680 = vadd.f32 0.0, %v4679
  %v4681 = vpop.f32.mrf.mxu0
  %4682 = vdwg.mxu0
  %v4699 = vunpack.c.l.b16 %v2444
  %v4700 = vunpack.c.l.b16 %v2445
  %v4701 = vunpack.c.l.b16 %v2446
  %v4702 = vunpack.c.l.b16 %v2447
  %v4703 = vunpack.c.l.b16 %v2448
  %v4704 = vunpack.c.l.b16 %v2449
  %v4705 = vunpack.c.l.b16 %v2450
  %v4706 = vunpack.c.l.b16 %v2451
  %v4707 = vunpack.c.l.b16 %v2452
  %v4708 = vunpack.c.l.b16 %v2453
  %v4709 = vunpack.c.l.b16 %v2454
  %v4710 = vunpack.c.l.b16 %v2455
  %v4711 = vunpack.c.l.b16 %v2456
  %v4712 = vunpack.c.l.b16 %v2457
  %v4713 = vunpack.c.l.b16 %v2458
  %v4714 = vunpack.c.l.b16 %v2459
  %v4715 = vpack.c.b16 %v4700, %v4699
  %v4716 = vpack.c.b16 %v4702, %v4701
  %v4717 = vpack.c.b16 %v4704, %v4703
  %v4718 = vpack.c.b16 %v4706, %v4705
  %v4719 = vpack.c.b16 %v4708, %v4707
  %v4720 = vpack.c.b16 %v4710, %v4709
  %v4721 = vpack.c.b16 %v4712, %v4711
  %v4722 = vpack.c.b16 %v4714, %v4713
  %4731 = vmatpush.bf16.msra.mxu0 %v4722
  %4732 = vmatpush.bf16.msra.mxu0 %v4721
  %4733 = vmatpush.bf16.msra.mxu0 %v4720
  %4734 = vmatpush.bf16.msra.mxu0 %v4719
  %4735 = vmatpush.bf16.msra.mxu0 %v4718
  %4736 = vmatpush.bf16.msra.mxu0 %v4717
  %4737 = vmatpush.bf16.msra.mxu0 %v4716
  %4738 = vmatpush.bf16.msra.mxu0 %v4715
  %4739 = vmatmul.bf16.gmra.mxu0 %v1975
  %v4740 = vpop.f32.mrf.mxu0
  %v4741 = vadd.f32 0.0, %v4740
  %v4742 = vpop.f32.mrf.mxu0
  %4743 = vdwg.mxu0
  %v4760 = vunpack.c.l.b16 %v2460
  %v4761 = vunpack.c.l.b16 %v2461
  %v4762 = vunpack.c.l.b16 %v2462
  %v4763 = vunpack.c.l.b16 %v2463
  %v4764 = vunpack.c.l.b16 %v2464
  %v4765 = vunpack.c.l.b16 %v2465
  %v4766 = vunpack.c.l.b16 %v2466
  %v4767 = vunpack.c.l.b16 %v2467
  %v4768 = vunpack.c.l.b16 %v2468
  %v4769 = vunpack.c.l.b16 %v2469
  %v4770 = vunpack.c.l.b16 %v2470
  %v4771 = vunpack.c.l.b16 %v2471
  %v4772 = vunpack.c.l.b16 %v2472
  %v4773 = vunpack.c.l.b16 %v2473
  %v4774 = vunpack.c.l.b16 %v2474
  %v4775 = vunpack.c.l.b16 %v2475
  %v4776 = vpack.c.b16 %v4761, %v4760
  %v4777 = vpack.c.b16 %v4763, %v4762
  %v4778 = vpack.c.b16 %v4765, %v4764
  %v4779 = vpack.c.b16 %v4767, %v4766
  %v4780 = vpack.c.b16 %v4769, %v4768
  %v4781 = vpack.c.b16 %v4771, %v4770
  %v4782 = vpack.c.b16 %v4773, %v4772
  %v4783 = vpack.c.b16 %v4775, %v4774
  %4792 = vmatpush.bf16.msra.mxu0 %v4783
  %4793 = vmatpush.bf16.msra.mxu0 %v4782
  %4794 = vmatpush.bf16.msra.mxu0 %v4781
  %4795 = vmatpush.bf16.msra.mxu0 %v4780
  %4796 = vmatpush.bf16.msra.mxu0 %v4779
  %4797 = vmatpush.bf16.msra.mxu0 %v4778
  %4798 = vmatpush.bf16.msra.mxu0 %v4777
  %4799 = vmatpush.bf16.msra.mxu0 %v4776
  %4800 = vmatmul.bf16.gmra.mxu0 %v1976
  %v4801 = vpop.f32.mrf.mxu0
  %v4802 = vadd.f32 0.0, %v4801
  %v4803 = vpop.f32.mrf.mxu0
  %4804 = vdwg.mxu0
  %v4821 = vunpack.c.l.b16 %v2476
  %v4822 = vunpack.c.l.b16 %v2477
  %v4823 = vunpack.c.l.b16 %v2478
  %v4824 = vunpack.c.l.b16 %v2479
  %v4825 = vunpack.c.l.b16 %v2480
  %v4826 = vunpack.c.l.b16 %v2481
  %v4827 = vunpack.c.l.b16 %v2482
  %v4828 = vunpack.c.l.b16 %v2483
  %v4829 = vunpack.c.l.b16 %v2484
  %v4830 = vunpack.c.l.b16 %v2485
  %v4831 = vunpack.c.l.b16 %v2486
  %v4832 = vunpack.c.l.b16 %v2487
  %v4833 = vunpack.c.l.b16 %v2488
  %v4834 = vunpack.c.l.b16 %v2489
  %v4835 = vunpack.c.l.b16 %v2490
  %v4836 = vunpack.c.l.b16 %v2491
  %v4837 = vpack.c.b16 %v4822, %v4821
  %v4838 = vpack.c.b16 %v4824, %v4823
  %v4839 = vpack.c.b16 %v4826, %v4825
  %v4840 = vpack.c.b16 %v4828, %v4827
  %v4841 = vpack.c.b16 %v4830, %v4829
  %v4842 = vpack.c.b16 %v4832, %v4831
  %v4843 = vpack.c.b16 %v4834, %v4833
  %v4844 = vpack.c.b16 %v4836, %v4835
  %4853 = vmatpush.bf16.msra.mxu0 %v4844
  %4854 = vmatpush.bf16.msra.mxu0 %v4843
  %4855 = vmatpush.bf16.msra.mxu0 %v4842
  %4856 = vmatpush.bf16.msra.mxu0 %v4841
  %4857 = vmatpush.bf16.msra.mxu0 %v4840
  %4858 = vmatpush.bf16.msra.mxu0 %v4839
  %4859 = vmatpush.bf16.msra.mxu0 %v4838
  %4860 = vmatpush.bf16.msra.mxu0 %v4837
  %4861 = vmatmul.bf16.gmra.mxu0 %v1977
  %v4862 = vpop.f32.mrf.mxu0
  %v4863 = vadd.f32 0.0, %v4862
  %v4864 = vpop.f32.mrf.mxu0
  %4865 = vdwg.mxu0
  %v4882 = vunpack.c.l.b16 %v2492
  %v4883 = vunpack.c.l.b16 %v2493
  %v4884 = vunpack.c.l.b16 %v2494
  %v4885 = vunpack.c.l.b16 %v2495
  %v4886 = vunpack.c.l.b16 %v2496
  %v4887 = vunpack.c.l.b16 %v2497
  %v4888 = vunpack.c.l.b16 %v2498
  %v4889 = vunpack.c.l.b16 %v2499
  %v4890 = vunpack.c.l.b16 %v2500
  %v4891 = vunpack.c.l.b16 %v2501
  %v4892 = vunpack.c.l.b16 %v2502
  %v4893 = vunpack.c.l.b16 %v2503
  %v4894 = vunpack.c.l.b16 %v2504
  %v4895 = vunpack.c.l.b16 %v2505
  %v4896 = vunpack.c.l.b16 %v2506
  %v4897 = vunpack.c.l.b16 %v2507
  %v4898 = vpack.c.b16 %v4883, %v4882
  %v4899 = vpack.c.b16 %v4885, %v4884
  %v4900 = vpack.c.b16 %v4887, %v4886
  %v4901 = vpack.c.b16 %v4889, %v4888
  %v4902 = vpack.c.b16 %v4891, %v4890
  %v4903 = vpack.c.b16 %v4893, %v4892
  %v4904 = vpack.c.b16 %v4895, %v4894
  %v4905 = vpack.c.b16 %v4897, %v4896
  %4914 = vmatpush.bf16.msra.mxu0 %v4905
  %4915 = vmatpush.bf16.msra.mxu0 %v4904
  %4916 = vmatpush.bf16.msra.mxu0 %v4903
  %4917 = vmatpush.bf16.msra.mxu0 %v4902
  %4918 = vmatpush.bf16.msra.mxu0 %v4901
  %4919 = vmatpush.bf16.msra.mxu0 %v4900
  %4920 = vmatpush.bf16.msra.mxu0 %v4899
  %4921 = vmatpush.bf16.msra.mxu0 %v4898
  %4922 = vmatmul.bf16.gmra.mxu0 %v1978
  %v4923 = vpop.f32.mrf.mxu0
  %v4924 = vadd.f32 0.0, %v4923
  %v4925 = vpop.f32.mrf.mxu0
  %4926 = vdwg.mxu0
  %v4943 = vunpack.c.l.b16 %v2508
  %v4944 = vunpack.c.l.b16 %v2509
  %v4945 = vunpack.c.l.b16 %v2510
  %v4946 = vunpack.c.l.b16 %v2511
  %v4947 = vunpack.c.l.b16 %v2512
  %v4948 = vunpack.c.l.b16 %v2513
  %v4949 = vunpack.c.l.b16 %v2514
  %v4950 = vunpack.c.l.b16 %v2515
  %v4951 = vunpack.c.l.b16 %v2516
  %v4952 = vunpack.c.l.b16 %v2517
  %v4953 = vunpack.c.l.b16 %v2518
  %v4954 = vunpack.c.l.b16 %v2519
  %v4955 = vunpack.c.l.b16 %v2520
  %v4956 = vunpack.c.l.b16 %v2521
  %v4957 = vunpack.c.l.b16 %v2522
  %v4958 = vunpack.c.l.b16 %v2523
  %v4959 = vpack.c.b16 %v4944, %v4943
  %v4960 = vpack.c.b16 %v4946, %v4945
  %v4961 = vpack.c.b16 %v4948, %v4947
  %v4962 = vpack.c.b16 %v4950, %v4949
  %v4963 = vpack.c.b16 %v4952, %v4951
  %v4964 = vpack.c.b16 %v4954, %v4953
  %v4965 = vpack.c.b16 %v4956, %v4955
  %v4966 = vpack.c.b16 %v4958, %v4957
  %4975 = vmatpush.bf16.msra.mxu0 %v4966
  %4976 = vmatpush.bf16.msra.mxu0 %v4965
  %4977 = vmatpush.bf16.msra.mxu0 %v4964
  %4978 = vmatpush.bf16.msra.mxu0 %v4963
  %4979 = vmatpush.bf16.msra.mxu0 %v4962
  %4980 = vmatpush.bf16.msra.mxu0 %v4961
  %4981 = vmatpush.bf16.msra.mxu0 %v4960
  %4982 = vmatpush.bf16.msra.mxu0 %v4959
  %4983 = vmatmul.bf16.gmra.mxu0 %v1979
  %v4984 = vpop.f32.mrf.mxu0
  %v4985 = vadd.f32 0.0, %v4984
  %v4986 = vpop.f32.mrf.mxu0
  %4987 = vdwg.mxu0
  %v5004 = vunpack.c.l.b16 %v2524
  %v5005 = vunpack.c.l.b16 %v2525
  %v5006 = vunpack.c.l.b16 %v2526
  %v5007 = vunpack.c.l.b16 %v2527
  %v5008 = vunpack.c.l.b16 %v2528
  %v5009 = vunpack.c.l.b16 %v2529
  %v5010 = vunpack.c.l.b16 %v2530
  %v5011 = vunpack.c.l.b16 %v2531
  %v5012 = vunpack.c.l.b16 %v2532
  %v5013 = vunpack.c.l.b16 %v2533
  %v5014 = vunpack.c.l.b16 %v2534
  %v5015 = vunpack.c.l.b16 %v2535
  %v5016 = vunpack.c.l.b16 %v2536
  %v5017 = vunpack.c.l.b16 %v2537
  %v5018 = vunpack.c.l.b16 %v2538
  %v5019 = vunpack.c.l.b16 %v2539
  %v5020 = vpack.c.b16 %v5005, %v5004
  %v5021 = vpack.c.b16 %v5007, %v5006
  %v5022 = vpack.c.b16 %v5009, %v5008
  %v5023 = vpack.c.b16 %v5011, %v5010
  %v5024 = vpack.c.b16 %v5013, %v5012
  %v5025 = vpack.c.b16 %v5015, %v5014
  %v5026 = vpack.c.b16 %v5017, %v5016
  %v5027 = vpack.c.b16 %v5019, %v5018
  %5036 = vmatpush.bf16.msra.mxu0 %v5027
  %5037 = vmatpush.bf16.msra.mxu0 %v5026
  %5038 = vmatpush.bf16.msra.mxu0 %v5025
  %5039 = vmatpush.bf16.msra.mxu0 %v5024
  %5040 = vmatpush.bf16.msra.mxu0 %v5023
  %5041 = vmatpush.bf16.msra.mxu0 %v5022
  %5042 = vmatpush.bf16.msra.mxu0 %v5021
  %5043 = vmatpush.bf16.msra.mxu0 %v5020
  %5044 = vmatmul.bf16.gmra.mxu0 %v1980
  %v5045 = vpop.f32.mrf.mxu0
  %v5046 = vadd.f32 0.0, %v5045
  %v5047 = vpop.f32.mrf.mxu0
  %5048 = vdwg.mxu0
  %v5065 = vunpack.c.l.b16 %v2540
  %v5066 = vunpack.c.l.b16 %v2541
  %v5067 = vunpack.c.l.b16 %v2542
  %v5068 = vunpack.c.l.b16 %v2543
  %v5069 = vunpack.c.l.b16 %v2544
  %v5070 = vunpack.c.l.b16 %v2545
  %v5071 = vunpack.c.l.b16 %v2546
  %v5072 = vunpack.c.l.b16 %v2547
  %v5073 = vunpack.c.l.b16 %v2548
  %v5074 = vunpack.c.l.b16 %v2549
  %v5075 = vunpack.c.l.b16 %v2550
  %v5076 = vunpack.c.l.b16 %v2551
  %v5077 = vunpack.c.l.b16 %v2552
  %v5078 = vunpack.c.l.b16 %v2553
  %v5079 = vunpack.c.l.b16 %v2554
  %v5080 = vunpack.c.l.b16 %v2555
  %v5081 = vpack.c.b16 %v5066, %v5065
  %v5082 = vpack.c.b16 %v5068, %v5067
  %v5083 = vpack.c.b16 %v5070, %v5069
  %v5084 = vpack.c.b16 %v5072, %v5071
  %v5085 = vpack.c.b16 %v5074, %v5073
  %v5086 = vpack.c.b16 %v5076, %v5075
  %v5087 = vpack.c.b16 %v5078, %v5077
  %v5088 = vpack.c.b16 %v5080, %v5079
  %5097 = vmatpush.bf16.msra.mxu0 %v5088
  %5098 = vmatpush.bf16.msra.mxu0 %v5087
  %5099 = vmatpush.bf16.msra.mxu0 %v5086
  %5100 = vmatpush.bf16.msra.mxu0 %v5085
  %5101 = vmatpush.bf16.msra.mxu0 %v5084
  %5102 = vmatpush.bf16.msra.mxu0 %v5083
  %5103 = vmatpush.bf16.msra.mxu0 %v5082
  %5104 = vmatpush.bf16.msra.mxu0 %v5081
  %5105 = vmatmul.bf16.gmra.mxu0 %v1981
  %v5106 = vpop.f32.mrf.mxu0
  %v5107 = vadd.f32 0.0, %v5106
  %v5108 = vpop.f32.mrf.mxu0
  %5109 = vdwg.mxu0
  %v5126 = vunpack.c.l.b16 %v2556
  %v5127 = vunpack.c.l.b16 %v2557
  %v5128 = vunpack.c.l.b16 %v2558
  %v5129 = vunpack.c.l.b16 %v2559
  %v5130 = vunpack.c.l.b16 %v2560
  %v5131 = vunpack.c.l.b16 %v2561
  %v5132 = vunpack.c.l.b16 %v2562
  %v5133 = vunpack.c.l.b16 %v2563
  %v5134 = vunpack.c.l.b16 %v2564
  %v5135 = vunpack.c.l.b16 %v2565
  %v5136 = vunpack.c.l.b16 %v2566
  %v5137 = vunpack.c.l.b16 %v2567
  %v5138 = vunpack.c.l.b16 %v2568
  %v5139 = vunpack.c.l.b16 %v2569
  %v5140 = vunpack.c.l.b16 %v2570
  %v5141 = vunpack.c.l.b16 %v2571
  %v5142 = vpack.c.b16 %v5127, %v5126
  %v5143 = vpack.c.b16 %v5129, %v5128
  %v5144 = vpack.c.b16 %v5131, %v5130
  %v5145 = vpack.c.b16 %v5133, %v5132
  %v5146 = vpack.c.b16 %v5135, %v5134
  %v5147 = vpack.c.b16 %v5137, %v5136
  %v5148 = vpack.c.b16 %v5139, %v5138
  %v5149 = vpack.c.b16 %v5141, %v5140
  %5158 = vmatpush.bf16.msra.mxu0 %v5149
  %5159 = vmatpush.bf16.msra.mxu0 %v5148
  %5160 = vmatpush.bf16.msra.mxu0 %v5147
  %5161 = vmatpush.bf16.msra.mxu0 %v5146
  %5162 = vmatpush.bf16.msra.mxu0 %v5145
  %5163 = vmatpush.bf16.msra.mxu0 %v5144
  %5164 = vmatpush.bf16.msra.mxu0 %v5143
  %5165 = vmatpush.bf16.msra.mxu0 %v5142
  %5166 = vmatmul.bf16.gmra.mxu0 %v1982
  %v5167 = vpop.f32.mrf.mxu0
  %v5168 = vadd.f32 0.0, %v5167
  %v5169 = vpop.f32.mrf.mxu0
  %5170 = vdwg.mxu0
  %v5187 = vunpack.c.l.b16 %v2572
  %v5188 = vunpack.c.l.b16 %v2573
  %v5189 = vunpack.c.l.b16 %v2574
  %v5190 = vunpack.c.l.b16 %v2575
  %v5191 = vunpack.c.l.b16 %v2576
  %v5192 = vunpack.c.l.b16 %v2577
  %v5193 = vunpack.c.l.b16 %v2578
  %v5194 = vunpack.c.l.b16 %v2579
  %v5195 = vunpack.c.l.b16 %v2580
  %v5196 = vunpack.c.l.b16 %v2581
  %v5197 = vunpack.c.l.b16 %v2582
  %v5198 = vunpack.c.l.b16 %v2583
  %v5199 = vunpack.c.l.b16 %v2584
  %v5200 = vunpack.c.l.b16 %v2585
  %v5201 = vunpack.c.l.b16 %v2586
  %v5202 = vunpack.c.l.b16 %v2587
  %v5203 = vpack.c.b16 %v5188, %v5187
  %v5204 = vpack.c.b16 %v5190, %v5189
  %v5205 = vpack.c.b16 %v5192, %v5191
  %v5206 = vpack.c.b16 %v5194, %v5193
  %v5207 = vpack.c.b16 %v5196, %v5195
  %v5208 = vpack.c.b16 %v5198, %v5197
  %v5209 = vpack.c.b16 %v5200, %v5199
  %v5210 = vpack.c.b16 %v5202, %v5201
  %5219 = vmatpush.bf16.msra.mxu0 %v5210
  %5220 = vmatpush.bf16.msra.mxu0 %v5209
  %5221 = vmatpush.bf16.msra.mxu0 %v5208
  %5222 = vmatpush.bf16.msra.mxu0 %v5207
  %5223 = vmatpush.bf16.msra.mxu0 %v5206
  %5224 = vmatpush.bf16.msra.mxu0 %v5205
  %5225 = vmatpush.bf16.msra.mxu0 %v5204
  %5226 = vmatpush.bf16.msra.mxu0 %v5203
  %5227 = vmatmul.bf16.gmra.mxu0 %v1983
  %v5228 = vpop.f32.mrf.mxu0
  %v5229 = vadd.f32 0.0, %v5228
  %v5230 = vpop.f32.mrf.mxu0
  %5231 = vdwg.mxu0
  %v5248 = vunpack.c.l.b16 %v2588
  %v5249 = vunpack.c.l.b16 %v2589
  %v5250 = vunpack.c.l.b16 %v2590
  %v5251 = vunpack.c.l.b16 %v2591
  %v5252 = vunpack.c.l.b16 %v2592
  %v5253 = vunpack.c.l.b16 %v2593
  %v5254 = vunpack.c.l.b16 %v2594
  %v5255 = vunpack.c.l.b16 %v2595
  %v5256 = vunpack.c.l.b16 %v2596
  %v5257 = vunpack.c.l.b16 %v2597
  %v5258 = vunpack.c.l.b16 %v2598
  %v5259 = vunpack.c.l.b16 %v2599
  %v5260 = vunpack.c.l.b16 %v2600
  %v5261 = vunpack.c.l.b16 %v2601
  %v5262 = vunpack.c.l.b16 %v2602
  %v5263 = vunpack.c.l.b16 %v2603
  %v5264 = vpack.c.b16 %v5249, %v5248
  %v5265 = vpack.c.b16 %v5251, %v5250
  %v5266 = vpack.c.b16 %v5253, %v5252
  %v5267 = vpack.c.b16 %v5255, %v5254
  %v5268 = vpack.c.b16 %v5257, %v5256
  %v5269 = vpack.c.b16 %v5259, %v5258
  %v5270 = vpack.c.b16 %v5261, %v5260
  %v5271 = vpack.c.b16 %v5263, %v5262
  %5280 = vmatpush.bf16.msra.mxu0 %v5271
  %5281 = vmatpush.bf16.msra.mxu0 %v5270
  %5282 = vmatpush.bf16.msra.mxu0 %v5269
  %5283 = vmatpush.bf16.msra.mxu0 %v5268
  %5284 = vmatpush.bf16.msra.mxu0 %v5267
  %5285 = vmatpush.bf16.msra.mxu0 %v5266
  %5286 = vmatpush.bf16.msra.mxu0 %v5265
  %5287 = vmatpush.bf16.msra.mxu0 %v5264
  %5288 = vmatmul.bf16.gmra.mxu0 %v1984
  %v5289 = vpop.f32.mrf.mxu0
  %v5290 = vadd.f32 0.0, %v5289
  %v5291 = vpop.f32.mrf.mxu0
  %5292 = vdwg.mxu0
  %v5309 = vunpack.c.l.b16 %v2604
  %v5310 = vunpack.c.l.b16 %v2605
  %v5311 = vunpack.c.l.b16 %v2606
  %v5312 = vunpack.c.l.b16 %v2607
  %v5313 = vunpack.c.l.b16 %v2608
  %v5314 = vunpack.c.l.b16 %v2609
  %v5315 = vunpack.c.l.b16 %v2610
  %v5316 = vunpack.c.l.b16 %v2611
  %v5317 = vunpack.c.l.b16 %v2612
  %v5318 = vunpack.c.l.b16 %v2613
  %v5319 = vunpack.c.l.b16 %v2614
  %v5320 = vunpack.c.l.b16 %v2615
  %v5321 = vunpack.c.l.b16 %v2616
  %v5322 = vunpack.c.l.b16 %v2617
  %v5323 = vunpack.c.l.b16 %v2618
  %v5324 = vunpack.c.l.b16 %v2619
  %v5325 = vpack.c.b16 %v5310, %v5309
  %v5326 = vpack.c.b16 %v5312, %v5311
  %v5327 = vpack.c.b16 %v5314, %v5313
  %v5328 = vpack.c.b16 %v5316, %v5315
  %v5329 = vpack.c.b16 %v5318, %v5317
  %v5330 = vpack.c.b16 %v5320, %v5319
  %v5331 = vpack.c.b16 %v5322, %v5321
  %v5332 = vpack.c.b16 %v5324, %v5323
  %5341 = vmatpush.bf16.msra.mxu0 %v5332
  %5342 = vmatpush.bf16.msra.mxu0 %v5331
  %5343 = vmatpush.bf16.msra.mxu0 %v5330
  %5344 = vmatpush.bf16.msra.mxu0 %v5329
  %5345 = vmatpush.bf16.msra.mxu0 %v5328
  %5346 = vmatpush.bf16.msra.mxu0 %v5327
  %5347 = vmatpush.bf16.msra.mxu0 %v5326
  %5348 = vmatpush.bf16.msra.mxu0 %v5325
  %5349 = vmatmul.bf16.gmra.mxu0 %v1985
  %v5350 = vpop.f32.mrf.mxu0
  %v5351 = vadd.f32 0.0, %v5350
  %v5352 = vpop.f32.mrf.mxu0
  %5353 = vdwg.mxu0
  %v5370 = vunpack.c.l.b16 %v2620
  %v5371 = vunpack.c.l.b16 %v2621
  %v5372 = vunpack.c.l.b16 %v2622
  %v5373 = vunpack.c.l.b16 %v2623
  %v5374 = vunpack.c.l.b16 %v2624
  %v5375 = vunpack.c.l.b16 %v2625
  %v5376 = vunpack.c.l.b16 %v2626
  %v5377 = vunpack.c.l.b16 %v2627
  %v5378 = vunpack.c.l.b16 %v2628
  %v5379 = vunpack.c.l.b16 %v2629
  %v5380 = vunpack.c.l.b16 %v2630
  %v5381 = vunpack.c.l.b16 %v2631
  %v5382 = vunpack.c.l.b16 %v2632
  %v5383 = vunpack.c.l.b16 %v2633
  %v5384 = vunpack.c.l.b16 %v2634
  %v5385 = vunpack.c.l.b16 %v2635
  %v5386 = vpack.c.b16 %v5371, %v5370
  %v5387 = vpack.c.b16 %v5373, %v5372
  %v5388 = vpack.c.b16 %v5375, %v5374
  %v5389 = vpack.c.b16 %v5377, %v5376
  %v5390 = vpack.c.b16 %v5379, %v5378
  %v5391 = vpack.c.b16 %v5381, %v5380
  %v5392 = vpack.c.b16 %v5383, %v5382
  %v5393 = vpack.c.b16 %v5385, %v5384
  %5402 = vmatpush.bf16.msra.mxu0 %v5393
  %5403 = vmatpush.bf16.msra.mxu0 %v5392
  %5404 = vmatpush.bf16.msra.mxu0 %v5391
  %5405 = vmatpush.bf16.msra.mxu0 %v5390
  %5406 = vmatpush.bf16.msra.mxu0 %v5389
  %5407 = vmatpush.bf16.msra.mxu0 %v5388
  %5408 = vmatpush.bf16.msra.mxu0 %v5387
  %5409 = vmatpush.bf16.msra.mxu0 %v5386
  %5410 = vmatmul.bf16.gmra.mxu0 %v1986
  %v5411 = vpop.f32.mrf.mxu0
  %v5412 = vadd.f32 0.0, %v5411
  %v5413 = vpop.f32.mrf.mxu0
  %5414 = vdwg.mxu0
  %v5431 = vunpack.c.l.b16 %v2636
  %v5432 = vunpack.c.l.b16 %v2637
  %v5433 = vunpack.c.l.b16 %v2638
  %v5434 = vunpack.c.l.b16 %v2639
  %v5435 = vunpack.c.l.b16 %v2640
  %v5436 = vunpack.c.l.b16 %v2641
  %v5437 = vunpack.c.l.b16 %v2642
  %v5438 = vunpack.c.l.b16 %v2643
  %v5439 = vunpack.c.l.b16 %v2644
  %v5440 = vunpack.c.l.b16 %v2645
  %v5441 = vunpack.c.l.b16 %v2646
  %v5442 = vunpack.c.l.b16 %v2647
  %v5443 = vunpack.c.l.b16 %v2648
  %v5444 = vunpack.c.l.b16 %v2649
  %v5445 = vunpack.c.l.b16 %v2650
  %v5446 = vunpack.c.l.b16 %v2651
  %v5447 = vpack.c.b16 %v5432, %v5431
  %v5448 = vpack.c.b16 %v5434, %v5433
  %v5449 = vpack.c.b16 %v5436, %v5435
  %v5450 = vpack.c.b16 %v5438, %v5437
  %v5451 = vpack.c.b16 %v5440, %v5439
  %v5452 = vpack.c.b16 %v5442, %v5441
  %v5453 = vpack.c.b16 %v5444, %v5443
  %v5454 = vpack.c.b16 %v5446, %v5445
  %5463 = vmatpush.bf16.msra.mxu0 %v5454
  %5464 = vmatpush.bf16.msra.mxu0 %v5453
  %5465 = vmatpush.bf16.msra.mxu0 %v5452
  %5466 = vmatpush.bf16.msra.mxu0 %v5451
  %5467 = vmatpush.bf16.msra.mxu0 %v5450
  %5468 = vmatpush.bf16.msra.mxu0 %v5449
  %5469 = vmatpush.bf16.msra.mxu0 %v5448
  %5470 = vmatpush.bf16.msra.mxu0 %v5447
  %5471 = vmatmul.bf16.gmra.mxu0 %v1987
  %v5472 = vpop.f32.mrf.mxu0
  %v5473 = vadd.f32 0.0, %v5472
  %v5474 = vpop.f32.mrf.mxu0
  %5475 = vdwg.mxu0
  %v5492 = vunpack.c.l.b16 %v2652
  %v5493 = vunpack.c.l.b16 %v2653
  %v5494 = vunpack.c.l.b16 %v2654
  %v5495 = vunpack.c.l.b16 %v2655
  %v5496 = vunpack.c.l.b16 %v2656
  %v5497 = vunpack.c.l.b16 %v2657
  %v5498 = vunpack.c.l.b16 %v2658
  %v5499 = vunpack.c.l.b16 %v2659
  %v5500 = vunpack.c.l.b16 %v2660
  %v5501 = vunpack.c.l.b16 %v2661
  %v5502 = vunpack.c.l.b16 %v2662
  %v5503 = vunpack.c.l.b16 %v2663
  %v5504 = vunpack.c.l.b16 %v2664
  %v5505 = vunpack.c.l.b16 %v2665
  %v5506 = vunpack.c.l.b16 %v2666
  %v5507 = vunpack.c.l.b16 %v2667
  %v5508 = vpack.c.b16 %v5493, %v5492
  %v5509 = vpack.c.b16 %v5495, %v5494
  %v5510 = vpack.c.b16 %v5497, %v5496
  %v5511 = vpack.c.b16 %v5499, %v5498
  %v5512 = vpack.c.b16 %v5501, %v5500
  %v5513 = vpack.c.b16 %v5503, %v5502
  %v5514 = vpack.c.b16 %v5505, %v5504
  %v5515 = vpack.c.b16 %v5507, %v5506
  %5524 = vmatpush.bf16.msra.mxu0 %v5515
  %5525 = vmatpush.bf16.msra.mxu0 %v5514
  %5526 = vmatpush.bf16.msra.mxu0 %v5513
  %5527 = vmatpush.bf16.msra.mxu0 %v5512
  %5528 = vmatpush.bf16.msra.mxu0 %v5511
  %5529 = vmatpush.bf16.msra.mxu0 %v5510
  %5530 = vmatpush.bf16.msra.mxu0 %v5509
  %5531 = vmatpush.bf16.msra.mxu0 %v5508
  %5532 = vmatmul.bf16.gmra.mxu0 %v1988
  %v5533 = vpop.f32.mrf.mxu0
  %v5534 = vadd.f32 0.0, %v5533
  %v5535 = vpop.f32.mrf.mxu0
  %5536 = vdwg.mxu0
  %v5553 = vunpack.c.l.b16 %v2668
  %v5554 = vunpack.c.l.b16 %v2669
  %v5555 = vunpack.c.l.b16 %v2670
  %v5556 = vunpack.c.l.b16 %v2671
  %v5557 = vunpack.c.l.b16 %v2672
  %v5558 = vunpack.c.l.b16 %v2673
  %v5559 = vunpack.c.l.b16 %v2674
  %v5560 = vunpack.c.l.b16 %v2675
  %v5561 = vunpack.c.l.b16 %v2676
  %v5562 = vunpack.c.l.b16 %v2677
  %v5563 = vunpack.c.l.b16 %v2678
  %v5564 = vunpack.c.l.b16 %v2679
  %v5565 = vunpack.c.l.b16 %v2680
  %v5566 = vunpack.c.l.b16 %v2681
  %v5567 = vunpack.c.l.b16 %v2682
  %v5568 = vunpack.c.l.b16 %v2683
  %v5569 = vpack.c.b16 %v5554, %v5553
  %v5570 = vpack.c.b16 %v5556, %v5555
  %v5571 = vpack.c.b16 %v5558, %v5557
  %v5572 = vpack.c.b16 %v5560, %v5559
  %v5573 = vpack.c.b16 %v5562, %v5561
  %v5574 = vpack.c.b16 %v5564, %v5563
  %v5575 = vpack.c.b16 %v5566, %v5565
  %v5576 = vpack.c.b16 %v5568, %v5567
  %5585 = vmatpush.bf16.msra.mxu0 %v5576
  %5586 = vmatpush.bf16.msra.mxu0 %v5575
  %5587 = vmatpush.bf16.msra.mxu0 %v5574
  %5588 = vmatpush.bf16.msra.mxu0 %v5573
  %5589 = vmatpush.bf16.msra.mxu0 %v5572
  %5590 = vmatpush.bf16.msra.mxu0 %v5571
  %5591 = vmatpush.bf16.msra.mxu0 %v5570
  %5592 = vmatpush.bf16.msra.mxu0 %v5569
  %5593 = vmatmul.bf16.gmra.mxu0 %v1989
  %v5594 = vpop.f32.mrf.mxu0
  %v5595 = vadd.f32 0.0, %v5594
  %v5596 = vpop.f32.mrf.mxu0
  %5597 = vdwg.mxu0
  %v5614 = vunpack.c.l.b16 %v2684
  %v5615 = vunpack.c.l.b16 %v2685
  %v5616 = vunpack.c.l.b16 %v2686
  %v5617 = vunpack.c.l.b16 %v2687
  %v5618 = vunpack.c.l.b16 %v2688
  %v5619 = vunpack.c.l.b16 %v2689
  %v5620 = vunpack.c.l.b16 %v2690
  %v5621 = vunpack.c.l.b16 %v2691
  %v5622 = vunpack.c.l.b16 %v2692
  %v5623 = vunpack.c.l.b16 %v2693
  %v5624 = vunpack.c.l.b16 %v2694
  %v5625 = vunpack.c.l.b16 %v2695
  %v5626 = vunpack.c.l.b16 %v2696
  %v5627 = vunpack.c.l.b16 %v2697
  %v5628 = vunpack.c.l.b16 %v2698
  %v5629 = vunpack.c.l.b16 %v2699
  %v5630 = vpack.c.b16 %v5615, %v5614
  %v5631 = vpack.c.b16 %v5617, %v5616
  %v5632 = vpack.c.b16 %v5619, %v5618
  %v5633 = vpack.c.b16 %v5621, %v5620
  %v5634 = vpack.c.b16 %v5623, %v5622
  %v5635 = vpack.c.b16 %v5625, %v5624
  %v5636 = vpack.c.b16 %v5627, %v5626
  %v5637 = vpack.c.b16 %v5629, %v5628
  %5646 = vmatpush.bf16.msra.mxu0 %v5637
  %5647 = vmatpush.bf16.msra.mxu0 %v5636
  %5648 = vmatpush.bf16.msra.mxu0 %v5635
  %5649 = vmatpush.bf16.msra.mxu0 %v5634
  %5650 = vmatpush.bf16.msra.mxu0 %v5633
  %5651 = vmatpush.bf16.msra.mxu0 %v5632
  %5652 = vmatpush.bf16.msra.mxu0 %v5631
  %5653 = vmatpush.bf16.msra.mxu0 %v5630
  %5654 = vmatmul.bf16.gmra.mxu0 %v1990
  %v5655 = vpop.f32.mrf.mxu0
  %v5656 = vadd.f32 0.0, %v5655
  %v5657 = vpop.f32.mrf.mxu0
  %5658 = vdwg.mxu0
  %v5675 = vunpack.c.l.b16 %v2700
  %v5676 = vunpack.c.l.b16 %v2701
  %v5677 = vunpack.c.l.b16 %v2702
  %v5678 = vunpack.c.l.b16 %v2703
  %v5679 = vunpack.c.l.b16 %v2704
  %v5680 = vunpack.c.l.b16 %v2705
  %v5681 = vunpack.c.l.b16 %v2706
  %v5682 = vunpack.c.l.b16 %v2707
  %v5683 = vunpack.c.l.b16 %v2708
  %v5684 = vunpack.c.l.b16 %v2709
  %v5685 = vunpack.c.l.b16 %v2710
  %v5686 = vunpack.c.l.b16 %v2711
  %v5687 = vunpack.c.l.b16 %v2712
  %v5688 = vunpack.c.l.b16 %v2713
  %v5689 = vunpack.c.l.b16 %v2714
  %v5690 = vunpack.c.l.b16 %v2715
  %v5691 = vpack.c.b16 %v5676, %v5675
  %v5692 = vpack.c.b16 %v5678, %v5677
  %v5693 = vpack.c.b16 %v5680, %v5679
  %v5694 = vpack.c.b16 %v5682, %v5681
  %v5695 = vpack.c.b16 %v5684, %v5683
  %v5696 = vpack.c.b16 %v5686, %v5685
  %v5697 = vpack.c.b16 %v5688, %v5687
  %v5698 = vpack.c.b16 %v5690, %v5689
  %5707 = vmatpush.bf16.msra.mxu0 %v5698
  %5708 = vmatpush.bf16.msra.mxu0 %v5697
  %5709 = vmatpush.bf16.msra.mxu0 %v5696
  %5710 = vmatpush.bf16.msra.mxu0 %v5695
  %5711 = vmatpush.bf16.msra.mxu0 %v5694
  %5712 = vmatpush.bf16.msra.mxu0 %v5693
  %5713 = vmatpush.bf16.msra.mxu0 %v5692
  %5714 = vmatpush.bf16.msra.mxu0 %v5691
  %5715 = vmatmul.bf16.gmra.mxu0 %v1991
  %v5716 = vpop.f32.mrf.mxu0
  %v5717 = vadd.f32 0.0, %v5716
  %v5718 = vpop.f32.mrf.mxu0
  %5719 = vdwg.mxu0
  %v5736 = vunpack.c.l.b16 %v2716
  %v5737 = vunpack.c.l.b16 %v2717
  %v5738 = vunpack.c.l.b16 %v2718
  %v5739 = vunpack.c.l.b16 %v2719
  %v5740 = vunpack.c.l.b16 %v2720
  %v5741 = vunpack.c.l.b16 %v2721
  %v5742 = vunpack.c.l.b16 %v2722
  %v5743 = vunpack.c.l.b16 %v2723
  %v5744 = vunpack.c.l.b16 %v2724
  %v5745 = vunpack.c.l.b16 %v2725
  %v5746 = vunpack.c.l.b16 %v2726
  %v5747 = vunpack.c.l.b16 %v2727
  %v5748 = vunpack.c.l.b16 %v2728
  %v5749 = vunpack.c.l.b16 %v2729
  %v5750 = vunpack.c.l.b16 %v2730
  %v5751 = vunpack.c.l.b16 %v2731
  %v5752 = vpack.c.b16 %v5737, %v5736
  %v5753 = vpack.c.b16 %v5739, %v5738
  %v5754 = vpack.c.b16 %v5741, %v5740
  %v5755 = vpack.c.b16 %v5743, %v5742
  %v5756 = vpack.c.b16 %v5745, %v5744
  %v5757 = vpack.c.b16 %v5747, %v5746
  %v5758 = vpack.c.b16 %v5749, %v5748
  %v5759 = vpack.c.b16 %v5751, %v5750
  %5768 = vmatpush.bf16.msra.mxu0 %v5759
  %5769 = vmatpush.bf16.msra.mxu0 %v5758
  %5770 = vmatpush.bf16.msra.mxu0 %v5757
  %5771 = vmatpush.bf16.msra.mxu0 %v5756
  %5772 = vmatpush.bf16.msra.mxu0 %v5755
  %5773 = vmatpush.bf16.msra.mxu0 %v5754
  %5774 = vmatpush.bf16.msra.mxu0 %v5753
  %5775 = vmatpush.bf16.msra.mxu0 %v5752
  %5776 = vmatmul.bf16.gmra.mxu0 %v1992
  %v5777 = vpop.f32.mrf.mxu0
  %v5778 = vadd.f32 0.0, %v5777
  %v5779 = vpop.f32.mrf.mxu0
  %5780 = vdwg.mxu0
  %v5797 = vunpack.c.l.b16 %v2732
  %v5798 = vunpack.c.l.b16 %v2733
  %v5799 = vunpack.c.l.b16 %v2734
  %v5800 = vunpack.c.l.b16 %v2735
  %v5801 = vunpack.c.l.b16 %v2736
  %v5802 = vunpack.c.l.b16 %v2737
  %v5803 = vunpack.c.l.b16 %v2738
  %v5804 = vunpack.c.l.b16 %v2739
  %v5805 = vunpack.c.l.b16 %v2740
  %v5806 = vunpack.c.l.b16 %v2741
  %v5807 = vunpack.c.l.b16 %v2742
  %v5808 = vunpack.c.l.b16 %v2743
  %v5809 = vunpack.c.l.b16 %v2744
  %v5810 = vunpack.c.l.b16 %v2745
  %v5811 = vunpack.c.l.b16 %v2746
  %v5812 = vunpack.c.l.b16 %v2747
  %v5813 = vpack.c.b16 %v5798, %v5797
  %v5814 = vpack.c.b16 %v5800, %v5799
  %v5815 = vpack.c.b16 %v5802, %v5801
  %v5816 = vpack.c.b16 %v5804, %v5803
  %v5817 = vpack.c.b16 %v5806, %v5805
  %v5818 = vpack.c.b16 %v5808, %v5807
  %v5819 = vpack.c.b16 %v5810, %v5809
  %v5820 = vpack.c.b16 %v5812, %v5811
  %5829 = vmatpush.bf16.msra.mxu0 %v5820
  %5830 = vmatpush.bf16.msra.mxu0 %v5819
  %5831 = vmatpush.bf16.msra.mxu0 %v5818
  %5832 = vmatpush.bf16.msra.mxu0 %v5817
  %5833 = vmatpush.bf16.msra.mxu0 %v5816
  %5834 = vmatpush.bf16.msra.mxu0 %v5815
  %5835 = vmatpush.bf16.msra.mxu0 %v5814
  %5836 = vmatpush.bf16.msra.mxu0 %v5813
  %5837 = vmatmul.bf16.gmra.mxu0 %v1993
  %v5838 = vpop.f32.mrf.mxu0
  %v5839 = vadd.f32 0.0, %v5838
  %v5840 = vpop.f32.mrf.mxu0
  %5841 = vdwg.mxu0
  %v5858 = vunpack.c.l.b16 %v2748
  %v5859 = vunpack.c.l.b16 %v2749
  %v5860 = vunpack.c.l.b16 %v2750
  %v5861 = vunpack.c.l.b16 %v2751
  %v5862 = vunpack.c.l.b16 %v2752
  %v5863 = vunpack.c.l.b16 %v2753
  %v5864 = vunpack.c.l.b16 %v2754
  %v5865 = vunpack.c.l.b16 %v2755
  %v5866 = vunpack.c.l.b16 %v2756
  %v5867 = vunpack.c.l.b16 %v2757
  %v5868 = vunpack.c.l.b16 %v2758
  %v5869 = vunpack.c.l.b16 %v2759
  %v5870 = vunpack.c.l.b16 %v2760
  %v5871 = vunpack.c.l.b16 %v2761
  %v5872 = vunpack.c.l.b16 %v2762
  %v5873 = vunpack.c.l.b16 %v2763
  %v5874 = vpack.c.b16 %v5859, %v5858
  %v5875 = vpack.c.b16 %v5861, %v5860
  %v5876 = vpack.c.b16 %v5863, %v5862
  %v5877 = vpack.c.b16 %v5865, %v5864
  %v5878 = vpack.c.b16 %v5867, %v5866
  %v5879 = vpack.c.b16 %v5869, %v5868
  %v5880 = vpack.c.b16 %v5871, %v5870
  %v5881 = vpack.c.b16 %v5873, %v5872
  %5890 = vmatpush.bf16.msra.mxu0 %v5881
  %5891 = vmatpush.bf16.msra.mxu0 %v5880
  %5892 = vmatpush.bf16.msra.mxu0 %v5879
  %5893 = vmatpush.bf16.msra.mxu0 %v5878
  %5894 = vmatpush.bf16.msra.mxu0 %v5877
  %5895 = vmatpush.bf16.msra.mxu0 %v5876
  %5896 = vmatpush.bf16.msra.mxu0 %v5875
  %5897 = vmatpush.bf16.msra.mxu0 %v5874
  %5898 = vmatmul.bf16.gmra.mxu0 %v1994
  %v5899 = vpop.f32.mrf.mxu0
  %v5900 = vadd.f32 0.0, %v5899
  %v5901 = vpop.f32.mrf.mxu0
  %5902 = vdwg.mxu0
  %v5919 = vunpack.c.l.b16 %v2764
  %v5920 = vunpack.c.l.b16 %v2765
  %v5921 = vunpack.c.l.b16 %v2766
  %v5922 = vunpack.c.l.b16 %v2767
  %v5923 = vunpack.c.l.b16 %v2768
  %v5924 = vunpack.c.l.b16 %v2769
  %v5925 = vunpack.c.l.b16 %v2770
  %v5926 = vunpack.c.l.b16 %v2771
  %v5927 = vunpack.c.l.b16 %v2772
  %v5928 = vunpack.c.l.b16 %v2773
  %v5929 = vunpack.c.l.b16 %v2774
  %v5930 = vunpack.c.l.b16 %v2775
  %v5931 = vunpack.c.l.b16 %v2776
  %v5932 = vunpack.c.l.b16 %v2777
  %v5933 = vunpack.c.l.b16 %v2778
  %v5934 = vunpack.c.l.b16 %v2779
  %v5935 = vpack.c.b16 %v5920, %v5919
  %v5936 = vpack.c.b16 %v5922, %v5921
  %v5937 = vpack.c.b16 %v5924, %v5923
  %v5938 = vpack.c.b16 %v5926, %v5925
  %v5939 = vpack.c.b16 %v5928, %v5927
  %v5940 = vpack.c.b16 %v5930, %v5929
  %v5941 = vpack.c.b16 %v5932, %v5931
  %v5942 = vpack.c.b16 %v5934, %v5933
  %5951 = vmatpush.bf16.msra.mxu0 %v5942
  %5952 = vmatpush.bf16.msra.mxu0 %v5941
  %5953 = vmatpush.bf16.msra.mxu0 %v5940
  %5954 = vmatpush.bf16.msra.mxu0 %v5939
  %5955 = vmatpush.bf16.msra.mxu0 %v5938
  %5956 = vmatpush.bf16.msra.mxu0 %v5937
  %5957 = vmatpush.bf16.msra.mxu0 %v5936
  %5958 = vmatpush.bf16.msra.mxu0 %v5935
  %5959 = vmatmul.bf16.gmra.mxu0 %v1995
  %v5960 = vpop.f32.mrf.mxu0
  %v5961 = vadd.f32 0.0, %v5960
  %v5962 = vpop.f32.mrf.mxu0
  %5963 = vdwg.mxu0
  %v5980 = vunpack.c.l.b16 %v2780
  %v5981 = vunpack.c.l.b16 %v2781
  %v5982 = vunpack.c.l.b16 %v2782
  %v5983 = vunpack.c.l.b16 %v2783
  %v5984 = vunpack.c.l.b16 %v2784
  %v5985 = vunpack.c.l.b16 %v2785
  %v5986 = vunpack.c.l.b16 %v2786
  %v5987 = vunpack.c.l.b16 %v2787
  %v5988 = vunpack.c.l.b16 %v2788
  %v5989 = vunpack.c.l.b16 %v2789
  %v5990 = vunpack.c.l.b16 %v2790
  %v5991 = vunpack.c.l.b16 %v2791
  %v5992 = vunpack.c.l.b16 %v2792
  %v5993 = vunpack.c.l.b16 %v2793
  %v5994 = vunpack.c.l.b16 %v2794
  %v5995 = vunpack.c.l.b16 %v2795
  %v5996 = vpack.c.b16 %v5981, %v5980
  %v5997 = vpack.c.b16 %v5983, %v5982
  %v5998 = vpack.c.b16 %v5985, %v5984
  %v5999 = vpack.c.b16 %v5987, %v5986
  %v6000 = vpack.c.b16 %v5989, %v5988
  %v6001 = vpack.c.b16 %v5991, %v5990
  %v6002 = vpack.c.b16 %v5993, %v5992
  %v6003 = vpack.c.b16 %v5995, %v5994
  %6012 = vmatpush.bf16.msra.mxu0 %v6003
  %6013 = vmatpush.bf16.msra.mxu0 %v6002
  %6014 = vmatpush.bf16.msra.mxu0 %v6001
  %6015 = vmatpush.bf16.msra.mxu0 %v6000
  %6016 = vmatpush.bf16.msra.mxu0 %v5999
  %6017 = vmatpush.bf16.msra.mxu0 %v5998
  %6018 = vmatpush.bf16.msra.mxu0 %v5997
  %6019 = vmatpush.bf16.msra.mxu0 %v5996
  %6020 = vmatmul.bf16.gmra.mxu0 %v1996
  %v6021 = vpop.f32.mrf.mxu0
  %v6022 = vadd.f32 0.0, %v6021
  %v6023 = vpop.f32.mrf.mxu0
  %6024 = vdwg.mxu0
  %v6041 = vunpack.c.l.b16 %v2796
  %v6042 = vunpack.c.l.b16 %v2797
  %v6043 = vunpack.c.l.b16 %v2798
  %v6044 = vunpack.c.l.b16 %v2799
  %v6045 = vunpack.c.l.b16 %v2800
  %v6046 = vunpack.c.l.b16 %v2801
  %v6047 = vunpack.c.l.b16 %v2802
  %v6048 = vunpack.c.l.b16 %v2803
  %v6049 = vunpack.c.l.b16 %v2804
  %v6050 = vunpack.c.l.b16 %v2805
  %v6051 = vunpack.c.l.b16 %v2806
  %v6052 = vunpack.c.l.b16 %v2807
  %v6053 = vunpack.c.l.b16 %v2808
  %v6054 = vunpack.c.l.b16 %v2809
  %v6055 = vunpack.c.l.b16 %v2810
  %v6056 = vunpack.c.l.b16 %v2811
  %v6057 = vpack.c.b16 %v6042, %v6041
  %v6058 = vpack.c.b16 %v6044, %v6043
  %v6059 = vpack.c.b16 %v6046, %v6045
  %v6060 = vpack.c.b16 %v6048, %v6047
  %v6061 = vpack.c.b16 %v6050, %v6049
  %v6062 = vpack.c.b16 %v6052, %v6051
  %v6063 = vpack.c.b16 %v6054, %v6053
  %v6064 = vpack.c.b16 %v6056, %v6055
  %6073 = vmatpush.bf16.msra.mxu0 %v6064
  %6074 = vmatpush.bf16.msra.mxu0 %v6063
  %6075 = vmatpush.bf16.msra.mxu0 %v6062
  %6076 = vmatpush.bf16.msra.mxu0 %v6061
  %6077 = vmatpush.bf16.msra.mxu0 %v6060
  %6078 = vmatpush.bf16.msra.mxu0 %v6059
  %6079 = vmatpush.bf16.msra.mxu0 %v6058
  %6080 = vmatpush.bf16.msra.mxu0 %v6057
  %6081 = vmatmul.bf16.gmra.mxu0 %v1997
  %v6082 = vpop.f32.mrf.mxu0
  %v6083 = vadd.f32 0.0, %v6082
  %v6084 = vpop.f32.mrf.mxu0
  %6085 = vdwg.mxu0
  %v6102 = vunpack.c.l.b16 %v2812
  %v6103 = vunpack.c.l.b16 %v2813
  %v6104 = vunpack.c.l.b16 %v2814
  %v6105 = vunpack.c.l.b16 %v2815
  %v6106 = vunpack.c.l.b16 %v2816
  %v6107 = vunpack.c.l.b16 %v2817
  %v6108 = vunpack.c.l.b16 %v2818
  %v6109 = vunpack.c.l.b16 %v2819
  %v6110 = vunpack.c.l.b16 %v2820
  %v6111 = vunpack.c.l.b16 %v2821
  %v6112 = vunpack.c.l.b16 %v2822
  %v6113 = vunpack.c.l.b16 %v2823
  %v6114 = vunpack.c.l.b16 %v2824
  %v6115 = vunpack.c.l.b16 %v2825
  %v6116 = vunpack.c.l.b16 %v2826
  %v6117 = vunpack.c.l.b16 %v2827
  %v6118 = vpack.c.b16 %v6103, %v6102
  %v6119 = vpack.c.b16 %v6105, %v6104
  %v6120 = vpack.c.b16 %v6107, %v6106
  %v6121 = vpack.c.b16 %v6109, %v6108
  %v6122 = vpack.c.b16 %v6111, %v6110
  %v6123 = vpack.c.b16 %v6113, %v6112
  %v6124 = vpack.c.b16 %v6115, %v6114
  %v6125 = vpack.c.b16 %v6117, %v6116
  %6134 = vmatpush.bf16.msra.mxu0 %v6125
  %6135 = vmatpush.bf16.msra.mxu0 %v6124
  %6136 = vmatpush.bf16.msra.mxu0 %v6123
  %6137 = vmatpush.bf16.msra.mxu0 %v6122
  %6138 = vmatpush.bf16.msra.mxu0 %v6121
  %6139 = vmatpush.bf16.msra.mxu0 %v6120
  %6140 = vmatpush.bf16.msra.mxu0 %v6119
  %6141 = vmatpush.bf16.msra.mxu0 %v6118
  %6142 = vmatmul.bf16.gmra.mxu0 %v1998
  %v6143 = vpop.f32.mrf.mxu0
  %v6144 = vadd.f32 0.0, %v6143
  %v6145 = vpop.f32.mrf.mxu0
  %6146 = vdwg.mxu0
  %v6163 = vunpack.c.l.b16 %v2828
  %v6164 = vunpack.c.l.b16 %v2829
  %v6165 = vunpack.c.l.b16 %v2830
  %v6166 = vunpack.c.l.b16 %v2831
  %v6167 = vunpack.c.l.b16 %v2832
  %v6168 = vunpack.c.l.b16 %v2833
  %v6169 = vunpack.c.l.b16 %v2834
  %v6170 = vunpack.c.l.b16 %v2835
  %v6171 = vunpack.c.l.b16 %v2836
  %v6172 = vunpack.c.l.b16 %v2837
  %v6173 = vunpack.c.l.b16 %v2838
  %v6174 = vunpack.c.l.b16 %v2839
  %v6175 = vunpack.c.l.b16 %v2840
  %v6176 = vunpack.c.l.b16 %v2841
  %v6177 = vunpack.c.l.b16 %v2842
  %v6178 = vunpack.c.l.b16 %v2843
  %v6179 = vpack.c.b16 %v6164, %v6163
  %v6180 = vpack.c.b16 %v6166, %v6165
  %v6181 = vpack.c.b16 %v6168, %v6167
  %v6182 = vpack.c.b16 %v6170, %v6169
  %v6183 = vpack.c.b16 %v6172, %v6171
  %v6184 = vpack.c.b16 %v6174, %v6173
  %v6185 = vpack.c.b16 %v6176, %v6175
  %v6186 = vpack.c.b16 %v6178, %v6177
  %6195 = vmatpush.bf16.msra.mxu0 %v6186
  %6196 = vmatpush.bf16.msra.mxu0 %v6185
  %6197 = vmatpush.bf16.msra.mxu0 %v6184
  %6198 = vmatpush.bf16.msra.mxu0 %v6183
  %6199 = vmatpush.bf16.msra.mxu0 %v6182
  %6200 = vmatpush.bf16.msra.mxu0 %v6181
  %6201 = vmatpush.bf16.msra.mxu0 %v6180
  %6202 = vmatpush.bf16.msra.mxu0 %v6179
  %6203 = vmatmul.bf16.gmra.mxu0 %v1999
  %v6204 = vpop.f32.mrf.mxu0
  %v6205 = vadd.f32 0.0, %v6204
  %v6206 = vpop.f32.mrf.mxu0
  %6207 = vdwg.mxu0
  %v6224 = vunpack.c.l.b16 %v2844
  %v6225 = vunpack.c.l.b16 %v2845
  %v6226 = vunpack.c.l.b16 %v2846
  %v6227 = vunpack.c.l.b16 %v2847
  %v6228 = vunpack.c.l.b16 %v2848
  %v6229 = vunpack.c.l.b16 %v2849
  %v6230 = vunpack.c.l.b16 %v2850
  %v6231 = vunpack.c.l.b16 %v2851
  %v6232 = vunpack.c.l.b16 %v2852
  %v6233 = vunpack.c.l.b16 %v2853
  %v6234 = vunpack.c.l.b16 %v2854
  %v6235 = vunpack.c.l.b16 %v2855
  %v6236 = vunpack.c.l.b16 %v2856
  %v6237 = vunpack.c.l.b16 %v2857
  %v6238 = vunpack.c.l.b16 %v2858
  %v6239 = vunpack.c.l.b16 %v2859
  %v6240 = vpack.c.b16 %v6225, %v6224
  %v6241 = vpack.c.b16 %v6227, %v6226
  %v6242 = vpack.c.b16 %v6229, %v6228
  %v6243 = vpack.c.b16 %v6231, %v6230
  %v6244 = vpack.c.b16 %v6233, %v6232
  %v6245 = vpack.c.b16 %v6235, %v6234
  %v6246 = vpack.c.b16 %v6237, %v6236
  %v6247 = vpack.c.b16 %v6239, %v6238
  %6256 = vmatpush.bf16.msra.mxu0 %v6247
  %6257 = vmatpush.bf16.msra.mxu0 %v6246
  %6258 = vmatpush.bf16.msra.mxu0 %v6245
  %6259 = vmatpush.bf16.msra.mxu0 %v6244
  %6260 = vmatpush.bf16.msra.mxu0 %v6243
  %6261 = vmatpush.bf16.msra.mxu0 %v6242
  %6262 = vmatpush.bf16.msra.mxu0 %v6241
  %6263 = vmatpush.bf16.msra.mxu0 %v6240
  %6264 = vmatmul.bf16.gmra.mxu0 %v2000
  %v6265 = vpop.f32.mrf.mxu0
  %v6266 = vadd.f32 0.0, %v6265
  %v6267 = vpop.f32.mrf.mxu0
  %6268 = vdwg.mxu0
  %v6285 = vunpack.c.l.b16 %v2860
  %v6286 = vunpack.c.l.b16 %v2861
  %v6287 = vunpack.c.l.b16 %v2862
  %v6288 = vunpack.c.l.b16 %v2863
  %v6289 = vunpack.c.l.b16 %v2864
  %v6290 = vunpack.c.l.b16 %v2865
  %v6291 = vunpack.c.l.b16 %v2866
  %v6292 = vunpack.c.l.b16 %v2867
  %v6293 = vunpack.c.l.b16 %v2868
  %v6294 = vunpack.c.l.b16 %v2869
  %v6295 = vunpack.c.l.b16 %v2870
  %v6296 = vunpack.c.l.b16 %v2871
  %v6297 = vunpack.c.l.b16 %v2872
  %v6298 = vunpack.c.l.b16 %v2873
  %v6299 = vunpack.c.l.b16 %v2874
  %v6300 = vunpack.c.l.b16 %v2875
  %v6301 = vpack.c.b16 %v6286, %v6285
  %v6302 = vpack.c.b16 %v6288, %v6287
  %v6303 = vpack.c.b16 %v6290, %v6289
  %v6304 = vpack.c.b16 %v6292, %v6291
  %v6305 = vpack.c.b16 %v6294, %v6293
  %v6306 = vpack.c.b16 %v6296, %v6295
  %v6307 = vpack.c.b16 %v6298, %v6297
  %v6308 = vpack.c.b16 %v6300, %v6299
  %6317 = vmatpush.bf16.msra.mxu0 %v6308
  %6318 = vmatpush.bf16.msra.mxu0 %v6307
  %6319 = vmatpush.bf16.msra.mxu0 %v6306
  %6320 = vmatpush.bf16.msra.mxu0 %v6305
  %6321 = vmatpush.bf16.msra.mxu0 %v6304
  %6322 = vmatpush.bf16.msra.mxu0 %v6303
  %6323 = vmatpush.bf16.msra.mxu0 %v6302
  %6324 = vmatpush.bf16.msra.mxu0 %v6301
  %6325 = vmatmul.bf16.gmra.mxu0 %v2001
  %v6326 = vpop.f32.mrf.mxu0
  %v6327 = vadd.f32 0.0, %v6326
  %v6328 = vpop.f32.mrf.mxu0
  %6329 = vdwg.mxu0
  %v6346 = vunpack.c.l.b16 %v2876
  %v6347 = vunpack.c.l.b16 %v2877
  %v6348 = vunpack.c.l.b16 %v2878
  %v6349 = vunpack.c.l.b16 %v2879
  %v6350 = vunpack.c.l.b16 %v2880
  %v6351 = vunpack.c.l.b16 %v2881
  %v6352 = vunpack.c.l.b16 %v2882
  %v6353 = vunpack.c.l.b16 %v2883
  %v6354 = vunpack.c.l.b16 %v2884
  %v6355 = vunpack.c.l.b16 %v2885
  %v6356 = vunpack.c.l.b16 %v2886
  %v6357 = vunpack.c.l.b16 %v2887
  %v6358 = vunpack.c.l.b16 %v2888
  %v6359 = vunpack.c.l.b16 %v2889
  %v6360 = vunpack.c.l.b16 %v2890
  %v6361 = vunpack.c.l.b16 %v2891
  %v6362 = vpack.c.b16 %v6347, %v6346
  %v6363 = vpack.c.b16 %v6349, %v6348
  %v6364 = vpack.c.b16 %v6351, %v6350
  %v6365 = vpack.c.b16 %v6353, %v6352
  %v6366 = vpack.c.b16 %v6355, %v6354
  %v6367 = vpack.c.b16 %v6357, %v6356
  %v6368 = vpack.c.b16 %v6359, %v6358
  %v6369 = vpack.c.b16 %v6361, %v6360
  %6378 = vmatpush.bf16.msra.mxu0 %v6369
  %6379 = vmatpush.bf16.msra.mxu0 %v6368
  %6380 = vmatpush.bf16.msra.mxu0 %v6367
  %6381 = vmatpush.bf16.msra.mxu0 %v6366
  %6382 = vmatpush.bf16.msra.mxu0 %v6365
  %6383 = vmatpush.bf16.msra.mxu0 %v6364
  %6384 = vmatpush.bf16.msra.mxu0 %v6363
  %6385 = vmatpush.bf16.msra.mxu0 %v6362
  %6386 = vmatmul.bf16.gmra.mxu0 %v2002
  %v6387 = vpop.f32.mrf.mxu0
  %v6388 = vadd.f32 0.0, %v6387
  %v6389 = vpop.f32.mrf.mxu0
  %6390 = vdwg.mxu0
  %v6407 = vunpack.c.l.b16 %v2892
  %v6408 = vunpack.c.l.b16 %v2893
  %v6409 = vunpack.c.l.b16 %v2894
  %v6410 = vunpack.c.l.b16 %v2895
  %v6411 = vunpack.c.l.b16 %v2896
  %v6412 = vunpack.c.l.b16 %v2897
  %v6413 = vunpack.c.l.b16 %v2898
  %v6414 = vunpack.c.l.b16 %v2899
  %v6415 = vunpack.c.l.b16 %v2900
  %v6416 = vunpack.c.l.b16 %v2901
  %v6417 = vunpack.c.l.b16 %v2902
  %v6418 = vunpack.c.l.b16 %v2903
  %v6419 = vunpack.c.l.b16 %v2904
  %v6420 = vunpack.c.l.b16 %v2905
  %v6421 = vunpack.c.l.b16 %v2906
  %v6422 = vunpack.c.l.b16 %v2907
  %v6423 = vpack.c.b16 %v6408, %v6407
  %v6424 = vpack.c.b16 %v6410, %v6409
  %v6425 = vpack.c.b16 %v6412, %v6411
  %v6426 = vpack.c.b16 %v6414, %v6413
  %v6427 = vpack.c.b16 %v6416, %v6415
  %v6428 = vpack.c.b16 %v6418, %v6417
  %v6429 = vpack.c.b16 %v6420, %v6419
  %v6430 = vpack.c.b16 %v6422, %v6421
  %6439 = vmatpush.bf16.msra.mxu0 %v6430
  %6440 = vmatpush.bf16.msra.mxu0 %v6429
  %6441 = vmatpush.bf16.msra.mxu0 %v6428
  %6442 = vmatpush.bf16.msra.mxu0 %v6427
  %6443 = vmatpush.bf16.msra.mxu0 %v6426
  %6444 = vmatpush.bf16.msra.mxu0 %v6425
  %6445 = vmatpush.bf16.msra.mxu0 %v6424
  %6446 = vmatpush.bf16.msra.mxu0 %v6423
  %6447 = vmatmul.bf16.gmra.mxu0 %v2003
  %v6448 = vpop.f32.mrf.mxu0
  %v6449 = vadd.f32 0.0, %v6448
  %v6450 = vpop.f32.mrf.mxu0
  %6451 = vdwg.mxu0
  %v6468 = vunpack.c.l.b16 %v2908
  %v6469 = vunpack.c.l.b16 %v2909
  %v6470 = vunpack.c.l.b16 %v2910
  %v6471 = vunpack.c.l.b16 %v2911
  %v6472 = vunpack.c.l.b16 %v2912
  %v6473 = vunpack.c.l.b16 %v2913
  %v6474 = vunpack.c.l.b16 %v2914
  %v6475 = vunpack.c.l.b16 %v2915
  %v6476 = vunpack.c.l.b16 %v2916
  %v6477 = vunpack.c.l.b16 %v2917
  %v6478 = vunpack.c.l.b16 %v2918
  %v6479 = vunpack.c.l.b16 %v2919
  %v6480 = vunpack.c.l.b16 %v2920
  %v6481 = vunpack.c.l.b16 %v2921
  %v6482 = vunpack.c.l.b16 %v2922
  %v6483 = vunpack.c.l.b16 %v2923
  %v6484 = vpack.c.b16 %v6469, %v6468
  %v6485 = vpack.c.b16 %v6471, %v6470
  %v6486 = vpack.c.b16 %v6473, %v6472
  %v6487 = vpack.c.b16 %v6475, %v6474
  %v6488 = vpack.c.b16 %v6477, %v6476
  %v6489 = vpack.c.b16 %v6479, %v6478
  %v6490 = vpack.c.b16 %v6481, %v6480
  %v6491 = vpack.c.b16 %v6483, %v6482
  %6500 = vmatpush.bf16.msra.mxu0 %v6491
  %6501 = vmatpush.bf16.msra.mxu0 %v6490
  %6502 = vmatpush.bf16.msra.mxu0 %v6489
  %6503 = vmatpush.bf16.msra.mxu0 %v6488
  %6504 = vmatpush.bf16.msra.mxu0 %v6487
  %6505 = vmatpush.bf16.msra.mxu0 %v6486
  %6506 = vmatpush.bf16.msra.mxu0 %v6485
  %6507 = vmatpush.bf16.msra.mxu0 %v6484
  %6508 = vmatmul.bf16.gmra.mxu0 %v2004
  %v6509 = vpop.f32.mrf.mxu0
  %v6510 = vadd.f32 0.0, %v6509
  %v6511 = vpop.f32.mrf.mxu0
  %6512 = vdwg.mxu0
  %v6529 = vunpack.c.l.b16 %v2924
  %v6530 = vunpack.c.l.b16 %v2925
  %v6531 = vunpack.c.l.b16 %v2926
  %v6532 = vunpack.c.l.b16 %v2927
  %v6533 = vunpack.c.l.b16 %v2928
  %v6534 = vunpack.c.l.b16 %v2929
  %v6535 = vunpack.c.l.b16 %v2930
  %v6536 = vunpack.c.l.b16 %v2931
  %v6537 = vunpack.c.l.b16 %v2932
  %v6538 = vunpack.c.l.b16 %v2933
  %v6539 = vunpack.c.l.b16 %v2934
  %v6540 = vunpack.c.l.b16 %v2935
  %v6541 = vunpack.c.l.b16 %v2936
  %v6542 = vunpack.c.l.b16 %v2937
  %v6543 = vunpack.c.l.b16 %v2938
  %v6544 = vunpack.c.l.b16 %v2939
  %v6545 = vpack.c.b16 %v6530, %v6529
  %v6546 = vpack.c.b16 %v6532, %v6531
  %v6547 = vpack.c.b16 %v6534, %v6533
  %v6548 = vpack.c.b16 %v6536, %v6535
  %v6549 = vpack.c.b16 %v6538, %v6537
  %v6550 = vpack.c.b16 %v6540, %v6539
  %v6551 = vpack.c.b16 %v6542, %v6541
  %v6552 = vpack.c.b16 %v6544, %v6543
  %6561 = vmatpush.bf16.msra.mxu0 %v6552
  %6562 = vmatpush.bf16.msra.mxu0 %v6551
  %6563 = vmatpush.bf16.msra.mxu0 %v6550
  %6564 = vmatpush.bf16.msra.mxu0 %v6549
  %6565 = vmatpush.bf16.msra.mxu0 %v6548
  %6566 = vmatpush.bf16.msra.mxu0 %v6547
  %6567 = vmatpush.bf16.msra.mxu0 %v6546
  %6568 = vmatpush.bf16.msra.mxu0 %v6545
  %6569 = vmatmul.bf16.gmra.mxu0 %v2005
  %v6570 = vpop.f32.mrf.mxu0
  %v6571 = vadd.f32 0.0, %v6570
  %v6572 = vpop.f32.mrf.mxu0
  %6573 = vdwg.mxu0
  %v6590 = vunpack.c.l.b16 %v2940
  %v6591 = vunpack.c.l.b16 %v2941
  %v6592 = vunpack.c.l.b16 %v2942
  %v6593 = vunpack.c.l.b16 %v2943
  %v6594 = vunpack.c.l.b16 %v2944
  %v6595 = vunpack.c.l.b16 %v2945
  %v6596 = vunpack.c.l.b16 %v2946
  %v6597 = vunpack.c.l.b16 %v2947
  %v6598 = vunpack.c.l.b16 %v2948
  %v6599 = vunpack.c.l.b16 %v2949
  %v6600 = vunpack.c.l.b16 %v2950
  %v6601 = vunpack.c.l.b16 %v2951
  %v6602 = vunpack.c.l.b16 %v2952
  %v6603 = vunpack.c.l.b16 %v2953
  %v6604 = vunpack.c.l.b16 %v2954
  %v6605 = vunpack.c.l.b16 %v2955
  %v6606 = vpack.c.b16 %v6591, %v6590
  %v6607 = vpack.c.b16 %v6593, %v6592
  %v6608 = vpack.c.b16 %v6595, %v6594
  %v6609 = vpack.c.b16 %v6597, %v6596
  %v6610 = vpack.c.b16 %v6599, %v6598
  %v6611 = vpack.c.b16 %v6601, %v6600
  %v6612 = vpack.c.b16 %v6603, %v6602
  %v6613 = vpack.c.b16 %v6605, %v6604
  %6622 = vmatpush.bf16.msra.mxu0 %v6613
  %6623 = vmatpush.bf16.msra.mxu0 %v6612
  %6624 = vmatpush.bf16.msra.mxu0 %v6611
  %6625 = vmatpush.bf16.msra.mxu0 %v6610
  %6626 = vmatpush.bf16.msra.mxu0 %v6609
  %6627 = vmatpush.bf16.msra.mxu0 %v6608
  %6628 = vmatpush.bf16.msra.mxu0 %v6607
  %6629 = vmatpush.bf16.msra.mxu0 %v6606
  %6630 = vmatmul.bf16.gmra.mxu0 %v2006
  %v6631 = vpop.f32.mrf.mxu0
  %v6632 = vadd.f32 0.0, %v6631
  %v6633 = vpop.f32.mrf.mxu0
  %6634 = vdwg.mxu0
  %v6651 = vunpack.c.l.b16 %v2956
  %v6652 = vunpack.c.l.b16 %v2957
  %v6653 = vunpack.c.l.b16 %v2958
  %v6654 = vunpack.c.l.b16 %v2959
  %v6655 = vunpack.c.l.b16 %v2960
  %v6656 = vunpack.c.l.b16 %v2961
  %v6657 = vunpack.c.l.b16 %v2962
  %v6658 = vunpack.c.l.b16 %v2963
  %v6659 = vunpack.c.l.b16 %v2964
  %v6660 = vunpack.c.l.b16 %v2965
  %v6661 = vunpack.c.l.b16 %v2966
  %v6662 = vunpack.c.l.b16 %v2967
  %v6663 = vunpack.c.l.b16 %v2968
  %v6664 = vunpack.c.l.b16 %v2969
  %v6665 = vunpack.c.l.b16 %v2970
  %v6666 = vunpack.c.l.b16 %v2971
  %v6667 = vpack.c.b16 %v6652, %v6651
  %v6668 = vpack.c.b16 %v6654, %v6653
  %v6669 = vpack.c.b16 %v6656, %v6655
  %v6670 = vpack.c.b16 %v6658, %v6657
  %v6671 = vpack.c.b16 %v6660, %v6659
  %v6672 = vpack.c.b16 %v6662, %v6661
  %v6673 = vpack.c.b16 %v6664, %v6663
  %v6674 = vpack.c.b16 %v6666, %v6665
  %6683 = vmatpush.bf16.msra.mxu0 %v6674
  %6684 = vmatpush.bf16.msra.mxu0 %v6673
  %6685 = vmatpush.bf16.msra.mxu0 %v6672
  %6686 = vmatpush.bf16.msra.mxu0 %v6671
  %6687 = vmatpush.bf16.msra.mxu0 %v6670
  %6688 = vmatpush.bf16.msra.mxu0 %v6669
  %6689 = vmatpush.bf16.msra.mxu0 %v6668
  %6690 = vmatpush.bf16.msra.mxu0 %v6667
  %6691 = vmatmul.bf16.gmra.mxu0 %v2007
  %v6692 = vpop.f32.mrf.mxu0
  %v6693 = vadd.f32 0.0, %v6692
  %v6694 = vpop.f32.mrf.mxu0
  %6695 = vdwg.mxu0
  %v6712 = vunpack.c.l.b16 %v2972
  %v6713 = vunpack.c.l.b16 %v2973
  %v6714 = vunpack.c.l.b16 %v2974
  %v6715 = vunpack.c.l.b16 %v2975
  %v6716 = vunpack.c.l.b16 %v2976
  %v6717 = vunpack.c.l.b16 %v2977
  %v6718 = vunpack.c.l.b16 %v2978
  %v6719 = vunpack.c.l.b16 %v2979
  %v6720 = vunpack.c.l.b16 %v2980
  %v6721 = vunpack.c.l.b16 %v2981
  %v6722 = vunpack.c.l.b16 %v2982
  %v6723 = vunpack.c.l.b16 %v2983
  %v6724 = vunpack.c.l.b16 %v2984
  %v6725 = vunpack.c.l.b16 %v2985
  %v6726 = vunpack.c.l.b16 %v2986
  %v6727 = vunpack.c.l.b16 %v2987
  %v6728 = vpack.c.b16 %v6713, %v6712
  %v6729 = vpack.c.b16 %v6715, %v6714
  %v6730 = vpack.c.b16 %v6717, %v6716
  %v6731 = vpack.c.b16 %v6719, %v6718
  %v6732 = vpack.c.b16 %v6721, %v6720
  %v6733 = vpack.c.b16 %v6723, %v6722
  %v6734 = vpack.c.b16 %v6725, %v6724
  %v6735 = vpack.c.b16 %v6727, %v6726
  %6744 = vmatpush.bf16.msra.mxu0 %v6735
  %6745 = vmatpush.bf16.msra.mxu0 %v6734
  %6746 = vmatpush.bf16.msra.mxu0 %v6733
  %6747 = vmatpush.bf16.msra.mxu0 %v6732
  %6748 = vmatpush.bf16.msra.mxu0 %v6731
  %6749 = vmatpush.bf16.msra.mxu0 %v6730
  %6750 = vmatpush.bf16.msra.mxu0 %v6729
  %6751 = vmatpush.bf16.msra.mxu0 %v6728
  %6752 = vmatmul.bf16.gmra.mxu0 %v2008
  %v6753 = vpop.f32.mrf.mxu0
  %v6754 = vadd.f32 0.0, %v6753
  %v6755 = vpop.f32.mrf.mxu0
  %6756 = vdwg.mxu0
  %v6773 = vunpack.c.l.b16 %v2988
  %v6774 = vunpack.c.l.b16 %v2989
  %v6775 = vunpack.c.l.b16 %v2990
  %v6776 = vunpack.c.l.b16 %v2991
  %v6777 = vunpack.c.l.b16 %v2992
  %v6778 = vunpack.c.l.b16 %v2993
  %v6779 = vunpack.c.l.b16 %v2994
  %v6780 = vunpack.c.l.b16 %v2995
  %v6781 = vunpack.c.l.b16 %v2996
  %v6782 = vunpack.c.l.b16 %v2997
  %v6783 = vunpack.c.l.b16 %v2998
  %v6784 = vunpack.c.l.b16 %v2999
  %v6785 = vunpack.c.l.b16 %v3000
  %v6786 = vunpack.c.l.b16 %v3001
  %v6787 = vunpack.c.l.b16 %v3002
  %v6788 = vunpack.c.l.b16 %v3003
  %v6789 = vpack.c.b16 %v6774, %v6773
  %v6790 = vpack.c.b16 %v6776, %v6775
  %v6791 = vpack.c.b16 %v6778, %v6777
  %v6792 = vpack.c.b16 %v6780, %v6779
  %v6793 = vpack.c.b16 %v6782, %v6781
  %v6794 = vpack.c.b16 %v6784, %v6783
  %v6795 = vpack.c.b16 %v6786, %v6785
  %v6796 = vpack.c.b16 %v6788, %v6787
  %6805 = vmatpush.bf16.msra.mxu0 %v6796
  %6806 = vmatpush.bf16.msra.mxu0 %v6795
  %6807 = vmatpush.bf16.msra.mxu0 %v6794
  %6808 = vmatpush.bf16.msra.mxu0 %v6793
  %6809 = vmatpush.bf16.msra.mxu0 %v6792
  %6810 = vmatpush.bf16.msra.mxu0 %v6791
  %6811 = vmatpush.bf16.msra.mxu0 %v6790
  %6812 = vmatpush.bf16.msra.mxu0 %v6789
  %6813 = vmatmul.bf16.gmra.mxu0 %v2009
  %v6814 = vpop.f32.mrf.mxu0
  %v6815 = vadd.f32 0.0, %v6814
  %v6816 = vpop.f32.mrf.mxu0
  %6817 = vdwg.mxu0
  %v6834 = vunpack.c.l.b16 %v3004
  %v6835 = vunpack.c.l.b16 %v3005
  %v6836 = vunpack.c.l.b16 %v3006
  %v6837 = vunpack.c.l.b16 %v3007
  %v6838 = vunpack.c.l.b16 %v3008
  %v6839 = vunpack.c.l.b16 %v3009
  %v6840 = vunpack.c.l.b16 %v3010
  %v6841 = vunpack.c.l.b16 %v3011
  %v6842 = vunpack.c.l.b16 %v3012
  %v6843 = vunpack.c.l.b16 %v3013
  %v6844 = vunpack.c.l.b16 %v3014
  %v6845 = vunpack.c.l.b16 %v3015
  %v6846 = vunpack.c.l.b16 %v3016
  %v6847 = vunpack.c.l.b16 %v3017
  %v6848 = vunpack.c.l.b16 %v3018
  %v6849 = vunpack.c.l.b16 %v3019
  %v6850 = vpack.c.b16 %v6835, %v6834
  %v6851 = vpack.c.b16 %v6837, %v6836
  %v6852 = vpack.c.b16 %v6839, %v6838
  %v6853 = vpack.c.b16 %v6841, %v6840
  %v6854 = vpack.c.b16 %v6843, %v6842
  %v6855 = vpack.c.b16 %v6845, %v6844
  %v6856 = vpack.c.b16 %v6847, %v6846
  %v6857 = vpack.c.b16 %v6849, %v6848
  %6866 = vmatpush.bf16.msra.mxu0 %v6857
  %6867 = vmatpush.bf16.msra.mxu0 %v6856
  %6868 = vmatpush.bf16.msra.mxu0 %v6855
  %6869 = vmatpush.bf16.msra.mxu0 %v6854
  %6870 = vmatpush.bf16.msra.mxu0 %v6853
  %6871 = vmatpush.bf16.msra.mxu0 %v6852
  %6872 = vmatpush.bf16.msra.mxu0 %v6851
  %6873 = vmatpush.bf16.msra.mxu0 %v6850
  %6874 = vmatmul.bf16.gmra.mxu0 %v2010
  %v6875 = vpop.f32.mrf.mxu0
  %v6876 = vadd.f32 0.0, %v6875
  %v6877 = vpop.f32.mrf.mxu0
  %6878 = vdwg.mxu0
  %v6895 = vunpack.c.l.b16 %v3020
  %v6896 = vunpack.c.l.b16 %v3021
  %v6897 = vunpack.c.l.b16 %v3022
  %v6898 = vunpack.c.l.b16 %v3023
  %v6899 = vunpack.c.l.b16 %v3024
  %v6900 = vunpack.c.l.b16 %v3025
  %v6901 = vunpack.c.l.b16 %v3026
  %v6902 = vunpack.c.l.b16 %v3027
  %v6903 = vunpack.c.l.b16 %v3028
  %v6904 = vunpack.c.l.b16 %v3029
  %v6905 = vunpack.c.l.b16 %v3030
  %v6906 = vunpack.c.l.b16 %v3031
  %v6907 = vunpack.c.l.b16 %v3032
  %v6908 = vunpack.c.l.b16 %v3033
  %v6909 = vunpack.c.l.b16 %v3034
  %v6910 = vunpack.c.l.b16 %v3035
  %v6911 = vpack.c.b16 %v6896, %v6895
  %v6912 = vpack.c.b16 %v6898, %v6897
  %v6913 = vpack.c.b16 %v6900, %v6899
  %v6914 = vpack.c.b16 %v6902, %v6901
  %v6915 = vpack.c.b16 %v6904, %v6903
  %v6916 = vpack.c.b16 %v6906, %v6905
  %v6917 = vpack.c.b16 %v6908, %v6907
  %v6918 = vpack.c.b16 %v6910, %v6909
  %6927 = vmatpush.bf16.msra.mxu0 %v6918
  %6928 = vmatpush.bf16.msra.mxu0 %v6917
  %6929 = vmatpush.bf16.msra.mxu0 %v6916
  %6930 = vmatpush.bf16.msra.mxu0 %v6915
  %6931 = vmatpush.bf16.msra.mxu0 %v6914
  %6932 = vmatpush.bf16.msra.mxu0 %v6913
  %6933 = vmatpush.bf16.msra.mxu0 %v6912
  %6934 = vmatpush.bf16.msra.mxu0 %v6911
  %6935 = vmatmul.bf16.gmra.mxu0 %v2011
  %v6936 = vpop.f32.mrf.mxu0
  %v6937 = vadd.f32 0.0, %v6936
  %v6938 = vpop.f32.mrf.mxu0
  %6939 = vdwg.mxu0
  %v6940 = vadd.f32 %v3094, %v3155
  %v6941 = vadd.f32 %v6940, %v3216
  %v6942 = vadd.f32 %v6941, %v3277
  %v6943 = vadd.f32 %v6942, %v3338
  %v6944 = vadd.f32 %v6943, %v3399
  %v6945 = vadd.f32 %v6944, %v3460
  %v6946 = vadd.f32 %v6945, %v3521
  %v6947 = vadd.f32 %v6946, %v3582
  %v6948 = vadd.f32 %v6947, %v3643
  %v6949 = vadd.f32 %v6948, %v3704
  %v6950 = vadd.f32 %v6949, %v3765
  %v6951 = vadd.f32 %v6950, %v3826
  %v6952 = vadd.f32 %v6951, %v3887
  %v6953 = vadd.f32 %v6952, %v3948
  %v6954 = vadd.f32 %v6953, %v4009
  %v6955 = vadd.f32 %v6954, %v4070
  %v6956 = vadd.f32 %v6955, %v4131
  %v6957 = vadd.f32 %v6956, %v4192
  %v6958 = vadd.f32 %v6957, %v4253
  %v6959 = vadd.f32 %v6958, %v4314
  %v6960 = vadd.f32 %v6959, %v4375
  %v6961 = vadd.f32 %v6960, %v4436
  %v6962 = vadd.f32 %v6961, %v4497
  %v6963 = vadd.f32 %v6962, %v4558
  %v6964 = vadd.f32 %v6963, %v4619
  %v6965 = vadd.f32 %v6964, %v4680
  %v6966 = vadd.f32 %v6965, %v4741
  %v6967 = vadd.f32 %v6966, %v4802
  %v6968 = vadd.f32 %v6967, %v4863
  %v6969 = vadd.f32 %v6968, %v4924
  %v6970 = vadd.f32 %v6969, %v4985
  %v6971 = vadd.f32 %v6970, %v5046
  %v6972 = vadd.f32 %v6971, %v5107
  %v6973 = vadd.f32 %v6972, %v5168
  %v6974 = vadd.f32 %v6973, %v5229
  %v6975 = vadd.f32 %v6974, %v5290
  %v6976 = vadd.f32 %v6975, %v5351
  %v6977 = vadd.f32 %v6976, %v5412
  %v6978 = vadd.f32 %v6977, %v5473
  %v6979 = vadd.f32 %v6978, %v5534
  %v6980 = vadd.f32 %v6979, %v5595
  %v6981 = vadd.f32 %v6980, %v5656
  %v6982 = vadd.f32 %v6981, %v5717
  %v6983 = vadd.f32 %v6982, %v5778
  %v6984 = vadd.f32 %v6983, %v5839
  %v6985 = vadd.f32 %v6984, %v5900
  %v6986 = vadd.f32 %v6985, %v5961
  %v6987 = vadd.f32 %v6986, %v6022
  %v6988 = vadd.f32 %v6987, %v6083
  %v6989 = vadd.f32 %v6988, %v6144
  %v6990 = vadd.f32 %v6989, %v6205
  %v6991 = vadd.f32 %v6990, %v6266
  %v6992 = vadd.f32 %v6991, %v6327
  %v6993 = vadd.f32 %v6992, %v6388
  %v6994 = vadd.f32 %v6993, %v6449
  %v6995 = vadd.f32 %v6994, %v6510
  %v6996 = vadd.f32 %v6995, %v6571
  %v6997 = vadd.f32 %v6996, %v6632
  %v6998 = vadd.f32 %v6997, %v6693
  %v6999 = vadd.f32 %v6998, %v6754
  %v7000 = vadd.f32 %v6999, %v6815
  %v7001 = vadd.f32 %v7000, %v6876
  %v7002 = vadd.f32 %v7001, %v6937
  %v7003 = vld [vmem:[%s4] sm:$0x1]
  %v7005 = vperm.slane %v7003, 0
  %v7007 = vadd.f32 %v7002, %v7005
  %v7008 = vld [vmem:[%s5] sm:$0xff]
  %v7009 = vld [vmem:[%s5 + $0x8] sm:$0xff]
  %v7010 = vld [vmem:[%s5 + $0x10] sm:$0xff]
  %v7011 = vld [vmem:[%s5 + $0x18] sm:$0xff]
  %v7012 = vld [vmem:[%s5 + $0x20] sm:$0xff]
  %v7013 = vld [vmem:[%s5 + $0x28] sm:$0xff]
  %v7014 = vld [vmem:[%s5 + $0x30] sm:$0xff]
  %v7015 = vld [vmem:[%s5 + $0x38] sm:$0xff]
  %v7016 = vld [vmem:[%s5 + $0x40] sm:$0xff]
  %v7017 = vld [vmem:[%s5 + $0x48] sm:$0xff]
  %v7018 = vld [vmem:[%s5 + $0x50] sm:$0xff]
  %v7019 = vld [vmem:[%s5 + $0x58] sm:$0xff]
  %v7020 = vld [vmem:[%s5 + $0x60] sm:$0xff]
  %v7021 = vld [vmem:[%s5 + $0x68] sm:$0xff]
  %v7022 = vld [vmem:[%s5 + $0x70] sm:$0xff]
  %v7023 = vld [vmem:[%s5 + $0x78] sm:$0xff]
  %v7024 = vld [vmem:[%s6] sm:$0x1]
  %v7026 = vperm.slane %v7024, 0
  %7028 = vmatpush.msra.mxu0 %v7023
  %7029 = vmatpush.msra.mxu0 %v7022
  %7030 = vmatpush.msra.mxu0 %v7021
  %7031 = vmatpush.msra.mxu0 %v7020
  %7032 = vmatpush.msra.mxu0 %v7019
  %7033 = vmatpush.msra.mxu0 %v7018
  %7034 = vmatpush.msra.mxu0 %v7017
  %7035 = vmatpush.msra.mxu0 %v7016
  %7036 = vmatpush.msra.mxu0 %v7015
  %7037 = vmatpush.msra.mxu0 %v7014
  %7038 = vmatpush.msra.mxu0 %v7013
  %7039 = vmatpush.msra.mxu0 %v7012
  %7040 = vmatpush.msra.mxu0 %v7011
  %7041 = vmatpush.msra.mxu0 %v7010
  %7042 = vmatpush.msra.mxu0 %v7009
  %7043 = vmatpush.msra.mxu0 %v7008
  %7044 = vmatmul.f32.gmra.mxu0 %v7007
  %v7045 = vpop.f32.mrf.mxu0
  %v7046 = vadd.f32 %v7026, %v7045
  %7047 = vdwg.mxu0
  %v7048 = vadd.f32 %v7046, 1.0
  %v7049 = vmul.f32 %v7046, 0.5
  %v7050 = vmul.f32 %v7049, %v7046
  %v7051 = vadd.f32 %v7048, %v7050
  %v7052 = vlaneseq
  %v7053 = vand.u32 %v7052, 127
  %vm7054 = vcmp.lt.s32.totalorder %v7053, 10
  %v7055 = vsel %vm7054, %v7051, 0.0
  %7056 = vadd.xlane.f32.xlu0 %v7055
  %v7057 = vpop.xlane.xlu0 %7056
  %v7058 = vrcp.pop %v7057
  %v7059 = vmul.f32 %v7057, %v7058
  %v7060 = vsub.f32 1.0, %v7059
  %v7061 = vmul.f32 %v7058, %v7060
  %v7062 = vadd.f32 %v7058, %v7061
  %vm7063 = vweird.f32 %v7057
  %vm7064 = vweird.f32 %v7058
  %vm7065 = vmor %vm7063, %vm7064
  %v7066 = vsel %vm7065, %v7058, %v7062
  %v7067 = vand.u32 2147483647, %v7057
  %vm7068 = vcmp.eq.f32.partialorder %v7067, 8.507059e+37
  %v7069 = vand.u32 %v7057, 2147483648
  %v7070 = vor.u32 1.1754944e-38, %v7069
  %v7071 = vsel %vm7068, %v7070, %v7066
  %v7072 = vmul.f32 %v7055, %v7071
  %7073 = vst [vmem:[%s7] sm:$0xff] %v7072
  // Predicated region
  $region30: #{small_net2_forward.1} parent=0 // pred_check
    _
  $region31: #{small_net2_forward.1} parent=0 // pred_check_branch
    %7075 = sbr.rel (0) target = $region33
  $region32: #{small_net2_forward.1} parent=0 // pred_region
    _
  $region33: #{small_net2_forward.1} parent=0 // pred_fallthru
    _
  // Predicated region
  $region34: #{small_net2_forward.1} parent=0 // pred_check
    _
  $region35: #{small_net2_forward.1} parent=0 // pred_check_branch
    %7077 = sbr.rel (0) target = $region37
  $region36: #{small_net2_forward.1} parent=0 // pred_region
    _
  $region37: #{small_net2_forward.1} parent=0 // pred_fallthru
    _

</llo_original>
